<compile_context>
chip_gen: v7x
topology: tpu7x:2x2x1
jax: 0.10.0
libtpu: 0.0.40
codegen_flags: <defaults>
</compile_context>

<pallas_src>
import math

import numpy as np
import jax
import jax.numpy as jnp
from jax.experimental import pallas as pl
from jax.experimental.pallas import tpu as pltpu

# ------------------------- configuration (small, TPU-friendly) --------------
B = 2          # batch
C_IN = 4       # c_in
C_OUT = 8      # c_out
N_NODES = 8    # num_nodes  (sublane-friendly)
T_SIZE = 128   # tem_size   (lane-friendly)
K = 3          # Chebyshev order
KT = 3         # time-conv kernel width (module hardcodes padding=(0,1) => Kt must be 3)
EPS = 1e-5     # LayerNorm eps (torch default)
ON = C_OUT * N_NODES

assert KT == 3, "time_conv uses fixed padding=(0,1); only Kt=3 keeps the length"


# ------------------------------ Pallas kernel -------------------------------
def st_block_kernel(
    x4_ref, x2_ref,
    tw1_ref, tw2_ref, tw_ref, tb_ref, tv_ref,
    sw1_ref, sw2_ref, sw_ref, sb_ref, sv_ref,
    c1k_ref, gcnk_ref, tck_ref, erow_ref, ecol_ref,
    gbias_ref, rbias_ref, lnw_ref, lnb_ref,
    out_ref, scoef_ref, tcoef_ref,
):
    f32 = jnp.float32
    x3 = x4_ref[0]             # (C_IN, N, T)      -- for the small weighted sums
    x2d = x2_ref[0]            # (C_IN*N, T)       -- lane-dense view for matmuls

    # ------------------------------- TATT ------------------------------------
    f1_nt = jnp.sum(tw1_ref[...] * x3, axis=0)                           # (N, T)
    f2_ct = jnp.sum(tw2_ref[...] * x3, axis=1)                           # (C, T)
    tmp_t = jnp.dot(f1_nt.T, tw_ref[...], preferred_element_type=f32)    # (T, C)
    logits_t = jnp.dot(tmp_t, f2_ct, preferred_element_type=f32) + tb_ref[...]
    logits_t = 1.0 / (1.0 + jnp.exp(-logits_t))                          # sigmoid
    logits_t = jnp.dot(tv_ref[...], logits_t, preferred_element_type=f32)
    logits_t = logits_t - jnp.max(logits_t, axis=0, keepdims=True)
    e_t = jnp.exp(logits_t - jnp.max(logits_t, axis=-1, keepdims=True))
    inv_t = pl.reciprocal(jnp.sum(e_t, axis=-1, keepdims=True), approx=True)
    coefs_t = e_t * inv_t                                                # (T, T)
    t_coef = coefs_t.T                      # transpose(-1, -2) from forward
    tcoef_ref[0] = t_coef

    # ---------- x_TAt = einsum('cnl,lq->cnq'): single (32,128)x(128,128) -----
    x_tat2d = jnp.dot(x2d, t_coef, preferred_element_type=f32)           # (C*N, T)

    # ------------------------------- SATT ------------------------------------
    g1 = jnp.sum(sw1_ref[...] * x3, axis=0)                              # (N, T)
    g2 = jnp.sum(sw2_ref[...] * x3, axis=2)                              # (C, N)
    tmp_s = jnp.dot(g1, sw_ref[...], preferred_element_type=f32)         # (N, C)
    logits_s = jnp.dot(tmp_s, g2, preferred_element_type=f32) + sb_ref[...]
    logits_s = 1.0 / (1.0 + jnp.exp(-logits_s))
    logits_s = jnp.dot(sv_ref[...], logits_s, preferred_element_type=f32)
    logits_s = logits_s - jnp.max(logits_s, axis=0, keepdims=True)
    e_s = jnp.exp(logits_s - jnp.max(logits_s, axis=-1, keepdims=True))
    inv_s = pl.reciprocal(jnp.sum(e_s, axis=-1, keepdims=True), approx=True)
    s_coef = e_s * inv_s                                                 # (N, N)
    scoef_ref[0] = s_coef

    # ------------- x_input = Conv2d(c_in, c_out, 1x1): one kron matmul -------
    x_input2d = jnp.dot(c1k_ref[...], x2d, preferred_element_type=f32)   # (O*N, T)

    # ----------------------- fused dynamic Chebyshev GCN ---------------------
    # Lap[k] = S_coef (.) T_k(adj); mixing with gw fused into one constant
    # kron matrix (wrapper) that only needs an elementwise scale by a tiled
    # copy of S_coef, then ONE (64,32)x(32,128) MXU matmul.
    s_rep = jnp.dot(s_coef, ecol_ref[...], preferred_element_type=f32)   # (N, C*N)
    s_tile = jnp.dot(erow_ref[...], s_rep, preferred_element_type=f32)   # (O*N, C*N)
    lap_mix = s_tile * gcnk_ref[...]                                     # (O*N, C*N)
    gcn2d = jnp.dot(lap_mix, x_tat2d, preferred_element_type=f32) + gbias_ref[...]
    sg2d = jnp.maximum(gcn2d, 0.0)                                       # (O*N, T)

    # ------- time conv Conv2d(c_out, c_out, (1,Kt), pad=(0,1)) ---------------
    # channel mixing for all KT taps via ONE stacked kron matmul,
    # temporal shifts via lane rolls + iota masks.
    taps = jnp.dot(tck_ref[...], sg2d, preferred_element_type=f32)       # (KT*O*N, T)
    tap0 = taps[0 * ON:1 * ON]                                           # (O*N, T)
    tap1 = taps[1 * ON:2 * ON]
    tap2 = taps[2 * ON:3 * ON]
    lane = jax.lax.broadcasted_iota(jnp.int32, tap1.shape, 1)
    # out[t] = tap0[t-1] + tap1[t] + tap2[t+1]   (zero padded at the ends)
    r0 = jnp.where(lane >= 1,
                   pltpu.roll(tap0, shift=1, axis=1), 0.0)
    r2 = jnp.where(lane <= T_SIZE - 2,
                   pltpu.roll(tap2, shift=T_SIZE - 1, axis=1), 0.0)
    time2d = r0 + tap1 + r2                                              # (O*N, T)

    # ------------- residual + relu + LayerNorm over (c_out, N, T) ------------
    pre = jnp.maximum(time2d + x_input2d + rbias_ref[...], 0.0)
    mu = jnp.mean(pre, axis=(0, 1), keepdims=True)
    centered = pre - mu
    var = jnp.mean(centered * centered, axis=(0, 1), keepdims=True)
    normed = centered * jax.lax.rsqrt(var + EPS)
    out_ref[0] = normed * lnw_ref[...] + lnb_ref[...]


# ------------------------------ wrapper --------------------------------------
def st_block_0_pallas(x, adj, params):
    b, c, n, t = x.shape
    on = C_OUT * n
    cn = c * n
    f32 = jnp.float32
    eye_n = jnp.eye(n, dtype=f32)

    # ---- precomputed constants (parameters / adj only; batch independent) ----
    c1_2d = params['c1w'][:, :, 0, 0]                              # (C_IN, C_OUT)
    c1_kron = jnp.kron(c1_2d.T, eye_n)                             # (O*N, C*N)

    cheb = [eye_n, adj]
    for _ in range(2, K):
        cheb.append(2.0 * adj @ cheb[-1] - cheb[-2])
    gw3 = params['gw'][:, :, 0, 0].reshape(K, C_IN, C_OUT)
    gcn_kron = sum(jnp.kron(gw3[k].T, cheb[k]) for k in range(K))  # (O*N, C*N)

    tc3 = params['tcw'][:, :, 0, 0].reshape(KT, C_OUT, C_OUT)
    tck_stack = jnp.concatenate(
        [jnp.kron(tc3[kt].T, eye_n) for kt in range(KT)], axis=0)  # (KT*O*N, O*N)

    erow = jnp.concatenate([eye_n] * C_OUT, axis=0)                # (O*N, N)
    ecol = jnp.concatenate([eye_n] * C_IN, axis=1)                 # (N, C*N)

    gb_rows = jnp.repeat(params['gb'].reshape(-1), n)[:, None]               # (O*N, 1)
    res_bias = (jnp.repeat(params['c1b'].reshape(-1), n)
                + jnp.repeat(params['tcb'].reshape(-1), n))[:, None]         # (O*N, 1)
    lnw2d = params['lnw'].reshape(on, t)
    lnb2d = params['lnb'].reshape(on, t)

    x2d = x.reshape(b, cn, t)   # lane-dense per-batch view (free, wrapper side)

    const_inputs = [
        params['tw1'], params['tw2'], params['tw'], params['tb'], params['tv'],
        params['sw1'], params['sw2'], params['sw'], params['sb'], params['sv'],
        c1_kron, gcn_kron, tck_stack, erow, ecol,
        gb_rows, res_bias, lnw2d, lnb2d,
    ]

    def const_spec(a):
        nd = a.ndim
        return pl.BlockSpec(a.shape, lambda i, _nd=nd: (0,) * _nd)

    in_specs = [
        pl.BlockSpec((1, c, n, t), lambda i: (i, 0, 0, 0)),
        pl.BlockSpec((1, cn, t), lambda i: (i, 0, 0)),
    ] + [const_spec(a) for a in const_inputs]

    out_shape = (
        jax.ShapeDtypeStruct((b, on, t), f32),     # out as lane-dense 2D rows (o, node)
        jax.ShapeDtypeStruct((b, n, n), f32),      # S_coef
        jax.ShapeDtypeStruct((b, t, t), f32),      # T_coef
    )
    out_specs = (
        pl.BlockSpec((1, on, t), lambda i: (i, 0, 0)),
        pl.BlockSpec((1, n, n), lambda i: (i, 0, 0)),
        pl.BlockSpec((1, t, t), lambda i: (i, 0, 0)),
    )

    fn = pl.pallas_call(
        st_block_kernel,
        out_shape=out_shape,
        grid=(b,),
        in_specs=in_specs,
        out_specs=out_specs,
        compiler_params=pltpu.CompilerParams(dimension_semantics=("parallel",)),
    )
    out2d, s_coef, t_coef = fn(x, x2d, *const_inputs)
    return out2d.reshape(b, C_OUT, n, t), s_coef, t_coef


# --------------------------- pure-JAX reference -------------------------------
def st_block_0_reference(x, adj, params):
    bn, cn, nn, tn = x.shape
    w1 = params['c1w'][:, :, 0, 0]                              # (C, O)
    x_input = jnp.einsum('co,bcnt->bont', w1, x) + params['c1b'].reshape(1, -1, 1, 1)

    # TATT
    tw1 = params['tw1'].reshape(-1)
    tw2 = params['tw2'].reshape(-1)
    f1 = jnp.einsum('c,bcnt->btn', tw1, x)
    f2 = jnp.einsum('n,bcnt->bct', tw2, x)
    logits = jax.nn.sigmoid(jnp.einsum('btn,nc,bcq->btq', f1, params['tw'], f2)
                            + params['tb'])
    logits = jnp.einsum('pt,btq->bpq', params['tv'], logits)
    logits = logits - jnp.max(logits, axis=1, keepdims=True)
    t_coef = jax.nn.softmax(logits, axis=-1)
    t_coef = jnp.swapaxes(t_coef, -1, -2)
    x_tat = jnp.einsum('bcnl,blq->bcnq', x, t_coef)

    # SATT
    sw1 = params['sw1'].reshape(-1)
    sw2 = params['sw2'].reshape(-1)
    g1 = jnp.einsum('c,bcnt->bnt', sw1, x)
    g2 = jnp.einsum('t,bcnt->bcn', sw2, x)
    slog = jax.nn.sigmoid(jnp.einsum('bnt,tc,bcm->bnm', g1, params['sw'], g2)
                          + params['sb'])
    slog = jnp.einsum('pn,bnm->bpm', params['sv'], slog)
    slog = slog - jnp.max(slog, axis=1, keepdims=True)
    s_coef = jax.nn.softmax(slog, axis=-1)

    # cheby_conv_ds
    eye_n = jnp.eye(nn, dtype=x.dtype)
    laps = [s_coef * eye_n, s_coef * adj]
    l0m, l1m = eye_n, adj
    for _ in range(2, K):
        l2m = 2.0 * adj @ l1m - l0m
        l0m, l1m = l1m, l2m
        laps.append(s_coef * l2m)
    lap = jnp.stack(laps, axis=1)                               # (B, K, Q, N)
    y = jnp.einsum('bcnl,bkqn->bckql', x_tat, lap)
    gw = params['gw'][:, :, 0, 0].reshape(K, C_IN, C_OUT)
    gcn = jnp.einsum('bckql,kco->boql', y, gw) + params['gb'].reshape(1, -1, 1, 1)
    sg = jax.nn.relu(gcn)

    # time conv (1, Kt) padding (0, 1)
    tcw = params['tcw'][:, :, 0, 0].reshape(KT, C_OUT, C_OUT)
    pad = jnp.pad(sg, ((0, 0), (0, 0), (0, 0), (1, 1)))
    tco = sum(jnp.einsum('co,bcnt->bont', tcw[kt], pad[..., kt:kt + tn])
              for kt in range(KT))
    tco = tco + params['tcb'].reshape(1, -1, 1, 1)

    pre = jax.nn.relu(tco + x_input)
    mu = jnp.mean(pre, axis=(1, 2, 3), keepdims=True)
    var = jnp.mean((pre - mu) ** 2, axis=(1, 2, 3), keepdims=True)
    out = (pre - mu) / jnp.sqrt(var + EPS) * params['lnw'] + params['lnb']
    return out, s_coef, t_coef


# ------------------------------- parameters -----------------------------------
def make_params(key):
    ks = jax.random.split(key, 16)

    def u(k, shape, scale):
        return jax.random.uniform(k, shape, jnp.float32, -scale, scale)

    def xavier(k, shape):
        bound = math.sqrt(6.0 / (shape[0] + shape[1]))
        return jax.random.uniform(k, shape, jnp.float32, -bound, bound)

    p = {}
    p['c1w'] = u(ks[0], (C_IN, C_OUT, 1, 1), 1.0 / math.sqrt(C_IN))
    p['c1b'] = u(ks[1], (C_OUT, 1, 1), 0.1)
    p['tw1'] = u(ks[2], (C_IN, 1, 1), 1.0 / math.sqrt(C_IN))
    p['tw2'] = u(ks[3], (1, N_NODES, 1), 1.0 / math.sqrt(N_NODES))
    p['tw'] = xavier(ks[4], (N_NODES, C_IN))
    p['tb'] = jnp.zeros((T_SIZE, T_SIZE), jnp.float32)
    p['tv'] = xavier(ks[5], (T_SIZE, T_SIZE))
    p['sw1'] = u(ks[6], (C_IN, 1, 1), 1.0 / math.sqrt(C_IN))
    p['sw2'] = u(ks[7], (1, 1, T_SIZE), 1.0 / math.sqrt(T_SIZE))
    p['sw'] = xavier(ks[8], (T_SIZE, C_IN))
    p['sb'] = jnp.zeros((N_NODES, N_NODES), jnp.float32)
    p['sv'] = xavier(ks[9], (N_NODES, N_NODES))
    p['gw'] = u(ks[10], (K * C_IN, C_OUT, 1, 1), 1.0 / math.sqrt(K * C_IN))
    p['gb'] = u(ks[11], (C_OUT, 1, 1), 0.1)
    p['tcw'] = u(ks[12], (KT * C_OUT, C_OUT, 1, 1), 1.0 / math.sqrt(KT * C_OUT))
    p['tcb'] = u(ks[13], (C_OUT, 1, 1), 0.1)
    p['lnw'] = jnp.ones((C_OUT, N_NODES, T_SIZE), jnp.float32)    # torch LayerNorm default
    p['lnb'] = jnp.zeros((C_OUT, N_NODES, T_SIZE), jnp.float32)
    return p


# ---------------------------------- main ---------------------------------------
if __name__ == "__main__":
    key = jax.random.PRNGKey(0)
    k_x, k_adj, k_par = jax.random.split(key, 3)
    x = jax.random.normal(k_x, (B, C_IN, N_NODES, T_SIZE), jnp.float32)
    adj = jax.random.uniform(k_adj, (N_NODES, N_NODES), jnp.float32) / N_NODES
    params = make_params(k_par)

    out_p, s_p, t_p = st_block_0_pallas(x, adj, params)
    jax.block_until_ready((out_p, s_p, t_p))

    out_r, s_r, t_r = st_block_0_reference(x, adj, params)
    # tolerances absorb MXU / approx-reciprocal rounding differences
    # (real semantic errors are orders of magnitude larger).
    for got, want in ((out_p, out_r), (s_p, s_r), (t_p, t_r)):
        np.testing.assert_allclose(np.asarray(got), np.asarray(want),
                                   rtol=2e-2, atol=5e-3)
    print("KERNEL_OK")
</pallas_src>

<mosaic_0001>
module attributes {stable_mosaic.version = 11 : i64} {
  func.func @st_block_kernel(%arg0: i32, %arg1: memref<1x4x8x128xf32, #tpu.memory_space<vmem>>, %arg2: memref<1x32x128xf32, #tpu.memory_space<vmem>>, %arg3: memref<4x1x1xf32, #tpu.memory_space<vmem>>, %arg4: memref<1x8x1xf32, #tpu.memory_space<vmem>>, %arg5: memref<8x4xf32, #tpu.memory_space<vmem>>, %arg6: memref<128x128xf32, #tpu.memory_space<vmem>>, %arg7: memref<128x128xf32, #tpu.memory_space<vmem>>, %arg8: memref<4x1x1xf32, #tpu.memory_space<vmem>>, %arg9: memref<1x1x128xf32, #tpu.memory_space<vmem>>, %arg10: memref<128x4xf32, #tpu.memory_space<vmem>>, %arg11: memref<8x8xf32, #tpu.memory_space<vmem>>, %arg12: memref<8x8xf32, #tpu.memory_space<vmem>>, %arg13: memref<64x32xf32, #tpu.memory_space<vmem>>, %arg14: memref<64x32xf32, #tpu.memory_space<vmem>>, %arg15: memref<192x64xf32, #tpu.memory_space<vmem>>, %arg16: memref<64x8xf32, #tpu.memory_space<vmem>>, %arg17: memref<8x32xf32, #tpu.memory_space<vmem>>, %arg18: memref<64x1xf32, #tpu.memory_space<vmem>>, %arg19: memref<64x1xf32, #tpu.memory_space<vmem>>, %arg20: memref<64x128xf32, #tpu.memory_space<vmem>>, %arg21: memref<64x128xf32, #tpu.memory_space<vmem>>, %arg22: memref<1x64x128xf32, #tpu.memory_space<vmem>>, %arg23: memref<1x8x8xf32, #tpu.memory_space<vmem>>, %arg24: memref<1x128x128xf32, #tpu.memory_space<vmem>>) attributes {dimension_semantics = [#tpu.dimension_semantics<parallel>], iteration_bounds = array<i64: 2>, scalar_prefetch = 0 : i64, scratch_operands = 0 : i64, tpu.core_type = #tpu.core_type<tc>, window_params = [{transform_indices = @transform_0, window_bounds = array<i64: 1, 4, 8, 128>}, {transform_indices = @transform_1, window_bounds = array<i64: 1, 32, 128>}, {pipeline_mode = #tpu.pipeline_mode<synchronous>, transform_indices = @transform_2, window_bounds = array<i64: 4, 1, 1>}, {pipeline_mode = #tpu.pipeline_mode<synchronous>, transform_indices = @transform_3, window_bounds = array<i64: 1, 8, 1>}, {pipeline_mode = #tpu.pipeline_mode<synchronous>, transform_indices = @transform_4, window_bounds = array<i64: 8, 4>}, {pipeline_mode = #tpu.pipeline_mode<synchronous>, transform_indices = @transform_5, window_bounds = array<i64: 128, 128>}, {pipeline_mode = #tpu.pipeline_mode<synchronous>, transform_indices = @transform_6, window_bounds = array<i64: 128, 128>}, {pipeline_mode = #tpu.pipeline_mode<synchronous>, transform_indices = @transform_7, window_bounds = array<i64: 4, 1, 1>}, {pipeline_mode = #tpu.pipeline_mode<synchronous>, transform_indices = @transform_8, window_bounds = array<i64: 1, 1, 128>}, {pipeline_mode = #tpu.pipeline_mode<synchronous>, transform_indices = @transform_9, window_bounds = array<i64: 128, 4>}, {pipeline_mode = #tpu.pipeline_mode<synchronous>, transform_indices = @transform_10, window_bounds = array<i64: 8, 8>}, {pipeline_mode = #tpu.pipeline_mode<synchronous>, transform_indices = @transform_11, window_bounds = array<i64: 8, 8>}, {pipeline_mode = #tpu.pipeline_mode<synchronous>, transform_indices = @transform_12, window_bounds = array<i64: 64, 32>}, {pipeline_mode = #tpu.pipeline_mode<synchronous>, transform_indices = @transform_13, window_bounds = array<i64: 64, 32>}, {pipeline_mode = #tpu.pipeline_mode<synchronous>, transform_indices = @transform_14, window_bounds = array<i64: 192, 64>}, {pipeline_mode = #tpu.pipeline_mode<synchronous>, transform_indices = @transform_15, window_bounds = array<i64: 64, 8>}, {pipeline_mode = #tpu.pipeline_mode<synchronous>, transform_indices = @transform_16, window_bounds = array<i64: 8, 32>}, {pipeline_mode = #tpu.pipeline_mode<synchronous>, transform_indices = @transform_17, window_bounds = array<i64: 64, 1>}, {pipeline_mode = #tpu.pipeline_mode<synchronous>, transform_indices = @transform_18, window_bounds = array<i64: 64, 1>}, {pipeline_mode = #tpu.pipeline_mode<synchronous>, transform_indices = @transform_19, window_bounds = array<i64: 64, 128>}, {pipeline_mode = #tpu.pipeline_mode<synchronous>, transform_indices = @transform_20, window_bounds = array<i64: 64, 128>}, {transform_indices = @transform_21, window_bounds = array<i64: 1, 64, 128>}, {transform_indices = @transform_22, window_bounds = array<i64: 1, 8, 8>}, {transform_indices = @transform_23, window_bounds = array<i64: 1, 128, 128>}]} {
    %c0 = arith.constant 0 : index
    %c0_0 = arith.constant 0 : index
    %c0_1 = arith.constant 0 : index
    %c0_2 = arith.constant 0 : index
    %0 = vector.load %arg1[%c0, %c0_0, %c0_1, %c0_2] : memref<1x4x8x128xf32, #tpu.memory_space<vmem>>, vector<1x4x8x128xf32>
    %1 = vector.shape_cast %0 : vector<1x4x8x128xf32> to vector<4x8x128xf32>
    %c0_3 = arith.constant 0 : index
    %c0_4 = arith.constant 0 : index
    %c0_5 = arith.constant 0 : index
    %2 = vector.load %arg2[%c0_3, %c0_4, %c0_5] : memref<1x32x128xf32, #tpu.memory_space<vmem>>, vector<1x32x128xf32>
    %3 = vector.shape_cast %2 : vector<1x32x128xf32> to vector<32x128xf32>
    %c0_6 = arith.constant 0 : index
    %c0_7 = arith.constant 0 : index
    %c0_8 = arith.constant 0 : index
    %4 = vector.load %arg3[%c0_6, %c0_7, %c0_8] : memref<4x1x1xf32, #tpu.memory_space<vmem>>, vector<4x1x1xf32>
    %5 = vector.broadcast %4 : vector<4x1x1xf32> to vector<4x8x128xf32>
    %6 = arith.mulf %5, %1 : vector<4x8x128xf32>
    %cst = arith.constant dense<0.000000e+00> : vector<8x128xf32>
    %7 = vector.multi_reduction <add>, %6, %cst [0] : vector<4x8x128xf32> to vector<8x128xf32>
    %c0_9 = arith.constant 0 : index
    %c0_10 = arith.constant 0 : index
    %c0_11 = arith.constant 0 : index
    %8 = vector.load %arg4[%c0_9, %c0_10, %c0_11] : memref<1x8x1xf32, #tpu.memory_space<vmem>>, vector<1x8x1xf32>
    %9 = vector.broadcast %8 : vector<1x8x1xf32> to vector<4x8x128xf32>
    %10 = arith.mulf %9, %1 : vector<4x8x128xf32>
    %cst_12 = arith.constant dense<0.000000e+00> : vector<4x128xf32>
    %11 = vector.multi_reduction <add>, %10, %cst_12 [1] : vector<4x8x128xf32> to vector<4x128xf32>
    %12 = tpu.transpose %7, [1, 0] : vector<8x128xf32> -> vector<128x8xf32>
    %c0_13 = arith.constant 0 : index
    %c0_14 = arith.constant 0 : index
    %13 = vector.load %arg5[%c0_13, %c0_14] : memref<8x4xf32, #tpu.memory_space<vmem>>, vector<8x4xf32>
    %cst_15 = arith.constant dense<0.000000e+00> : vector<128x4xf32>
    %14 = tpu.matmul %12, %13, %cst_15 {dimension_numbers = #tpu.dot_dimension_numbers<[1], [0], [0], [1], [0, 0, 1, 1], [], []>} : vector<128x8xf32>, vector<8x4xf32>, vector<128x4xf32> -> vector<128x4xf32>
    %cst_16 = arith.constant dense<0.000000e+00> : vector<128x128xf32>
    %15 = tpu.matmul %14, %11, %cst_16 {dimension_numbers = #tpu.dot_dimension_numbers<[1], [0], [0], [1], [0, 0, 1, 1], [], []>} : vector<128x4xf32>, vector<4x128xf32>, vector<128x128xf32> -> vector<128x128xf32>
    %c0_17 = arith.constant 0 : index
    %c0_18 = arith.constant 0 : index
    %16 = vector.load %arg6[%c0_17, %c0_18] : memref<128x128xf32, #tpu.memory_space<vmem>>, vector<128x128xf32>
    %17 = arith.addf %15, %16 : vector<128x128xf32>
    %cst_19 = arith.constant 0.000000e+00 : f32
    %18 = vector.broadcast %cst_19 : f32 to vector<128x128xf32>
    %19 = arith.subf %18, %17 : vector<128x128xf32>
    %20 = math.exp %19 : vector<128x128xf32>
    %cst_20 = arith.constant 1.000000e+00 : f32
    %21 = vector.broadcast %cst_20 : f32 to vector<128x128xf32>
    %22 = arith.addf %21, %20 : vector<128x128xf32>
    %cst_21 = arith.constant 1.000000e+00 : f32
    %23 = vector.broadcast %cst_21 : f32 to vector<128x128xf32>
    %24 = arith.divf %23, %22 : vector<128x128xf32>
    %c0_22 = arith.constant 0 : index
    %c0_23 = arith.constant 0 : index
    %25 = vector.load %arg7[%c0_22, %c0_23] : memref<128x128xf32, #tpu.memory_space<vmem>>, vector<128x128xf32>
    %cst_24 = arith.constant dense<0.000000e+00> : vector<128x128xf32>
    %26 = tpu.matmul %25, %24, %cst_24 {dimension_numbers = #tpu.dot_dimension_numbers<[1], [0], [0], [1], [0, 0, 1, 1], [], []>} : vector<128x128xf32>, vector<128x128xf32>, vector<128x128xf32> -> vector<128x128xf32>
    %cst_25 = arith.constant dense<0xFF800000> : vector<128xf32>
    %27 = vector.multi_reduction <maximumf>, %26, %cst_25 [0] : vector<128x128xf32> to vector<128xf32>
    %28 = vector.shape_cast %27 : vector<128xf32> to vector<1x128xf32>
    %29 = vector.broadcast %28 : vector<1x128xf32> to vector<128x128xf32>
    %30 = arith.subf %26, %29 : vector<128x128xf32>
    %cst_26 = arith.constant dense<0xFF800000> : vector<128xf32>
    %31 = vector.multi_reduction <maximumf>, %30, %cst_26 [1] : vector<128x128xf32> to vector<128xf32>
    %32 = vector.shape_cast %31 : vector<128xf32> to vector<128x1xf32>
    %33 = vector.broadcast %32 : vector<128x1xf32> to vector<128x128xf32>
    %34 = arith.subf %30, %33 : vector<128x128xf32>
    %35 = math.exp %34 : vector<128x128xf32>
    %cst_27 = arith.constant dense<0.000000e+00> : vector<128xf32>
    %36 = vector.multi_reduction <add>, %35, %cst_27 [1] : vector<128x128xf32> to vector<128xf32>
    %37 = vector.shape_cast %36 : vector<128xf32> to vector<128x1xf32>
    %38 = tpu.reciprocal %37 {approx = true} : vector<128x1xf32> -> vector<128x1xf32>
    %39 = vector.broadcast %38 : vector<128x1xf32> to vector<128x128xf32>
    %40 = arith.mulf %35, %39 : vector<128x128xf32>
    %41 = tpu.transpose %40, [1, 0] : vector<128x128xf32> -> vector<128x128xf32>
    %c0_28 = arith.constant 0 : index
    %c0_29 = arith.constant 0 : index
    %c0_30 = arith.constant 0 : index
    %42 = vector.load %arg24[%c0_28, %c0_29, %c0_30] : memref<1x128x128xf32, #tpu.memory_space<vmem>>, vector<1x128x128xf32>
    %43 = vector.shape_cast %42 : vector<1x128x128xf32> to vector<128x128xf32>
    %44 = vector.shape_cast %41 : vector<128x128xf32> to vector<1x128x128xf32>
    tpu.vector_store %arg24[%c0_28, %c0_29, %c0_30], %44 {strides = array<i32>} : memref<1x128x128xf32, #tpu.memory_space<vmem>>, vector<1x128x128xf32>,
    %cst_31 = arith.constant dense<0.000000e+00> : vector<32x128xf32>
    %45 = tpu.matmul %3, %41, %cst_31 {dimension_numbers = #tpu.dot_dimension_numbers<[1], [0], [0], [1], [0, 0, 1, 1], [], []>} : vector<32x128xf32>, vector<128x128xf32>, vector<32x128xf32> -> vector<32x128xf32>
    %c0_32 = arith.constant 0 : index
    %c0_33 = arith.constant 0 : index
    %c0_34 = arith.constant 0 : index
    %46 = vector.load %arg8[%c0_32, %c0_33, %c0_34] : memref<4x1x1xf32, #tpu.memory_space<vmem>>, vector<4x1x1xf32>
    %47 = vector.broadcast %46 : vector<4x1x1xf32> to vector<4x8x128xf32>
    %48 = arith.mulf %47, %1 : vector<4x8x128xf32>
    %cst_35 = arith.constant dense<0.000000e+00> : vector<8x128xf32>
    %49 = vector.multi_reduction <add>, %48, %cst_35 [0] : vector<4x8x128xf32> to vector<8x128xf32>
    %c0_36 = arith.constant 0 : index
    %c0_37 = arith.constant 0 : index
    %c0_38 = arith.constant 0 : index
    %50 = vector.load %arg9[%c0_36, %c0_37, %c0_38] : memref<1x1x128xf32, #tpu.memory_space<vmem>>, vector<1x1x128xf32>
    %51 = vector.broadcast %50 : vector<1x1x128xf32> to vector<4x8x128xf32>
    %52 = arith.mulf %51, %1 : vector<4x8x128xf32>
    %cst_39 = arith.constant dense<0.000000e+00> : vector<4x8xf32>
    %53 = vector.multi_reduction <add>, %52, %cst_39 [2] : vector<4x8x128xf32> to vector<4x8xf32>
    %c0_40 = arith.constant 0 : index
    %c0_41 = arith.constant 0 : index
    %54 = vector.load %arg10[%c0_40, %c0_41] : memref<128x4xf32, #tpu.memory_space<vmem>>, vector<128x4xf32>
    %cst_42 = arith.constant dense<0.000000e+00> : vector<8x4xf32>
    %55 = tpu.matmul %49, %54, %cst_42 {dimension_numbers = #tpu.dot_dimension_numbers<[1], [0], [0], [1], [0, 0, 1, 1], [], []>} : vector<8x128xf32>, vector<128x4xf32>, vector<8x4xf32> -> vector<8x4xf32>
    %cst_43 = arith.constant dense<0.000000e+00> : vector<8x8xf32>
    %56 = tpu.matmul %55, %53, %cst_43 {dimension_numbers = #tpu.dot_dimension_numbers<[1], [0], [0], [1], [0, 0, 1, 1], [], []>} : vector<8x4xf32>, vector<4x8xf32>, vector<8x8xf32> -> vector<8x8xf32>
    %c0_44 = arith.constant 0 : index
    %c0_45 = arith.constant 0 : index
    %57 = vector.load %arg11[%c0_44, %c0_45] : memref<8x8xf32, #tpu.memory_space<vmem>>, vector<8x8xf32>
    %58 = arith.addf %56, %57 : vector<8x8xf32>
    %cst_46 = arith.constant 0.000000e+00 : f32
    %59 = vector.broadcast %cst_46 : f32 to vector<8x8xf32>
    %60 = arith.subf %59, %58 : vector<8x8xf32>
    %61 = math.exp %60 : vector<8x8xf32>
    %cst_47 = arith.constant 1.000000e+00 : f32
    %62 = vector.broadcast %cst_47 : f32 to vector<8x8xf32>
    %63 = arith.addf %62, %61 : vector<8x8xf32>
    %cst_48 = arith.constant 1.000000e+00 : f32
    %64 = vector.broadcast %cst_48 : f32 to vector<8x8xf32>
    %65 = arith.divf %64, %63 : vector<8x8xf32>
    %c0_49 = arith.constant 0 : index
    %c0_50 = arith.constant 0 : index
    %66 = vector.load %arg12[%c0_49, %c0_50] : memref<8x8xf32, #tpu.memory_space<vmem>>, vector<8x8xf32>
    %cst_51 = arith.constant dense<0.000000e+00> : vector<8x8xf32>
    %67 = tpu.matmul %66, %65, %cst_51 {dimension_numbers = #tpu.dot_dimension_numbers<[1], [0], [0], [1], [0, 0, 1, 1], [], []>} : vector<8x8xf32>, vector<8x8xf32>, vector<8x8xf32> -> vector<8x8xf32>
    %cst_52 = arith.constant dense<0xFF800000> : vector<8xf32>
    %68 = vector.multi_reduction <maximumf>, %67, %cst_52 [0] : vector<8x8xf32> to vector<8xf32>
    %69 = vector.shape_cast %68 : vector<8xf32> to vector<1x8xf32>
    %70 = vector.broadcast %69 : vector<1x8xf32> to vector<8x8xf32>
    %71 = arith.subf %67, %70 : vector<8x8xf32>
    %cst_53 = arith.constant dense<0xFF800000> : vector<8xf32>
    %72 = vector.multi_reduction <maximumf>, %71, %cst_53 [1] : vector<8x8xf32> to vector<8xf32>
    %73 = vector.shape_cast %72 : vector<8xf32> to vector<8x1xf32>
    %74 = vector.broadcast %73 : vector<8x1xf32> to vector<8x8xf32>
    %75 = arith.subf %71, %74 : vector<8x8xf32>
    %76 = math.exp %75 : vector<8x8xf32>
    %cst_54 = arith.constant dense<0.000000e+00> : vector<8xf32>
    %77 = vector.multi_reduction <add>, %76, %cst_54 [1] : vector<8x8xf32> to vector<8xf32>
    %78 = vector.shape_cast %77 : vector<8xf32> to vector<8x1xf32>
    %79 = tpu.reciprocal %78 {approx = true} : vector<8x1xf32> -> vector<8x1xf32>
    %80 = vector.broadcast %79 : vector<8x1xf32> to vector<8x8xf32>
    %81 = arith.mulf %76, %80 : vector<8x8xf32>
    %c0_55 = arith.constant 0 : index
    %c0_56 = arith.constant 0 : index
    %c0_57 = arith.constant 0 : index
    %82 = vector.load %arg23[%c0_55, %c0_56, %c0_57] : memref<1x8x8xf32, #tpu.memory_space<vmem>>, vector<1x8x8xf32>
    %83 = vector.shape_cast %82 : vector<1x8x8xf32> to vector<8x8xf32>
    %84 = vector.shape_cast %81 : vector<8x8xf32> to vector<1x8x8xf32>
    tpu.vector_store %arg23[%c0_55, %c0_56, %c0_57], %84 {strides = array<i32>} : memref<1x8x8xf32, #tpu.memory_space<vmem>>, vector<1x8x8xf32>,
    %c0_58 = arith.constant 0 : index
    %c0_59 = arith.constant 0 : index
    %85 = vector.load %arg13[%c0_58, %c0_59] : memref<64x32xf32, #tpu.memory_space<vmem>>, vector<64x32xf32>
    %cst_60 = arith.constant dense<0.000000e+00> : vector<64x128xf32>
    %86 = tpu.matmul %85, %3, %cst_60 {dimension_numbers = #tpu.dot_dimension_numbers<[1], [0], [0], [1], [0, 0, 1, 1], [], []>} : vector<64x32xf32>, vector<32x128xf32>, vector<64x128xf32> -> vector<64x128xf32>
    %c0_61 = arith.constant 0 : index
    %c0_62 = arith.constant 0 : index
    %87 = vector.load %arg17[%c0_61, %c0_62] : memref<8x32xf32, #tpu.memory_space<vmem>>, vector<8x32xf32>
    %cst_63 = arith.constant dense<0.000000e+00> : vector<8x32xf32>
    %88 = tpu.matmul %81, %87, %cst_63 {dimension_numbers = #tpu.dot_dimension_numbers<[1], [0], [0], [1], [0, 0, 1, 1], [], []>} : vector<8x8xf32>, vector<8x32xf32>, vector<8x32xf32> -> vector<8x32xf32>
    %c0_64 = arith.constant 0 : index
    %c0_65 = arith.constant 0 : index
    %89 = vector.load %arg16[%c0_64, %c0_65] : memref<64x8xf32, #tpu.memory_space<vmem>>, vector<64x8xf32>
    %cst_66 = arith.constant dense<0.000000e+00> : vector<64x32xf32>
    %90 = tpu.matmul %89, %88, %cst_66 {dimension_numbers = #tpu.dot_dimension_numbers<[1], [0], [0], [1], [0, 0, 1, 1], [], []>} : vector<64x8xf32>, vector<8x32xf32>, vector<64x32xf32> -> vector<64x32xf32>
    %c0_67 = arith.constant 0 : index
    %c0_68 = arith.constant 0 : index
    %91 = vector.load %arg14[%c0_67, %c0_68] : memref<64x32xf32, #tpu.memory_space<vmem>>, vector<64x32xf32>
    %92 = arith.mulf %90, %91 : vector<64x32xf32>
    %cst_69 = arith.constant dense<0.000000e+00> : vector<64x128xf32>
    %93 = tpu.matmul %92, %45, %cst_69 {dimension_numbers = #tpu.dot_dimension_numbers<[1], [0], [0], [1], [0, 0, 1, 1], [], []>} : vector<64x32xf32>, vector<32x128xf32>, vector<64x128xf32> -> vector<64x128xf32>
    %c0_70 = arith.constant 0 : index
    %c0_71 = arith.constant 0 : index
    %94 = vector.load %arg18[%c0_70, %c0_71] : memref<64x1xf32, #tpu.memory_space<vmem>>, vector<64x1xf32>
    %95 = vector.broadcast %94 : vector<64x1xf32> to vector<64x128xf32>
    %96 = arith.addf %93, %95 : vector<64x128xf32>
    %cst_72 = arith.constant 0.000000e+00 : f32
    %97 = vector.broadcast %cst_72 : f32 to vector<64x128xf32>
    %98 = arith.maximumf %96, %97 : vector<64x128xf32>
    %c0_73 = arith.constant 0 : index
    %c0_74 = arith.constant 0 : index
    %99 = vector.load %arg15[%c0_73, %c0_74] : memref<192x64xf32, #tpu.memory_space<vmem>>, vector<192x64xf32>
    %cst_75 = arith.constant dense<0.000000e+00> : vector<192x128xf32>
    %100 = tpu.matmul %99, %98, %cst_75 {dimension_numbers = #tpu.dot_dimension_numbers<[1], [0], [0], [1], [0, 0, 1, 1], [], []>} : vector<192x64xf32>, vector<64x128xf32>, vector<192x128xf32> -> vector<192x128xf32>
    %101 = vector.extract_strided_slice %100 {offsets = [0, 0], sizes = [64, 128], strides = [1, 1]} : vector<192x128xf32> to vector<64x128xf32>
    %102 = vector.extract_strided_slice %100 {offsets = [64, 0], sizes = [64, 128], strides = [1, 1]} : vector<192x128xf32> to vector<64x128xf32>
    %103 = vector.extract_strided_slice %100 {offsets = [128, 0], sizes = [64, 128], strides = [1, 1]} : vector<192x128xf32> to vector<64x128xf32>
    %104 = tpu.iota {dimensions = array<i32: 1>} : vector<64x128xi32>
    %c1_i32 = arith.constant 1 : i32
    %105 = vector.broadcast %c1_i32 : i32 to vector<64x128xi32>
    %106 = arith.cmpi sge, %104, %105 : vector<64x128xi32>
    %c1_i32_76 = arith.constant 1 : i32
    %107 = tpu.dynamic_rotate %101 by %c1_i32_76 dim 1 : vector<64x128xf32>, i32 -> vector<64x128xf32>
    %cst_77 = arith.constant 0.000000e+00 : f32
    %108 = vector.broadcast %cst_77 : f32 to vector<64x128xf32>
    %109 = arith.select %106, %107, %108 : vector<64x128xi1>, vector<64x128xf32>
    %c126_i32 = arith.constant 126 : i32
    %110 = vector.broadcast %c126_i32 : i32 to vector<64x128xi32>
    %111 = arith.cmpi sle, %104, %110 : vector<64x128xi32>
    %c127_i32 = arith.constant 127 : i32
    %112 = tpu.dynamic_rotate %103 by %c127_i32 dim 1 : vector<64x128xf32>, i32 -> vector<64x128xf32>
    %cst_78 = arith.constant 0.000000e+00 : f32
    %113 = vector.broadcast %cst_78 : f32 to vector<64x128xf32>
    %114 = arith.select %111, %112, %113 : vector<64x128xi1>, vector<64x128xf32>
    %115 = arith.addf %109, %102 : vector<64x128xf32>
    %116 = arith.addf %115, %114 : vector<64x128xf32>
    %117 = arith.addf %116, %86 : vector<64x128xf32>
    %c0_79 = arith.constant 0 : index
    %c0_80 = arith.constant 0 : index
    %118 = vector.load %arg19[%c0_79, %c0_80] : memref<64x1xf32, #tpu.memory_space<vmem>>, vector<64x1xf32>
    %119 = vector.broadcast %118 : vector<64x1xf32> to vector<64x128xf32>
    %120 = arith.addf %117, %119 : vector<64x128xf32>
    %cst_81 = arith.constant 0.000000e+00 : f32
    %121 = vector.broadcast %cst_81 : f32 to vector<64x128xf32>
    %122 = arith.maximumf %120, %121 : vector<64x128xf32>
    %123 = vector.shape_cast %122 : vector<64x128xf32> to vector<1x64x128xf32>
    %cst_82 = arith.constant dense<0.000000e+00> : vector<1xf32>
    %124 = vector.multi_reduction <add>, %123, %cst_82 [1, 2] : vector<1x64x128xf32> to vector<1xf32>
    %125 = vector.shape_cast %124 : vector<1xf32> to vector<1x1x1xf32>
    %126 = vector.extract %125[0, 0, 0] : f32 from vector<1x1x1xf32>
    %127 = vector.broadcast %126 : f32 to vector<1x1xf32>
    %cst_83 = arith.constant 8.192000e+03 : f32
    %128 = vector.broadcast %cst_83 : f32 to vector<1x1xf32>
    %129 = arith.divf %127, %128 : vector<1x1xf32>
    %130 = vector.broadcast %129 : vector<1x1xf32> to vector<64x128xf32>
    %131 = arith.subf %122, %130 : vector<64x128xf32>
    %132 = arith.mulf %131, %131 : vector<64x128xf32>
    %133 = vector.shape_cast %132 : vector<64x128xf32> to vector<1x64x128xf32>
    %cst_84 = arith.constant dense<0.000000e+00> : vector<1xf32>
    %134 = vector.multi_reduction <add>, %133, %cst_84 [1, 2] : vector<1x64x128xf32> to vector<1xf32>
    %135 = vector.shape_cast %134 : vector<1xf32> to vector<1x1x1xf32>
    %136 = vector.extract %135[0, 0, 0] : f32 from vector<1x1x1xf32>
    %137 = vector.broadcast %136 : f32 to vector<1x1xf32>
    %cst_85 = arith.constant 8.192000e+03 : f32
    %138 = vector.broadcast %cst_85 : f32 to vector<1x1xf32>
    %139 = arith.divf %137, %138 : vector<1x1xf32>
    %cst_86 = arith.constant 9.99999974E-6 : f32
    %140 = vector.broadcast %cst_86 : f32 to vector<1x1xf32>
    %141 = arith.addf %139, %140 : vector<1x1xf32>
    %142 = math.rsqrt %141 : vector<1x1xf32>
    %143 = vector.broadcast %142 : vector<1x1xf32> to vector<64x128xf32>
    %144 = arith.mulf %131, %143 : vector<64x128xf32>
    %c0_87 = arith.constant 0 : index
    %c0_88 = arith.constant 0 : index
    %145 = vector.load %arg20[%c0_87, %c0_88] : memref<64x128xf32, #tpu.memory_space<vmem>>, vector<64x128xf32>
    %146 = arith.mulf %144, %145 : vector<64x128xf32>
    %c0_89 = arith.constant 0 : index
    %c0_90 = arith.constant 0 : index
    %147 = vector.load %arg21[%c0_89, %c0_90] : memref<64x128xf32, #tpu.memory_space<vmem>>, vector<64x128xf32>
    %148 = arith.addf %146, %147 : vector<64x128xf32>
    %c0_91 = arith.constant 0 : index
    %c0_92 = arith.constant 0 : index
    %c0_93 = arith.constant 0 : index
    %149 = vector.load %arg22[%c0_91, %c0_92, %c0_93] : memref<1x64x128xf32, #tpu.memory_space<vmem>>, vector<1x64x128xf32>
    %150 = vector.shape_cast %149 : vector<1x64x128xf32> to vector<64x128xf32>
    %151 = vector.shape_cast %148 : vector<64x128xf32> to vector<1x64x128xf32>
    tpu.vector_store %arg22[%c0_91, %c0_92, %c0_93], %151 {strides = array<i32>} : memref<1x64x128xf32, #tpu.memory_space<vmem>>, vector<1x64x128xf32>,
    return
  }
  func.func @transform_0(%arg0: i32) -> (i32, i32, i32, i32) {
    %c0_i32 = arith.constant 0 : i32
    %c0_i32_0 = arith.constant 0 : i32
    %c0_i32_1 = arith.constant 0 : i32
    %c0_i32_2 = arith.constant 0 : i32
    return %arg0, %c0_i32, %c0_i32_0, %c0_i32_1 : i32, i32, i32, i32
  }
  func.func @transform_1(%arg0: i32) -> (i32, i32, i32) {
    %c0_i32 = arith.constant 0 : i32
    %c0_i32_0 = arith.constant 0 : i32
    %c0_i32_1 = arith.constant 0 : i32
    return %arg0, %c0_i32, %c0_i32_0 : i32, i32, i32
  }
  func.func @transform_2(%arg0: i32) -> (i32, i32, i32) {
    %c0_i32 = arith.constant 0 : i32
    %c0_i32_0 = arith.constant 0 : i32
    %c0_i32_1 = arith.constant 0 : i32
    %c0_i32_2 = arith.constant 0 : i32
    return %c0_i32, %c0_i32_0, %c0_i32_1 : i32, i32, i32
  }
  func.func @transform_3(%arg0: i32) -> (i32, i32, i32) {
    %c0_i32 = arith.constant 0 : i32
    %c0_i32_0 = arith.constant 0 : i32
    %c0_i32_1 = arith.constant 0 : i32
    %c0_i32_2 = arith.constant 0 : i32
    return %c0_i32, %c0_i32_0, %c0_i32_1 : i32, i32, i32
  }
  func.func @transform_4(%arg0: i32) -> (i32, i32) {
    %c0_i32 = arith.constant 0 : i32
    %c0_i32_0 = arith.constant 0 : i32
    %c0_i32_1 = arith.constant 0 : i32
    return %c0_i32, %c0_i32_0 : i32, i32
  }
  func.func @transform_5(%arg0: i32) -> (i32, i32) {
    %c0_i32 = arith.constant 0 : i32
    %c0_i32_0 = arith.constant 0 : i32
    %c0_i32_1 = arith.constant 0 : i32
    return %c0_i32, %c0_i32_0 : i32, i32
  }
  func.func @transform_6(%arg0: i32) -> (i32, i32) {
    %c0_i32 = arith.constant 0 : i32
    %c0_i32_0 = arith.constant 0 : i32
    %c0_i32_1 = arith.constant 0 : i32
    return %c0_i32, %c0_i32_0 : i32, i32
  }
  func.func @transform_7(%arg0: i32) -> (i32, i32, i32) {
    %c0_i32 = arith.constant 0 : i32
    %c0_i32_0 = arith.constant 0 : i32
    %c0_i32_1 = arith.constant 0 : i32
    %c0_i32_2 = arith.constant 0 : i32
    return %c0_i32, %c0_i32_0, %c0_i32_1 : i32, i32, i32
  }
  func.func @transform_8(%arg0: i32) -> (i32, i32, i32) {
    %c0_i32 = arith.constant 0 : i32
    %c0_i32_0 = arith.constant 0 : i32
    %c0_i32_1 = arith.constant 0 : i32
    %c0_i32_2 = arith.constant 0 : i32
    return %c0_i32, %c0_i32_0, %c0_i32_1 : i32, i32, i32
  }
  func.func @transform_9(%arg0: i32) -> (i32, i32) {
    %c0_i32 = arith.constant 0 : i32
    %c0_i32_0 = arith.constant 0 : i32
    %c0_i32_1 = arith.constant 0 : i32
    return %c0_i32, %c0_i32_0 : i32, i32
  }
  func.func @transform_10(%arg0: i32) -> (i32, i32) {
    %c0_i32 = arith.constant 0 : i32
    %c0_i32_0 = arith.constant 0 : i32
    %c0_i32_1 = arith.constant 0 : i32
    return %c0_i32, %c0_i32_0 : i32, i32
  }
  func.func @transform_11(%arg0: i32) -> (i32, i32) {
    %c0_i32 = arith.constant 0 : i32
    %c0_i32_0 = arith.constant 0 : i32
    %c0_i32_1 = arith.constant 0 : i32
    return %c0_i32, %c0_i32_0 : i32, i32
  }
  func.func @transform_12(%arg0: i32) -> (i32, i32) {
    %c0_i32 = arith.constant 0 : i32
    %c0_i32_0 = arith.constant 0 : i32
    %c0_i32_1 = arith.constant 0 : i32
    return %c0_i32, %c0_i32_0 : i32, i32
  }
  func.func @transform_13(%arg0: i32) -> (i32, i32) {
    %c0_i32 = arith.constant 0 : i32
    %c0_i32_0 = arith.constant 0 : i32
    %c0_i32_1 = arith.constant 0 : i32
    return %c0_i32, %c0_i32_0 : i32, i32
  }
  func.func @transform_14(%arg0: i32) -> (i32, i32) {
    %c0_i32 = arith.constant 0 : i32
    %c0_i32_0 = arith.constant 0 : i32
    %c0_i32_1 = arith.constant 0 : i32
    return %c0_i32, %c0_i32_0 : i32, i32
  }
  func.func @transform_15(%arg0: i32) -> (i32, i32) {
    %c0_i32 = arith.constant 0 : i32
    %c0_i32_0 = arith.constant 0 : i32
    %c0_i32_1 = arith.constant 0 : i32
    return %c0_i32, %c0_i32_0 : i32, i32
  }
  func.func @transform_16(%arg0: i32) -> (i32, i32) {
    %c0_i32 = arith.constant 0 : i32
    %c0_i32_0 = arith.constant 0 : i32
    %c0_i32_1 = arith.constant 0 : i32
    return %c0_i32, %c0_i32_0 : i32, i32
  }
  func.func @transform_17(%arg0: i32) -> (i32, i32) {
    %c0_i32 = arith.constant 0 : i32
    %c0_i32_0 = arith.constant 0 : i32
    %c0_i32_1 = arith.constant 0 : i32
    return %c0_i32, %c0_i32_0 : i32, i32
  }
  func.func @transform_18(%arg0: i32) -> (i32, i32) {
    %c0_i32 = arith.constant 0 : i32
    %c0_i32_0 = arith.constant 0 : i32
    %c0_i32_1 = arith.constant 0 : i32
    return %c0_i32, %c0_i32_0 : i32, i32
  }
  func.func @transform_19(%arg0: i32) -> (i32, i32) {
    %c0_i32 = arith.constant 0 : i32
    %c0_i32_0 = arith.constant 0 : i32
    %c0_i32_1 = arith.constant 0 : i32
    return %c0_i32, %c0_i32_0 : i32, i32
  }
  func.func @transform_20(%arg0: i32) -> (i32, i32) {
    %c0_i32 = arith.constant 0 : i32
    %c0_i32_0 = arith.constant 0 : i32
    %c0_i32_1 = arith.constant 0 : i32
    return %c0_i32, %c0_i32_0 : i32, i32
  }
  func.func @transform_21(%arg0: i32) -> (i32, i32, i32) {
    %c0_i32 = arith.constant 0 : i32
    %c0_i32_0 = arith.constant 0 : i32
    %c0_i32_1 = arith.constant 0 : i32
    return %arg0, %c0_i32, %c0_i32_0 : i32, i32, i32
  }
  func.func @transform_22(%arg0: i32) -> (i32, i32, i32) {
    %c0_i32 = arith.constant 0 : i32
    %c0_i32_0 = arith.constant 0 : i32
    %c0_i32_1 = arith.constant 0 : i32
    return %arg0, %c0_i32, %c0_i32_0 : i32, i32, i32
  }
  func.func @transform_23(%arg0: i32) -> (i32, i32, i32) {
    %c0_i32 = arith.constant 0 : i32
    %c0_i32_0 = arith.constant 0 : i32
    %c0_i32_1 = arith.constant 0 : i32
    return %arg0, %c0_i32, %c0_i32_0 : i32, i32, i32
  }
}

</mosaic_0001>

<llo_original>
// kernel: tpu_custom_call.1
$region0: #{tpu_custom_call.1}
  #allocation0 [shape = 'u32[]', space=smem, size = 0x4, offset = 0x4, fixed_abs, tag = 'smem constant byte address 0x4 - core index']
  #allocation1 [shape = 'u32[144,128]{1,0:T(1,128)}', space=vmem, size = 0x12000, scoped, tag = 'internal scratch']
  %s0 = inlined_call_operand.vmem [shape: f32[2,4,8,128], index: 0, kind: input, shape index: {}]
  %s1 = inlined_call_operand.vmem [shape: f32[2,32,128], index: 1, kind: input, shape index: {}]
  %s2 = inlined_call_operand.vmem [shape: f32[4,1,1], index: 2, kind: input, shape index: {}]
  %s3 = inlined_call_operand.vmem [shape: f32[1,8,1], index: 3, kind: input, shape index: {}]
  %s4 = inlined_call_operand.vmem [shape: f32[8,4], index: 4, kind: input, shape index: {}]
  %s5 = inlined_call_operand.vmem [shape: f32[128,128], index: 5, kind: input, shape index: {}]
  %s6 = inlined_call_operand.vmem [shape: f32[128,128], index: 6, kind: input, shape index: {}]
  %s7 = inlined_call_operand.vmem [shape: f32[4,1,1], index: 7, kind: input, shape index: {}]
  %s8 = inlined_call_operand.vmem [shape: f32[1,1,128], index: 8, kind: input, shape index: {}]
  %s9 = inlined_call_operand.vmem [shape: f32[128,4], index: 9, kind: input, shape index: {}]
  %s10 = inlined_call_operand.vmem [shape: f32[8,8], index: 10, kind: input, shape index: {}]
  %s11 = inlined_call_operand.vmem [shape: f32[8,8], index: 11, kind: input, shape index: {}]
  %s12 = inlined_call_operand.vmem [shape: f32[64,32], index: 12, kind: input, shape index: {}]
  %s13 = inlined_call_operand.vmem [shape: f32[64,32], index: 13, kind: input, shape index: {}]
  %s14 = inlined_call_operand.vmem [shape: f32[192,64], index: 14, kind: input, shape index: {}]
  %s15 = inlined_call_operand.vmem [shape: f32[64,8], index: 15, kind: input, shape index: {}]
  %s16 = inlined_call_operand.vmem [shape: f32[8,32], index: 16, kind: input, shape index: {}]
  %s17 = inlined_call_operand.vmem [shape: f32[64,1], index: 17, kind: input, shape index: {}]
  %s18 = inlined_call_operand.vmem [shape: f32[64,1], index: 18, kind: input, shape index: {}]
  %s19 = inlined_call_operand.vmem [shape: f32[64,128], index: 19, kind: input, shape index: {}]
  %s20 = inlined_call_operand.vmem [shape: f32[64,128], index: 20, kind: input, shape index: {}]
  %s21 = inlined_call_operand.hbm [shape: f32[2,64,128], index: 21, kind: output, shape index: {0}]
  %s22 = inlined_call_operand.hbm [shape: f32[2,8,8], index: 22, kind: output, shape index: {1}]
  %s23 = inlined_call_operand.hbm [shape: f32[2,128,128], index: 23, kind: output, shape index: {2}]
  %24 = xla_tuple %s21, %s22, %s23
  %s25 = sld [smem:[#allocation0]]
  $region133: #{tpu_custom_call.1} parent=0
    _
  %s27 = ssub.s32 1, %s25
  %s28 = scalar_select 0, %s27, %s25
  $region1: #{tpu_custom_call.1} parent=0
    #allocation2 [shape = 'u8[65536]{0}', space=vmem, size = 0x10000, scoped, tag = 'output window, operand 0']
    #allocation3 [shape = 's32[2]{0}', space=sflag, size = 0x8, scoped, tag = 'scoped memory for tpu_custom_call.1']
    #allocation4 [shape = 'u8[8192]{0}', space=vmem, size = 0x2000, scoped, tag = 'output window, operand 1']
    #allocation5 [shape = 's32[2]{0}', space=sflag, size = 0x8, scoped, tag = 'scoped memory for tpu_custom_call.1']
    #allocation6 [shape = 'u8[131072]{0}', space=vmem, size = 0x20000, scoped, tag = 'output window, operand 2']
    %29 = vsyncpa [#allocation3], 0
    %s30 = scalar_lea.sflag [#allocation3], 1
    %31 = vsyncpa %s30, 0
    %32 = vsyncpa [#allocation5], 0
    %s33 = scalar_lea.sflag [#allocation5], 1
    %34 = vsyncpa %s33, 0
    loop: start=0, step=1, limit=4
    $region2: #{tpu_custom_call.1} parent=1 // loop_pre_header
      _
    $region3: #{tpu_custom_call.1} parent=1 // loop_header
      %s36 = sphi 0, %s40
      %p37 = scmp.ge.s32.totalorder %s36, 4
      %s46 = sphi 0, %s48
      %s49 = sphi 0, %s46
      %s50 = sphi 0, %s49
      %s66 = sphi 0, %s50
      %s72 = sphi 0, %s74
      %s75 = sphi 0, %s72
      %s76 = sphi 0, %s75
      %s92 = sphi 0, %s76
      %s96 = sphi 0, %s96
      %s98 = sphi 0, %s96
      %s99 = sphi 0, %s98
      %s113 = sphi 0, %s99
      %s117 = sphi 0, %s117
      %s119 = sphi 0, %s117
      %s120 = sphi 0, %s119
      %s134 = sphi 0, %s120
      %s138 = sphi 0, %s138
      %s140 = sphi 0, %s138
      %s141 = sphi 0, %s140
      %s155 = sphi 0, %s141
      %s159 = sphi 0, %s159
      %s161 = sphi 0, %s159
      %s162 = sphi 0, %s161
      %s176 = sphi 0, %s162
      %s180 = sphi 0, %s180
      %s182 = sphi 0, %s180
      %s183 = sphi 0, %s182
      %s197 = sphi 0, %s183
      %s201 = sphi 0, %s201
      %s203 = sphi 0, %s201
      %s204 = sphi 0, %s203
      %s218 = sphi 0, %s204
      %s222 = sphi 0, %s222
      %s224 = sphi 0, %s222
      %s225 = sphi 0, %s224
      %s239 = sphi 0, %s225
      %s243 = sphi 0, %s243
      %s245 = sphi 0, %s243
      %s246 = sphi 0, %s245
      %s260 = sphi 0, %s246
      %s264 = sphi 0, %s264
      %s266 = sphi 0, %s264
      %s267 = sphi 0, %s266
      %s281 = sphi 0, %s267
      %s285 = sphi 0, %s285
      %s287 = sphi 0, %s285
      %s288 = sphi 0, %s287
      %s302 = sphi 0, %s288
      %s306 = sphi 0, %s306
      %s308 = sphi 0, %s306
      %s309 = sphi 0, %s308
      %s323 = sphi 0, %s309
      %s327 = sphi 0, %s327
      %s329 = sphi 0, %s327
      %s330 = sphi 0, %s329
      %s344 = sphi 0, %s330
      %s348 = sphi 0, %s348
      %s350 = sphi 0, %s348
      %s351 = sphi 0, %s350
      %s365 = sphi 0, %s351
      %s369 = sphi 0, %s369
      %s371 = sphi 0, %s369
      %s372 = sphi 0, %s371
      %s386 = sphi 0, %s372
      %s390 = sphi 0, %s390
      %s392 = sphi 0, %s390
      %s393 = sphi 0, %s392
      %s407 = sphi 0, %s393
      %s411 = sphi 0, %s411
      %s413 = sphi 0, %s411
      %s414 = sphi 0, %s413
      %s428 = sphi 0, %s414
      %s432 = sphi 0, %s432
      %s434 = sphi 0, %s432
      %s435 = sphi 0, %s434
      %s449 = sphi 0, %s435
      %s453 = sphi 0, %s453
      %s455 = sphi 0, %s453
      %s456 = sphi 0, %s455
      %s470 = sphi 0, %s456
      %s474 = sphi 0, %s474
      %s476 = sphi 0, %s474
      %s477 = sphi 0, %s476
      %s491 = sphi 0, %s477
      %s497 = sphi 0, %s499
      %s500 = sphi 0, %s497
      %s501 = sphi 0, %s500
      %s517 = sphi 0, %s501
      %s523 = sphi 0, %s525
      %s526 = sphi 0, %s523
      %s527 = sphi 0, %s526
      %s543 = sphi 0, %s527
      %s549 = sphi 0, %s551
      %s552 = sphi 0, %s549
      %s553 = sphi 0, %s552
      %s569 = sphi 0, %s553
    $region4: #{tpu_custom_call.1} parent=1 // loop_header_branch
      %39 = sbr.rel (%p37) target = $region8
    $region5: #{tpu_custom_call.1} parent=1 // loop_body
      %s41 = ssub.s32 %s36, 1
      %s42 = ssub.s32 %s36, 2
      %s43 = sadd.s32 %s36, 1
      %s44 = ssub.s32 %s36, %s43
      %p45 = scmp.eq.s32.totalorder %s44, 0
      %s47 = sadd.s32 %s46, 1
      %s48 = scalar_select %p45, %s46, %s47
      %p51 = pneg %p45
      %p52 = scmp.eq.s32.totalorder %s36, 1
      %p53 = por %p51, %p52
      %p54 = scmp.ne.s32.totalorder %s46, %s49
      %p55 = scmp.eq.s32.totalorder %s36, 0
      %p56 = por %p54, %p55
      %p57 = scmp.ne.s32.totalorder %s46, %s49
      %p58 = scmp.eq.s32.totalorder %s41, 1
      %p59 = por %p57, %p58
      %p60 = scmp.ne.s32.totalorder %s49, %s50
      %p61 = scmp.eq.s32.totalorder %s41, 0
      %p62 = por %p60, %p61
      %p63 = scmp.ne.s32.totalorder %s49, %s50
      %p64 = scmp.eq.s32.totalorder %s42, 1
      %p65 = por %p63, %p64
      %p67 = scmp.ne.s32.totalorder %s50, %s66
      %p68 = scmp.eq.s32.totalorder %s42, 0
      %p69 = por %p67, %p68
      %s70 = ssub.s32 %s36, %s43
      %p71 = scmp.eq.s32.totalorder %s70, 0
      %s73 = sadd.s32 %s72, 1
      %s74 = scalar_select %p71, %s72, %s73
      %p77 = pneg %p71
      %p78 = scmp.eq.s32.totalorder %s36, 1
      %p79 = por %p77, %p78
      %p80 = scmp.ne.s32.totalorder %s72, %s75
      %p81 = scmp.eq.s32.totalorder %s36, 0
      %p82 = por %p80, %p81
      %p83 = scmp.ne.s32.totalorder %s72, %s75
      %p84 = scmp.eq.s32.totalorder %s41, 1
      %p85 = por %p83, %p84
      %p86 = scmp.ne.s32.totalorder %s75, %s76
      %p87 = scmp.eq.s32.totalorder %s41, 0
      %p88 = por %p86, %p87
      %p89 = scmp.ne.s32.totalorder %s75, %s76
      %p90 = scmp.eq.s32.totalorder %s42, 1
      %p91 = por %p89, %p90
      %p93 = scmp.ne.s32.totalorder %s76, %s92
      %p94 = scmp.eq.s32.totalorder %s42, 0
      %p95 = por %p93, %p94
      %s97 = sadd.s32 %s96, 1
      %p100 = scmp.eq.s32.totalorder %s36, 1
      %p101 = scmp.ne.s32.totalorder %s96, %s98
      %p102 = scmp.eq.s32.totalorder %s36, 0
      %p103 = por %p101, %p102
      %p104 = scmp.ne.s32.totalorder %s96, %s98
      %p105 = scmp.eq.s32.totalorder %s41, 1
      %p106 = por %p104, %p105
      %p107 = scmp.ne.s32.totalorder %s98, %s99
      %p108 = scmp.eq.s32.totalorder %s41, 0
      %p109 = por %p107, %p108
      %p110 = scmp.ne.s32.totalorder %s98, %s99
      %p111 = scmp.eq.s32.totalorder %s42, 1
      %p112 = por %p110, %p111
      %p114 = scmp.ne.s32.totalorder %s99, %s113
      %p115 = scmp.eq.s32.totalorder %s42, 0
      %p116 = por %p114, %p115
      %s118 = sadd.s32 %s117, 1
      %p121 = scmp.eq.s32.totalorder %s36, 1
      %p122 = scmp.ne.s32.totalorder %s117, %s119
      %p123 = scmp.eq.s32.totalorder %s36, 0
      %p124 = por %p122, %p123
      %p125 = scmp.ne.s32.totalorder %s117, %s119
      %p126 = scmp.eq.s32.totalorder %s41, 1
      %p127 = por %p125, %p126
      %p128 = scmp.ne.s32.totalorder %s119, %s120
      %p129 = scmp.eq.s32.totalorder %s41, 0
      %p130 = por %p128, %p129
      %p131 = scmp.ne.s32.totalorder %s119, %s120
      %p132 = scmp.eq.s32.totalorder %s42, 1
      %p133 = por %p131, %p132
      %p135 = scmp.ne.s32.totalorder %s120, %s134
      %p136 = scmp.eq.s32.totalorder %s42, 0
      %p137 = por %p135, %p136
      %s139 = sadd.s32 %s138, 1
      %p142 = scmp.eq.s32.totalorder %s36, 1
      %p143 = scmp.ne.s32.totalorder %s138, %s140
      %p144 = scmp.eq.s32.totalorder %s36, 0
      %p145 = por %p143, %p144
      %p146 = scmp.ne.s32.totalorder %s138, %s140
      %p147 = scmp.eq.s32.totalorder %s41, 1
      %p148 = por %p146, %p147
      %p149 = scmp.ne.s32.totalorder %s140, %s141
      %p150 = scmp.eq.s32.totalorder %s41, 0
      %p151 = por %p149, %p150
      %p152 = scmp.ne.s32.totalorder %s140, %s141
      %p153 = scmp.eq.s32.totalorder %s42, 1
      %p154 = por %p152, %p153
      %p156 = scmp.ne.s32.totalorder %s141, %s155
      %p157 = scmp.eq.s32.totalorder %s42, 0
      %p158 = por %p156, %p157
      %s160 = sadd.s32 %s159, 1
      %p163 = scmp.eq.s32.totalorder %s36, 1
      %p164 = scmp.ne.s32.totalorder %s159, %s161
      %p165 = scmp.eq.s32.totalorder %s36, 0
      %p166 = por %p164, %p165
      %p167 = scmp.ne.s32.totalorder %s159, %s161
      %p168 = scmp.eq.s32.totalorder %s41, 1
      %p169 = por %p167, %p168
      %p170 = scmp.ne.s32.totalorder %s161, %s162
      %p171 = scmp.eq.s32.totalorder %s41, 0
      %p172 = por %p170, %p171
      %p173 = scmp.ne.s32.totalorder %s161, %s162
      %p174 = scmp.eq.s32.totalorder %s42, 1
      %p175 = por %p173, %p174
      %p177 = scmp.ne.s32.totalorder %s162, %s176
      %p178 = scmp.eq.s32.totalorder %s42, 0
      %p179 = por %p177, %p178
      %s181 = sadd.s32 %s180, 1
      %p184 = scmp.eq.s32.totalorder %s36, 1
      %p185 = scmp.ne.s32.totalorder %s180, %s182
      %p186 = scmp.eq.s32.totalorder %s36, 0
      %p187 = por %p185, %p186
      %p188 = scmp.ne.s32.totalorder %s180, %s182
      %p189 = scmp.eq.s32.totalorder %s41, 1
      %p190 = por %p188, %p189
      %p191 = scmp.ne.s32.totalorder %s182, %s183
      %p192 = scmp.eq.s32.totalorder %s41, 0
      %p193 = por %p191, %p192
      %p194 = scmp.ne.s32.totalorder %s182, %s183
      %p195 = scmp.eq.s32.totalorder %s42, 1
      %p196 = por %p194, %p195
      %p198 = scmp.ne.s32.totalorder %s183, %s197
      %p199 = scmp.eq.s32.totalorder %s42, 0
      %p200 = por %p198, %p199
      %s202 = sadd.s32 %s201, 1
      %p205 = scmp.eq.s32.totalorder %s36, 1
      %p206 = scmp.ne.s32.totalorder %s201, %s203
      %p207 = scmp.eq.s32.totalorder %s36, 0
      %p208 = por %p206, %p207
      %p209 = scmp.ne.s32.totalorder %s201, %s203
      %p210 = scmp.eq.s32.totalorder %s41, 1
      %p211 = por %p209, %p210
      %p212 = scmp.ne.s32.totalorder %s203, %s204
      %p213 = scmp.eq.s32.totalorder %s41, 0
      %p214 = por %p212, %p213
      %p215 = scmp.ne.s32.totalorder %s203, %s204
      %p216 = scmp.eq.s32.totalorder %s42, 1
      %p217 = por %p215, %p216
      %p219 = scmp.ne.s32.totalorder %s204, %s218
      %p220 = scmp.eq.s32.totalorder %s42, 0
      %p221 = por %p219, %p220
      %s223 = sadd.s32 %s222, 1
      %p226 = scmp.eq.s32.totalorder %s36, 1
      %p227 = scmp.ne.s32.totalorder %s222, %s224
      %p228 = scmp.eq.s32.totalorder %s36, 0
      %p229 = por %p227, %p228
      %p230 = scmp.ne.s32.totalorder %s222, %s224
      %p231 = scmp.eq.s32.totalorder %s41, 1
      %p232 = por %p230, %p231
      %p233 = scmp.ne.s32.totalorder %s224, %s225
      %p234 = scmp.eq.s32.totalorder %s41, 0
      %p235 = por %p233, %p234
      %p236 = scmp.ne.s32.totalorder %s224, %s225
      %p237 = scmp.eq.s32.totalorder %s42, 1
      %p238 = por %p236, %p237
      %p240 = scmp.ne.s32.totalorder %s225, %s239
      %p241 = scmp.eq.s32.totalorder %s42, 0
      %p242 = por %p240, %p241
      %s244 = sadd.s32 %s243, 1
      %p247 = scmp.eq.s32.totalorder %s36, 1
      %p248 = scmp.ne.s32.totalorder %s243, %s245
      %p249 = scmp.eq.s32.totalorder %s36, 0
      %p250 = por %p248, %p249
      %p251 = scmp.ne.s32.totalorder %s243, %s245
      %p252 = scmp.eq.s32.totalorder %s41, 1
      %p253 = por %p251, %p252
      %p254 = scmp.ne.s32.totalorder %s245, %s246
      %p255 = scmp.eq.s32.totalorder %s41, 0
      %p256 = por %p254, %p255
      %p257 = scmp.ne.s32.totalorder %s245, %s246
      %p258 = scmp.eq.s32.totalorder %s42, 1
      %p259 = por %p257, %p258
      %p261 = scmp.ne.s32.totalorder %s246, %s260
      %p262 = scmp.eq.s32.totalorder %s42, 0
      %p263 = por %p261, %p262
      %s265 = sadd.s32 %s264, 1
      %p268 = scmp.eq.s32.totalorder %s36, 1
      %p269 = scmp.ne.s32.totalorder %s264, %s266
      %p270 = scmp.eq.s32.totalorder %s36, 0
      %p271 = por %p269, %p270
      %p272 = scmp.ne.s32.totalorder %s264, %s266
      %p273 = scmp.eq.s32.totalorder %s41, 1
      %p274 = por %p272, %p273
      %p275 = scmp.ne.s32.totalorder %s266, %s267
      %p276 = scmp.eq.s32.totalorder %s41, 0
      %p277 = por %p275, %p276
      %p278 = scmp.ne.s32.totalorder %s266, %s267
      %p279 = scmp.eq.s32.totalorder %s42, 1
      %p280 = por %p278, %p279
      %p282 = scmp.ne.s32.totalorder %s267, %s281
      %p283 = scmp.eq.s32.totalorder %s42, 0
      %p284 = por %p282, %p283
      %s286 = sadd.s32 %s285, 1
      %p289 = scmp.eq.s32.totalorder %s36, 1
      %p290 = scmp.ne.s32.totalorder %s285, %s287
      %p291 = scmp.eq.s32.totalorder %s36, 0
      %p292 = por %p290, %p291
      %p293 = scmp.ne.s32.totalorder %s285, %s287
      %p294 = scmp.eq.s32.totalorder %s41, 1
      %p295 = por %p293, %p294
      %p296 = scmp.ne.s32.totalorder %s287, %s288
      %p297 = scmp.eq.s32.totalorder %s41, 0
      %p298 = por %p296, %p297
      %p299 = scmp.ne.s32.totalorder %s287, %s288
      %p300 = scmp.eq.s32.totalorder %s42, 1
      %p301 = por %p299, %p300
      %p303 = scmp.ne.s32.totalorder %s288, %s302
      %p304 = scmp.eq.s32.totalorder %s42, 0
      %p305 = por %p303, %p304
      %s307 = sadd.s32 %s306, 1
      %p310 = scmp.eq.s32.totalorder %s36, 1
      %p311 = scmp.ne.s32.totalorder %s306, %s308
      %p312 = scmp.eq.s32.totalorder %s36, 0
      %p313 = por %p311, %p312
      %p314 = scmp.ne.s32.totalorder %s306, %s308
      %p315 = scmp.eq.s32.totalorder %s41, 1
      %p316 = por %p314, %p315
      %p317 = scmp.ne.s32.totalorder %s308, %s309
      %p318 = scmp.eq.s32.totalorder %s41, 0
      %p319 = por %p317, %p318
      %p320 = scmp.ne.s32.totalorder %s308, %s309
      %p321 = scmp.eq.s32.totalorder %s42, 1
      %p322 = por %p320, %p321
      %p324 = scmp.ne.s32.totalorder %s309, %s323
      %p325 = scmp.eq.s32.totalorder %s42, 0
      %p326 = por %p324, %p325
      %s328 = sadd.s32 %s327, 1
      %p331 = scmp.eq.s32.totalorder %s36, 1
      %p332 = scmp.ne.s32.totalorder %s327, %s329
      %p333 = scmp.eq.s32.totalorder %s36, 0
      %p334 = por %p332, %p333
      %p335 = scmp.ne.s32.totalorder %s327, %s329
      %p336 = scmp.eq.s32.totalorder %s41, 1
      %p337 = por %p335, %p336
      %p338 = scmp.ne.s32.totalorder %s329, %s330
      %p339 = scmp.eq.s32.totalorder %s41, 0
      %p340 = por %p338, %p339
      %p341 = scmp.ne.s32.totalorder %s329, %s330
      %p342 = scmp.eq.s32.totalorder %s42, 1
      %p343 = por %p341, %p342
      %p345 = scmp.ne.s32.totalorder %s330, %s344
      %p346 = scmp.eq.s32.totalorder %s42, 0
      %p347 = por %p345, %p346
      %s349 = sadd.s32 %s348, 1
      %p352 = scmp.eq.s32.totalorder %s36, 1
      %p353 = scmp.ne.s32.totalorder %s348, %s350
      %p354 = scmp.eq.s32.totalorder %s36, 0
      %p355 = por %p353, %p354
      %p356 = scmp.ne.s32.totalorder %s348, %s350
      %p357 = scmp.eq.s32.totalorder %s41, 1
      %p358 = por %p356, %p357
      %p359 = scmp.ne.s32.totalorder %s350, %s351
      %p360 = scmp.eq.s32.totalorder %s41, 0
      %p361 = por %p359, %p360
      %p362 = scmp.ne.s32.totalorder %s350, %s351
      %p363 = scmp.eq.s32.totalorder %s42, 1
      %p364 = por %p362, %p363
      %p366 = scmp.ne.s32.totalorder %s351, %s365
      %p367 = scmp.eq.s32.totalorder %s42, 0
      %p368 = por %p366, %p367
      %s370 = sadd.s32 %s369, 1
      %p373 = scmp.eq.s32.totalorder %s36, 1
      %p374 = scmp.ne.s32.totalorder %s369, %s371
      %p375 = scmp.eq.s32.totalorder %s36, 0
      %p376 = por %p374, %p375
      %p377 = scmp.ne.s32.totalorder %s369, %s371
      %p378 = scmp.eq.s32.totalorder %s41, 1
      %p379 = por %p377, %p378
      %p380 = scmp.ne.s32.totalorder %s371, %s372
      %p381 = scmp.eq.s32.totalorder %s41, 0
      %p382 = por %p380, %p381
      %p383 = scmp.ne.s32.totalorder %s371, %s372
      %p384 = scmp.eq.s32.totalorder %s42, 1
      %p385 = por %p383, %p384
      %p387 = scmp.ne.s32.totalorder %s372, %s386
      %p388 = scmp.eq.s32.totalorder %s42, 0
      %p389 = por %p387, %p388
      %s391 = sadd.s32 %s390, 1
      %p394 = scmp.eq.s32.totalorder %s36, 1
      %p395 = scmp.ne.s32.totalorder %s390, %s392
      %p396 = scmp.eq.s32.totalorder %s36, 0
      %p397 = por %p395, %p396
      %p398 = scmp.ne.s32.totalorder %s390, %s392
      %p399 = scmp.eq.s32.totalorder %s41, 1
      %p400 = por %p398, %p399
      %p401 = scmp.ne.s32.totalorder %s392, %s393
      %p402 = scmp.eq.s32.totalorder %s41, 0
      %p403 = por %p401, %p402
      %p404 = scmp.ne.s32.totalorder %s392, %s393
      %p405 = scmp.eq.s32.totalorder %s42, 1
      %p406 = por %p404, %p405
      %p408 = scmp.ne.s32.totalorder %s393, %s407
      %p409 = scmp.eq.s32.totalorder %s42, 0
      %p410 = por %p408, %p409
      %s412 = sadd.s32 %s411, 1
      %p415 = scmp.eq.s32.totalorder %s36, 1
      %p416 = scmp.ne.s32.totalorder %s411, %s413
      %p417 = scmp.eq.s32.totalorder %s36, 0
      %p418 = por %p416, %p417
      %p419 = scmp.ne.s32.totalorder %s411, %s413
      %p420 = scmp.eq.s32.totalorder %s41, 1
      %p421 = por %p419, %p420
      %p422 = scmp.ne.s32.totalorder %s413, %s414
      %p423 = scmp.eq.s32.totalorder %s41, 0
      %p424 = por %p422, %p423
      %p425 = scmp.ne.s32.totalorder %s413, %s414
      %p426 = scmp.eq.s32.totalorder %s42, 1
      %p427 = por %p425, %p426
      %p429 = scmp.ne.s32.totalorder %s414, %s428
      %p430 = scmp.eq.s32.totalorder %s42, 0
      %p431 = por %p429, %p430
      %s433 = sadd.s32 %s432, 1
      %p436 = scmp.eq.s32.totalorder %s36, 1
      %p437 = scmp.ne.s32.totalorder %s432, %s434
      %p438 = scmp.eq.s32.totalorder %s36, 0
      %p439 = por %p437, %p438
      %p440 = scmp.ne.s32.totalorder %s432, %s434
      %p441 = scmp.eq.s32.totalorder %s41, 1
      %p442 = por %p440, %p441
      %p443 = scmp.ne.s32.totalorder %s434, %s435
      %p444 = scmp.eq.s32.totalorder %s41, 0
      %p445 = por %p443, %p444
      %p446 = scmp.ne.s32.totalorder %s434, %s435
      %p447 = scmp.eq.s32.totalorder %s42, 1
      %p448 = por %p446, %p447
      %p450 = scmp.ne.s32.totalorder %s435, %s449
      %p451 = scmp.eq.s32.totalorder %s42, 0
      %p452 = por %p450, %p451
      %s454 = sadd.s32 %s453, 1
      %p457 = scmp.eq.s32.totalorder %s36, 1
      %p458 = scmp.ne.s32.totalorder %s453, %s455
      %p459 = scmp.eq.s32.totalorder %s36, 0
      %p460 = por %p458, %p459
      %p461 = scmp.ne.s32.totalorder %s453, %s455
      %p462 = scmp.eq.s32.totalorder %s41, 1
      %p463 = por %p461, %p462
      %p464 = scmp.ne.s32.totalorder %s455, %s456
      %p465 = scmp.eq.s32.totalorder %s41, 0
      %p466 = por %p464, %p465
      %p467 = scmp.ne.s32.totalorder %s455, %s456
      %p468 = scmp.eq.s32.totalorder %s42, 1
      %p469 = por %p467, %p468
      %p471 = scmp.ne.s32.totalorder %s456, %s470
      %p472 = scmp.eq.s32.totalorder %s42, 0
      %p473 = por %p471, %p472
      %s475 = sadd.s32 %s474, 1
      %p478 = scmp.eq.s32.totalorder %s36, 1
      %p479 = scmp.ne.s32.totalorder %s474, %s476
      %p480 = scmp.eq.s32.totalorder %s36, 0
      %p481 = por %p479, %p480
      %p482 = scmp.ne.s32.totalorder %s474, %s476
      %p483 = scmp.eq.s32.totalorder %s41, 1
      %p484 = por %p482, %p483
      %p485 = scmp.ne.s32.totalorder %s476, %s477
      %p486 = scmp.eq.s32.totalorder %s41, 0
      %p487 = por %p485, %p486
      %p488 = scmp.ne.s32.totalorder %s476, %s477
      %p489 = scmp.eq.s32.totalorder %s42, 1
      %p490 = por %p488, %p489
      %p492 = scmp.ne.s32.totalorder %s477, %s491
      %p493 = scmp.eq.s32.totalorder %s42, 0
      %p494 = por %p492, %p493
      %s495 = ssub.s32 %s36, %s43
      %p496 = scmp.eq.s32.totalorder %s495, 0
      %s498 = sadd.s32 %s497, 1
      %s499 = scalar_select %p496, %s497, %s498
      %p502 = pneg %p496
      %p503 = scmp.eq.s32.totalorder %s36, 1
      %p504 = por %p502, %p503
      %p505 = scmp.ne.s32.totalorder %s497, %s500
      %p506 = scmp.eq.s32.totalorder %s36, 0
      %p507 = por %p505, %p506
      %p508 = scmp.ne.s32.totalorder %s497, %s500
      %p509 = scmp.eq.s32.totalorder %s41, 1
      %p510 = por %p508, %p509
      %p511 = scmp.ne.s32.totalorder %s500, %s501
      %p512 = scmp.eq.s32.totalorder %s41, 0
      %p513 = por %p511, %p512
      %p514 = scmp.ne.s32.totalorder %s500, %s501
      %p515 = scmp.eq.s32.totalorder %s42, 1
      %p516 = por %p514, %p515
      %p518 = scmp.ne.s32.totalorder %s501, %s517
      %p519 = scmp.eq.s32.totalorder %s42, 0
      %p520 = por %p518, %p519
      %s521 = ssub.s32 %s36, %s43
      %p522 = scmp.eq.s32.totalorder %s521, 0
      %s524 = sadd.s32 %s523, 1
      %s525 = scalar_select %p522, %s523, %s524
      %p528 = pneg %p522
      %p529 = scmp.eq.s32.totalorder %s36, 1
      %p530 = por %p528, %p529
      %p531 = scmp.ne.s32.totalorder %s523, %s526
      %p532 = scmp.eq.s32.totalorder %s36, 0
      %p533 = por %p531, %p532
      %p534 = scmp.ne.s32.totalorder %s523, %s526
      %p535 = scmp.eq.s32.totalorder %s41, 1
      %p536 = por %p534, %p535
      %p537 = scmp.ne.s32.totalorder %s526, %s527
      %p538 = scmp.eq.s32.totalorder %s41, 0
      %p539 = por %p537, %p538
      %p540 = scmp.ne.s32.totalorder %s526, %s527
      %p541 = scmp.eq.s32.totalorder %s42, 1
      %p542 = por %p540, %p541
      %p544 = scmp.ne.s32.totalorder %s527, %s543
      %p545 = scmp.eq.s32.totalorder %s42, 0
      %p546 = por %p544, %p545
      %s547 = ssub.s32 %s36, %s43
      %p548 = scmp.eq.s32.totalorder %s547, 0
      %s550 = sadd.s32 %s549, 1
      %s551 = scalar_select %p548, %s549, %s550
      %p554 = pneg %p548
      %p555 = scmp.eq.s32.totalorder %s36, 1
      %p556 = por %p554, %p555
      %p557 = scmp.ne.s32.totalorder %s549, %s552
      %p558 = scmp.eq.s32.totalorder %s36, 0
      %p559 = por %p557, %p558
      %p560 = scmp.ne.s32.totalorder %s549, %s552
      %p561 = scmp.eq.s32.totalorder %s41, 1
      %p562 = por %p560, %p561
      %p563 = scmp.ne.s32.totalorder %s552, %s553
      %p564 = scmp.eq.s32.totalorder %s41, 0
      %p565 = por %p563, %p564
      %p566 = scmp.ne.s32.totalorder %s552, %s553
      %p567 = scmp.eq.s32.totalorder %s42, 1
      %p568 = por %p566, %p567
      %p570 = scmp.ne.s32.totalorder %s553, %s569
      %p571 = scmp.eq.s32.totalorder %s42, 0
      %p572 = por %p570, %p571
      %p573 = scmp.le.s32.totalorder 1, %s36
      %p574 = scmp.lt.s32.totalorder %s36, 3
      %p575 = pnand %p573, %p574
      %p576 = pneg %p575
      // Predicated region
      $region9: #{tpu_custom_call.1} parent=5 // pred_check
        _
      $region10: #{tpu_custom_call.1} parent=5 // pred_check_branch
        %578 = sbr.rel (%p575) target = $region12
      $region11: #{tpu_custom_call.1} parent=5 // pred_region
        %s579 = ssub.s32 %s36, 1
        // Predicated region
        $region13: #{tpu_custom_call.1} parent=11 // pred_check
          %p580 = pneg %p109
        $region14: #{tpu_custom_call.1} parent=11 // pred_check_branch
          %582 = sbr.rel (%p580) target = $region16
        $region15: #{tpu_custom_call.1} parent=11 // pred_region
          _
        $region16: #{tpu_custom_call.1} parent=11 // pred_fallthru
          _
        // Predicated region
        $region17: #{tpu_custom_call.1} parent=11 // pred_check
          %p583 = pneg %p130
        $region18: #{tpu_custom_call.1} parent=11 // pred_check_branch
          %585 = sbr.rel (%p583) target = $region20
        $region19: #{tpu_custom_call.1} parent=11 // pred_region
          _
        $region20: #{tpu_custom_call.1} parent=11 // pred_fallthru
          _
        // Predicated region
        $region21: #{tpu_custom_call.1} parent=11 // pred_check
          %p586 = pneg %p151
        $region22: #{tpu_custom_call.1} parent=11 // pred_check_branch
          %588 = sbr.rel (%p586) target = $region24
        $region23: #{tpu_custom_call.1} parent=11 // pred_region
          _
        $region24: #{tpu_custom_call.1} parent=11 // pred_fallthru
          _
        // Predicated region
        $region25: #{tpu_custom_call.1} parent=11 // pred_check
          %p589 = pneg %p172
        $region26: #{tpu_custom_call.1} parent=11 // pred_check_branch
          %591 = sbr.rel (%p589) target = $region28
        $region27: #{tpu_custom_call.1} parent=11 // pred_region
          _
        $region28: #{tpu_custom_call.1} parent=11 // pred_fallthru
          _
        // Predicated region
        $region29: #{tpu_custom_call.1} parent=11 // pred_check
          %p592 = pneg %p193
        $region30: #{tpu_custom_call.1} parent=11 // pred_check_branch
          %594 = sbr.rel (%p592) target = $region32
        $region31: #{tpu_custom_call.1} parent=11 // pred_region
          _
        $region32: #{tpu_custom_call.1} parent=11 // pred_fallthru
          _
        // Predicated region
        $region33: #{tpu_custom_call.1} parent=11 // pred_check
          %p595 = pneg %p214
        $region34: #{tpu_custom_call.1} parent=11 // pred_check_branch
          %597 = sbr.rel (%p595) target = $region36
        $region35: #{tpu_custom_call.1} parent=11 // pred_region
          _
        $region36: #{tpu_custom_call.1} parent=11 // pred_fallthru
          _
        // Predicated region
        $region37: #{tpu_custom_call.1} parent=11 // pred_check
          %p598 = pneg %p235
        $region38: #{tpu_custom_call.1} parent=11 // pred_check_branch
          %600 = sbr.rel (%p598) target = $region40
        $region39: #{tpu_custom_call.1} parent=11 // pred_region
          _
        $region40: #{tpu_custom_call.1} parent=11 // pred_fallthru
          _
        // Predicated region
        $region41: #{tpu_custom_call.1} parent=11 // pred_check
          %p601 = pneg %p256
        $region42: #{tpu_custom_call.1} parent=11 // pred_check_branch
          %603 = sbr.rel (%p601) target = $region44
        $region43: #{tpu_custom_call.1} parent=11 // pred_region
          _
        $region44: #{tpu_custom_call.1} parent=11 // pred_fallthru
          _
        // Predicated region
        $region45: #{tpu_custom_call.1} parent=11 // pred_check
          %p604 = pneg %p277
        $region46: #{tpu_custom_call.1} parent=11 // pred_check_branch
          %606 = sbr.rel (%p604) target = $region48
        $region47: #{tpu_custom_call.1} parent=11 // pred_region
          _
        $region48: #{tpu_custom_call.1} parent=11 // pred_fallthru
          _
        // Predicated region
        $region49: #{tpu_custom_call.1} parent=11 // pred_check
          %p607 = pneg %p298
        $region50: #{tpu_custom_call.1} parent=11 // pred_check_branch
          %609 = sbr.rel (%p607) target = $region52
        $region51: #{tpu_custom_call.1} parent=11 // pred_region
          _
        $region52: #{tpu_custom_call.1} parent=11 // pred_fallthru
          _
        // Predicated region
        $region53: #{tpu_custom_call.1} parent=11 // pred_check
          %p610 = pneg %p319
        $region54: #{tpu_custom_call.1} parent=11 // pred_check_branch
          %612 = sbr.rel (%p610) target = $region56
        $region55: #{tpu_custom_call.1} parent=11 // pred_region
          _
        $region56: #{tpu_custom_call.1} parent=11 // pred_fallthru
          _
        // Predicated region
        $region57: #{tpu_custom_call.1} parent=11 // pred_check
          %p613 = pneg %p340
        $region58: #{tpu_custom_call.1} parent=11 // pred_check_branch
          %615 = sbr.rel (%p613) target = $region60
        $region59: #{tpu_custom_call.1} parent=11 // pred_region
          _
        $region60: #{tpu_custom_call.1} parent=11 // pred_fallthru
          _
        // Predicated region
        $region61: #{tpu_custom_call.1} parent=11 // pred_check
          %p616 = pneg %p361
        $region62: #{tpu_custom_call.1} parent=11 // pred_check_branch
          %618 = sbr.rel (%p616) target = $region64
        $region63: #{tpu_custom_call.1} parent=11 // pred_region
          _
        $region64: #{tpu_custom_call.1} parent=11 // pred_fallthru
          _
        // Predicated region
        $region65: #{tpu_custom_call.1} parent=11 // pred_check
          %p619 = pneg %p382
        $region66: #{tpu_custom_call.1} parent=11 // pred_check_branch
          %621 = sbr.rel (%p619) target = $region68
        $region67: #{tpu_custom_call.1} parent=11 // pred_region
          _
        $region68: #{tpu_custom_call.1} parent=11 // pred_fallthru
          _
        // Predicated region
        $region69: #{tpu_custom_call.1} parent=11 // pred_check
          %p622 = pneg %p403
        $region70: #{tpu_custom_call.1} parent=11 // pred_check_branch
          %624 = sbr.rel (%p622) target = $region72
        $region71: #{tpu_custom_call.1} parent=11 // pred_region
          _
        $region72: #{tpu_custom_call.1} parent=11 // pred_fallthru
          _
        // Predicated region
        $region73: #{tpu_custom_call.1} parent=11 // pred_check
          %p625 = pneg %p424
        $region74: #{tpu_custom_call.1} parent=11 // pred_check_branch
          %627 = sbr.rel (%p625) target = $region76
        $region75: #{tpu_custom_call.1} parent=11 // pred_region
          _
        $region76: #{tpu_custom_call.1} parent=11 // pred_fallthru
          _
        // Predicated region
        $region77: #{tpu_custom_call.1} parent=11 // pred_check
          %p628 = pneg %p445
        $region78: #{tpu_custom_call.1} parent=11 // pred_check_branch
          %630 = sbr.rel (%p628) target = $region80
        $region79: #{tpu_custom_call.1} parent=11 // pred_region
          _
        $region80: #{tpu_custom_call.1} parent=11 // pred_fallthru
          _
        // Predicated region
        $region81: #{tpu_custom_call.1} parent=11 // pred_check
          %p631 = pneg %p466
        $region82: #{tpu_custom_call.1} parent=11 // pred_check_branch
          %633 = sbr.rel (%p631) target = $region84
        $region83: #{tpu_custom_call.1} parent=11 // pred_region
          _
        $region84: #{tpu_custom_call.1} parent=11 // pred_fallthru
          _
        // Predicated region
        $region85: #{tpu_custom_call.1} parent=11 // pred_check
          %p634 = pneg %p487
        $region86: #{tpu_custom_call.1} parent=11 // pred_check_branch
          %636 = sbr.rel (%p634) target = $region88
        $region87: #{tpu_custom_call.1} parent=11 // pred_region
          _
        $region88: #{tpu_custom_call.1} parent=11 // pred_fallthru
          _
      $region12: #{tpu_custom_call.1} parent=5 // pred_fallthru
        _
      %p637 = scmp.lt.s32.totalorder %s36, 2
      // Predicated region
      $region89: #{tpu_custom_call.1} parent=5 // pred_check
        %p638 = pneg %p637
      $region90: #{tpu_custom_call.1} parent=5 // pred_check_branch
        %640 = sbr.rel (%p638) target = $region92
      $region91: #{tpu_custom_call.1} parent=5 // pred_region
        // Predicated region
        $region93: #{tpu_custom_call.1} parent=91 // pred_check
          %p641 = pneg %p56
        $region94: #{tpu_custom_call.1} parent=91 // pred_check_branch
          %643 = sbr.rel (%p641) target = $region96
        $region95: #{tpu_custom_call.1} parent=91 // pred_region
          %p644 = scmp.lt.s32.totalorder %s36, 1
          %s645 = scalar_select %p644, %s36, 1
          %s646 = smul.addr %s645, 4
          %s647 = smul.addr %s646, 8
          %s648 = scalar_lea.vmem %s0, %s647
        $region96: #{tpu_custom_call.1} parent=91 // pred_fallthru
          _
        // Predicated region
        $region97: #{tpu_custom_call.1} parent=91 // pred_check
          %p649 = pneg %p82
        $region98: #{tpu_custom_call.1} parent=91 // pred_check_branch
          %651 = sbr.rel (%p649) target = $region100
        $region99: #{tpu_custom_call.1} parent=91 // pred_region
          %p652 = scmp.lt.s32.totalorder %s36, 1
          %s653 = scalar_select %p652, %s36, 1
          %s654 = smul.addr %s653, 4
          %s655 = smul.addr %s654, 8
          %s656 = scalar_lea.vmem %s1, %s655
        $region100: #{tpu_custom_call.1} parent=91 // pred_fallthru
          _
      $region92: #{tpu_custom_call.1} parent=5 // pred_fallthru
        _
      %p657 = scmp.le.s32.totalorder 1, %s36
      %p658 = scmp.lt.s32.totalorder %s36, 3
      %p659 = pnand %p657, %p658
      %p660 = pneg %p659
      // Predicated region
      $region101: #{tpu_custom_call.1} parent=5 // pred_check
        _
      $region102: #{tpu_custom_call.1} parent=5 // pred_check_branch
        %662 = sbr.rel (%p659) target = $region104
      $region103: #{tpu_custom_call.1} parent=5 // pred_region
        %s663 = ssub.s32 %s36, 1
        %p664 = scmp.lt.s32.totalorder %s41, 1
        %s665 = scalar_select %p664, %s41, 1
        %s666 = smul.addr %s665, 4
        %s667 = smul.addr %s666, 8
        %s668 = scalar_lea.vmem %s0, %s667
        %p669 = pneg %p62
        %p670 = pneg %p59
        %p671 = scmp.lt.s32.totalorder %s41, 1
        %s672 = scalar_select %p671, %s41, 1
        %s673 = smul.addr %s672, 4
        %s674 = smul.addr %s673, 8
        %s675 = scalar_lea.vmem %s1, %s674
        %p676 = pneg %p88
        %p677 = pneg %p85
        %p678 = pneg %p109
        %p679 = pneg %p106
        %p680 = pneg %p130
        %p681 = pneg %p127
        %p682 = pneg %p151
        %p683 = pneg %p148
        %p684 = pneg %p172
        %p685 = pneg %p169
        %p686 = pneg %p193
        %p687 = pneg %p190
        %p688 = pneg %p214
        %p689 = pneg %p211
        %p690 = pneg %p235
        %p691 = pneg %p232
        %p692 = pneg %p256
        %p693 = pneg %p253
        %p694 = pneg %p277
        %p695 = pneg %p274
        %p696 = pneg %p298
        %p697 = pneg %p295
        %p698 = pneg %p319
        %p699 = pneg %p316
        %p700 = pneg %p340
        %p701 = pneg %p337
        %p702 = pneg %p361
        %p703 = pneg %p358
        %p704 = pneg %p382
        %p705 = pneg %p379
        %p706 = pneg %p403
        %p707 = pneg %p400
        %p708 = pneg %p424
        %p709 = pneg %p421
        %p710 = pneg %p445
        %p711 = pneg %p442
        %p712 = pneg %p466
        %p713 = pneg %p463
        %p714 = pneg %p487
        %p715 = pneg %p484
        %p716 = pneg %p513
        %p717 = pneg %p510
        %s718 = sand.u32 %s500, 1
        %s719 = scalar_lea.sflag [#allocation3], %s718
        %s720 = sand.u32 %s500, 1
        %s721 = smul.addr %s720, 64
        %s722 = scalar_lea.vmem [#allocation2], %s721
        %p723 = pneg %p539
        %p724 = pneg %p536
        %s725 = sand.u32 %s41, 1
        %s726 = scalar_lea.sflag [#allocation5], %s725
        %s727 = sand.u32 %s526, 1
        %s728 = smul.addr %s727, 8
        %s729 = scalar_lea.vmem [#allocation4], %s728
        %p730 = pneg %p565
        %p731 = pneg %p562
        %s732 = sand.u32 %s41, 1
        %s733 = scalar_lea.sflag [#allocation5], %s732
        %s734 = sand.u32 %s552, 1
        %s735 = smul.addr %s734, 128
        %s736 = scalar_lea.vmem [#allocation6], %s735
        %p737 = scmp.lt.s32.totalorder %s41, 1
        %s738 = scalar_select %p737, %s41, 1
        %s739 = smul.addr %s738, 4
        %s740 = smul.addr %s739, 8
        %s741 = scalar_lea.vmem %s0, %s740
        %p742 = scmp.lt.s32.totalorder %s41, 1
        %s743 = scalar_select %p742, %s41, 1
        %s744 = smul.addr %s743, 4
        %s745 = smul.addr %s744, 8
        %s746 = scalar_lea.vmem %s1, %s745
        %v747 = vld [vmem:[%s741] sm:$0xff]
        %v748 = vld [vmem:[%s741 + $0x8] sm:$0xff]
        %v749 = vld [vmem:[%s741 + $0x10] sm:$0xff]
        %v750 = vld [vmem:[%s741 + $0x18] sm:$0xff]
        %v751 = vld [vmem:[%s746] sm:$0xff]
        %v752 = vld [vmem:[%s746 + $0x8] sm:$0xff]
        %v753 = vld [vmem:[%s746 + $0x10] sm:$0xff]
        %v754 = vld [vmem:[%s746 + $0x18] sm:$0xff]
        %v755 = vld [vmem:[%s2] sm:$0x1]
        %v756 = vld [vmem:[%s2 + $0x1] sm:$0x1]
        %v757 = vld [vmem:[%s2 + $0x2] sm:$0x1]
        %v758 = vld [vmem:[%s2 + $0x3] sm:$0x1]
        %v763 = vlaneseq
        %v764 = vshrl.u32 %v763, 7
        %v765 = vsub.s32 0, %v764
        %v766 = vrot.slane %v755, %v765
        %v767 = vlaneseq
        %v768 = vshrl.u32 %v767, 7
        %v769 = vsub.s32 0, %v768
        %v770 = vrot.slane %v756, %v769
        %v771 = vlaneseq
        %v772 = vshrl.u32 %v771, 7
        %v773 = vsub.s32 0, %v772
        %v774 = vrot.slane %v757, %v773
        %v775 = vlaneseq
        %v776 = vshrl.u32 %v775, 7
        %v777 = vsub.s32 0, %v776
        %v778 = vrot.slane %v758, %v777
        %779 = vset.pattern.permute.xlu0 0
        %780 = vperm.xlu0 %779, %v766
        %v781 = vpop.permute.xlu0 %780
        %783 = vset.pattern.permute.xlu0 0
        %784 = vperm.xlu0 %783, %v770
        %v785 = vpop.permute.xlu0 %784
        %787 = vset.pattern.permute.xlu0 0
        %788 = vperm.xlu0 %787, %v774
        %v789 = vpop.permute.xlu0 %788
        %791 = vset.pattern.permute.xlu0 0
        %792 = vperm.xlu0 %791, %v778
        %v793 = vpop.permute.xlu0 %792
        %v795 = vmul.f32 %v781, %v747
        %v796 = vmul.f32 %v785, %v748
        %v797 = vmul.f32 %v789, %v749
        %v798 = vmul.f32 %v793, %v750
        %v799 = vadd.f32 %v795, %v796
        %v800 = vadd.f32 %v799, %v797
        %v801 = vadd.f32 %v800, %v798
        %v802 = vld [vmem:[%s3] sm:$0xff]
        %804 = vset.pattern.permute.xlu0 0
        %805 = vperm.xlu0 %804, %v802
        %v806 = vpop.permute.xlu0 %805
        %v808 = vmul.f32 %v806, %v747
        %v809 = vmul.f32 %v806, %v748
        %v810 = vmul.f32 %v806, %v749
        %v811 = vmul.f32 %v806, %v750
        %v812 = vrot.slane %v808, 4
        %v813 = vadd.f32 %v808, %v812
        %v814 = vrot.slane %v813, 2
        %v815 = vadd.f32 %v813, %v814
        %v816 = vrot.slane %v815, 1
        %v817 = vadd.f32 %v815, %v816
        %v818 = vrot.slane %v809, 4
        %v819 = vadd.f32 %v809, %v818
        %v820 = vrot.slane %v819, 2
        %v821 = vadd.f32 %v819, %v820
        %v822 = vrot.slane %v821, 1
        %v823 = vadd.f32 %v821, %v822
        %v824 = vrot.slane %v810, 4
        %v825 = vadd.f32 %v810, %v824
        %v826 = vrot.slane %v825, 2
        %v827 = vadd.f32 %v825, %v826
        %v828 = vrot.slane %v827, 1
        %v829 = vadd.f32 %v827, %v828
        %v830 = vrot.slane %v811, 4
        %v831 = vadd.f32 %v811, %v830
        %v832 = vrot.slane %v831, 2
        %v833 = vadd.f32 %v831, %v832
        %v834 = vrot.slane %v833, 1
        %v835 = vadd.f32 %v833, %v834
        %836 = vxpose.xlu0.b32.start [1/16] %v801, 128
        %837 = vxpose.xlu0.b32.cont [2/16] 0.0, 128
        %838 = vxpose.xlu0.b32.cont [3/16] 0.0, 128
        %839 = vxpose.xlu0.b32.cont [4/16] 0.0, 128
        %840 = vxpose.xlu0.b32.cont [5/16] 0.0, 128
        %841 = vxpose.xlu0.b32.cont [6/16] 0.0, 128
        %842 = vxpose.xlu0.b32.cont [7/16] 0.0, 128
        %843 = vxpose.xlu0.b32.cont [8/16] 0.0, 128
        %844 = vxpose.xlu0.b32.cont [9/16] 0.0, 128
        %845 = vxpose.xlu0.b32.cont [10/16] 0.0, 128
        %846 = vxpose.xlu0.b32.cont [11/16] 0.0, 128
        %847 = vxpose.xlu0.b32.cont [12/16] 0.0, 128
        %848 = vxpose.xlu0.b32.cont [13/16] 0.0, 128
        %849 = vxpose.xlu0.b32.cont [14/16] 0.0, 128
        %850 = vxpose.xlu0.b32.cont [15/16] 0.0, 128
        %851 = vxpose.xlu0.b32.end [16/16] 0.0, 128
        %v852 = vpop.trf.xlu0
        %v853 = vpop.trf.xlu0
        %v854 = vpop.trf.xlu0
        %v855 = vpop.trf.xlu0
        %v856 = vpop.trf.xlu0
        %v857 = vpop.trf.xlu0
        %v858 = vpop.trf.xlu0
        %v859 = vpop.trf.xlu0
        %v860 = vpop.trf.xlu0
        %v861 = vpop.trf.xlu0
        %v862 = vpop.trf.xlu0
        %v863 = vpop.trf.xlu0
        %v864 = vpop.trf.xlu0
        %v865 = vpop.trf.xlu0
        %v866 = vpop.trf.xlu0
        %v867 = vpop.trf.xlu0
        %v868 = vld [vmem:[%s4] sm:$0xff]
        %vm869 = vcmask 64512
        %v871 = vsel %vm869, %v852, 0
        %v874 = vsel %vm869, %v853, 0
        %v877 = vsel %vm869, %v854, 0
        %v880 = vsel %vm869, %v855, 0
        %v883 = vsel %vm869, %v856, 0
        %v886 = vsel %vm869, %v857, 0
        %v889 = vsel %vm869, %v858, 0
        %v892 = vsel %vm869, %v859, 0
        %v895 = vsel %vm869, %v860, 0
        %v898 = vsel %vm869, %v861, 0
        %v901 = vsel %vm869, %v862, 0
        %v904 = vsel %vm869, %v863, 0
        %v907 = vsel %vm869, %v864, 0
        %v910 = vsel %vm869, %v865, 0
        %v913 = vsel %vm869, %v866, 0
        %v916 = vsel %vm869, %v867, 0
        %918 = vmatprep.subr.mxu0 0.0
        %919 = vmatpush1.msra.mxu0 %v868
        %920 = vmatprep.subr.mxu0 0.0
        %921 = vmatpush1.msra.mxu0 0.0
        %922 = vmatprep.subr.mxu0 0.0
        %923 = vmatpush1.msra.mxu0 0.0
        %924 = vmatprep.subr.mxu0 0.0
        %925 = vmatpush1.msra.mxu0 0.0
        %926 = vmatprep.subr.mxu0 0.0
        %927 = vmatpush1.msra.mxu0 0.0
        %928 = vmatprep.subr.mxu0 0.0
        %929 = vmatpush1.msra.mxu0 0.0
        %930 = vmatprep.subr.mxu0 0.0
        %931 = vmatpush1.msra.mxu0 0.0
        %932 = vmatprep.subr.mxu0 0.0
        %933 = vmatpush1.msra.mxu0 0.0
        %934 = vmatprep.subr.mxu0 0.0
        %935 = vmatpush1.msra.mxu0 0.0
        %936 = vmatprep.subr.mxu0 0.0
        %937 = vmatpush1.msra.mxu0 0.0
        %938 = vmatprep.subr.mxu0 0.0
        %939 = vmatpush1.msra.mxu0 0.0
        %940 = vmatprep.subr.mxu0 0.0
        %941 = vmatpush1.msra.mxu0 0.0
        %942 = vmatprep.subr.mxu0 0.0
        %943 = vmatpush1.msra.mxu0 0.0
        %944 = vmatprep.subr.mxu0 0.0
        %945 = vmatpush1.msra.mxu0 0.0
        %946 = vmatprep.subr.mxu0 0.0
        %947 = vmatpush1.msra.mxu0 0.0
        %948 = vmatprep.subr.mxu0 0.0
        %949 = vmatpush1.msra.mxu0 0.0
        %950 = vmatprep.subr.mxu0 0.0
        %951 = vmatpush1.msra.mxu0 0.0
        %952 = vmatprep.subr.mxu0 0.0
        %953 = vmatpush1.msra.mxu0 0.0
        %954 = vmatprep.subr.mxu0 0.0
        %955 = vmatpush1.msra.mxu0 0.0
        %956 = vmatprep.subr.mxu0 0.0
        %957 = vmatpush1.msra.mxu0 0.0
        %958 = vmatprep.subr.mxu0 0.0
        %959 = vmatpush1.msra.mxu0 0.0
        %960 = vmatprep.subr.mxu0 0.0
        %961 = vmatpush1.msra.mxu0 0.0
        %962 = vmatprep.subr.mxu0 0.0
        %963 = vmatpush1.msra.mxu0 0.0
        %964 = vmatprep.subr.mxu0 0.0
        %965 = vmatpush1.msra.mxu0 0.0
        %966 = vmatprep.subr.mxu0 0.0
        %967 = vmatpush1.msra.mxu0 0.0
        %968 = vmatprep.subr.mxu0 0.0
        %969 = vmatpush1.msra.mxu0 0.0
        %970 = vmatprep.subr.mxu0 0.0
        %971 = vmatpush1.msra.mxu0 0.0
        %972 = vmatprep.subr.mxu0 0.0
        %973 = vmatpush1.msra.mxu0 0.0
        %974 = vmatprep.subr.mxu0 0.0
        %975 = vmatpush1.msra.mxu0 0.0
        %976 = vmatprep.subr.mxu0 0.0
        %977 = vmatpush1.msra.mxu0 0.0
        %978 = vmatprep.subr.mxu0 0.0
        %979 = vmatpush1.msra.mxu0 0.0
        %980 = vmatprep.subr.mxu0 0.0
        %981 = vmatpush1.msra.mxu0 0.0
        %982 = vmatprep.mubr.f32.mxu0 0.0
        %983 = vmatmul.mubr.f32.gmra.mrb[0].mxu0 %v871
        %v984 = vpop.f32.mrb[0].mxu0
        %v985 = vadd.f32 0.0, %v984
        %v986 = vpop.f32.mrb[0].mxu0
        %987 = vmatprep.mubr.f32.mxu0 0.0
        %988 = vmatmul.mubr.f32.gmra.mrb[0].mxu0 %v874
        %v989 = vpop.f32.mrb[0].mxu0
        %v990 = vadd.f32 0.0, %v989
        %v991 = vpop.f32.mrb[0].mxu0
        %992 = vmatprep.mubr.f32.mxu0 0.0
        %993 = vmatmul.mubr.f32.gmra.mrb[0].mxu0 %v877
        %v994 = vpop.f32.mrb[0].mxu0
        %v995 = vadd.f32 0.0, %v994
        %v996 = vpop.f32.mrb[0].mxu0
        %997 = vmatprep.mubr.f32.mxu0 0.0
        %998 = vmatmul.mubr.f32.gmra.mrb[0].mxu0 %v880
        %v999 = vpop.f32.mrb[0].mxu0
        %v1000 = vadd.f32 0.0, %v999
        %v1001 = vpop.f32.mrb[0].mxu0
        %1002 = vmatprep.mubr.f32.mxu0 0.0
        %1003 = vmatmul.mubr.f32.gmra.mrb[0].mxu0 %v883
        %v1004 = vpop.f32.mrb[0].mxu0
        %v1005 = vadd.f32 0.0, %v1004
        %v1006 = vpop.f32.mrb[0].mxu0
        %1007 = vmatprep.mubr.f32.mxu0 0.0
        %1008 = vmatmul.mubr.f32.gmra.mrb[0].mxu0 %v886
        %v1009 = vpop.f32.mrb[0].mxu0
        %v1010 = vadd.f32 0.0, %v1009
        %v1011 = vpop.f32.mrb[0].mxu0
        %1012 = vmatprep.mubr.f32.mxu0 0.0
        %1013 = vmatmul.mubr.f32.gmra.mrb[0].mxu0 %v889
        %v1014 = vpop.f32.mrb[0].mxu0
        %v1015 = vadd.f32 0.0, %v1014
        %v1016 = vpop.f32.mrb[0].mxu0
        %1017 = vmatprep.mubr.f32.mxu0 0.0
        %1018 = vmatmul.mubr.f32.gmra.mrb[0].mxu0 %v892
        %v1019 = vpop.f32.mrb[0].mxu0
        %v1020 = vadd.f32 0.0, %v1019
        %v1021 = vpop.f32.mrb[0].mxu0
        %1022 = vmatprep.mubr.f32.mxu0 0.0
        %1023 = vmatmul.mubr.f32.gmra.mrb[0].mxu0 %v895
        %v1024 = vpop.f32.mrb[0].mxu0
        %v1025 = vadd.f32 0.0, %v1024
        %v1026 = vpop.f32.mrb[0].mxu0
        %1027 = vmatprep.mubr.f32.mxu0 0.0
        %1028 = vmatmul.mubr.f32.gmra.mrb[0].mxu0 %v898
        %v1029 = vpop.f32.mrb[0].mxu0
        %v1030 = vadd.f32 0.0, %v1029
        %v1031 = vpop.f32.mrb[0].mxu0
        %1032 = vmatprep.mubr.f32.mxu0 0.0
        %1033 = vmatmul.mubr.f32.gmra.mrb[0].mxu0 %v901
        %v1034 = vpop.f32.mrb[0].mxu0
        %v1035 = vadd.f32 0.0, %v1034
        %v1036 = vpop.f32.mrb[0].mxu0
        %1037 = vmatprep.mubr.f32.mxu0 0.0
        %1038 = vmatmul.mubr.f32.gmra.mrb[0].mxu0 %v904
        %v1039 = vpop.f32.mrb[0].mxu0
        %v1040 = vadd.f32 0.0, %v1039
        %v1041 = vpop.f32.mrb[0].mxu0
        %1042 = vmatprep.mubr.f32.mxu0 0.0
        %1043 = vmatmul.mubr.f32.gmra.mrb[0].mxu0 %v907
        %v1044 = vpop.f32.mrb[0].mxu0
        %v1045 = vadd.f32 0.0, %v1044
        %v1046 = vpop.f32.mrb[0].mxu0
        %1047 = vmatprep.mubr.f32.mxu0 0.0
        %1048 = vmatmul.mubr.f32.gmra.mrb[0].mxu0 %v910
        %v1049 = vpop.f32.mrb[0].mxu0
        %v1050 = vadd.f32 0.0, %v1049
        %v1051 = vpop.f32.mrb[0].mxu0
        %1052 = vmatprep.mubr.f32.mxu0 0.0
        %1053 = vmatmul.mubr.f32.gmra.mrb[0].mxu0 %v913
        %v1054 = vpop.f32.mrb[0].mxu0
        %v1055 = vadd.f32 0.0, %v1054
        %v1056 = vpop.f32.mrb[0].mxu0
        %1057 = vmatprep.mubr.f32.mxu0 0.0
        %1058 = vmatmul.mubr.f32.gmra.mrb[0].mxu0 %v916
        %v1059 = vpop.f32.mrb[0].mxu0
        %v1060 = vadd.f32 0.0, %v1059
        %v1061 = vpop.f32.mrb[0].mxu0
        %1062 = vdwg.mxu0
        %v1063 = vld [vmem:[%s5] sm:$0xff]
        %v1064 = vld [vmem:[%s5 + $0x8] sm:$0xff]
        %v1065 = vld [vmem:[%s5 + $0x10] sm:$0xff]
        %v1066 = vld [vmem:[%s5 + $0x18] sm:$0xff]
        %v1067 = vld [vmem:[%s5 + $0x20] sm:$0xff]
        %v1068 = vld [vmem:[%s5 + $0x28] sm:$0xff]
        %v1069 = vld [vmem:[%s5 + $0x30] sm:$0xff]
        %v1070 = vld [vmem:[%s5 + $0x38] sm:$0xff]
        %v1071 = vld [vmem:[%s5 + $0x40] sm:$0xff]
        %v1072 = vld [vmem:[%s5 + $0x48] sm:$0xff]
        %v1073 = vld [vmem:[%s5 + $0x50] sm:$0xff]
        %v1074 = vld [vmem:[%s5 + $0x58] sm:$0xff]
        %v1075 = vld [vmem:[%s5 + $0x60] sm:$0xff]
        %v1076 = vld [vmem:[%s5 + $0x68] sm:$0xff]
        %v1077 = vld [vmem:[%s5 + $0x70] sm:$0xff]
        %v1078 = vld [vmem:[%s5 + $0x78] sm:$0xff]
        %vm1083 = vcmask 1041409
        %v1084 = vsel %vm1083, %v823, %v817
        %vm1085 = vcmask 1042434
        %v1086 = vsel %vm1085, %v829, %v1084
        %vm1087 = vcmask 1043459
        %v1088 = vsel %vm1087, %v835, %v1086
        %vm1089 = vcmask 31744
        %v1091 = vsel %vm1089, %v985, 0
        %v1094 = vsel %vm1089, %v990, 0
        %v1097 = vsel %vm1089, %v995, 0
        %v1100 = vsel %vm1089, %v1000, 0
        %v1103 = vsel %vm1089, %v1005, 0
        %v1106 = vsel %vm1089, %v1010, 0
        %v1109 = vsel %vm1089, %v1015, 0
        %v1112 = vsel %vm1089, %v1020, 0
        %v1115 = vsel %vm1089, %v1025, 0
        %v1118 = vsel %vm1089, %v1030, 0
        %v1121 = vsel %vm1089, %v1035, 0
        %v1124 = vsel %vm1089, %v1040, 0
        %v1127 = vsel %vm1089, %v1045, 0
        %v1130 = vsel %vm1089, %v1050, 0
        %v1133 = vsel %vm1089, %v1055, 0
        %v1136 = vsel %vm1089, %v1060, 0
        %vm1138 = vcmask 1043456
        %v1139 = vsel %vm1138, %v1088, 0
        %1141 = vmatprep.subr.mxu0 0.0
        %1142 = vmatpush1.msra.mxu0 %v1139
        %1143 = vmatprep.subr.mxu0 0.0
        %1144 = vmatpush1.msra.mxu0 0.0
        %1145 = vmatprep.subr.mxu0 0.0
        %1146 = vmatpush1.msra.mxu0 0.0
        %1147 = vmatprep.subr.mxu0 0.0
        %1148 = vmatpush1.msra.mxu0 0.0
        %1149 = vmatprep.subr.mxu0 0.0
        %1150 = vmatpush1.msra.mxu0 0.0
        %1151 = vmatprep.subr.mxu0 0.0
        %1152 = vmatpush1.msra.mxu0 0.0
        %1153 = vmatprep.subr.mxu0 0.0
        %1154 = vmatpush1.msra.mxu0 0.0
        %1155 = vmatprep.subr.mxu0 0.0
        %1156 = vmatpush1.msra.mxu0 0.0
        %1157 = vmatprep.subr.mxu0 0.0
        %1158 = vmatpush1.msra.mxu0 0.0
        %1159 = vmatprep.subr.mxu0 0.0
        %1160 = vmatpush1.msra.mxu0 0.0
        %1161 = vmatprep.subr.mxu0 0.0
        %1162 = vmatpush1.msra.mxu0 0.0
        %1163 = vmatprep.subr.mxu0 0.0
        %1164 = vmatpush1.msra.mxu0 0.0
        %1165 = vmatprep.subr.mxu0 0.0
        %1166 = vmatpush1.msra.mxu0 0.0
        %1167 = vmatprep.subr.mxu0 0.0
        %1168 = vmatpush1.msra.mxu0 0.0
        %1169 = vmatprep.subr.mxu0 0.0
        %1170 = vmatpush1.msra.mxu0 0.0
        %1171 = vmatprep.subr.mxu0 0.0
        %1172 = vmatpush1.msra.mxu0 0.0
        %1173 = vmatprep.subr.mxu0 0.0
        %1174 = vmatpush1.msra.mxu0 0.0
        %1175 = vmatprep.subr.mxu0 0.0
        %1176 = vmatpush1.msra.mxu0 0.0
        %1177 = vmatprep.subr.mxu0 0.0
        %1178 = vmatpush1.msra.mxu0 0.0
        %1179 = vmatprep.subr.mxu0 0.0
        %1180 = vmatpush1.msra.mxu0 0.0
        %1181 = vmatprep.subr.mxu0 0.0
        %1182 = vmatpush1.msra.mxu0 0.0
        %1183 = vmatprep.subr.mxu0 0.0
        %1184 = vmatpush1.msra.mxu0 0.0
        %1185 = vmatprep.subr.mxu0 0.0
        %1186 = vmatpush1.msra.mxu0 0.0
        %1187 = vmatprep.subr.mxu0 0.0
        %1188 = vmatpush1.msra.mxu0 0.0
        %1189 = vmatprep.subr.mxu0 0.0
        %1190 = vmatpush1.msra.mxu0 0.0
        %1191 = vmatprep.subr.mxu0 0.0
        %1192 = vmatpush1.msra.mxu0 0.0
        %1193 = vmatprep.subr.mxu0 0.0
        %1194 = vmatpush1.msra.mxu0 0.0
        %1195 = vmatprep.subr.mxu0 0.0
        %1196 = vmatpush1.msra.mxu0 0.0
        %1197 = vmatprep.subr.mxu0 0.0
        %1198 = vmatpush1.msra.mxu0 0.0
        %1199 = vmatprep.subr.mxu0 0.0
        %1200 = vmatpush1.msra.mxu0 0.0
        %1201 = vmatprep.subr.mxu0 0.0
        %1202 = vmatpush1.msra.mxu0 0.0
        %1203 = vmatprep.subr.mxu0 0.0
        %1204 = vmatpush1.msra.mxu0 0.0
        %1205 = vmatprep.mubr.f32.mxu0 0.0
        %1206 = vmatmul.mubr.f32.gmra.mrb[0].mxu0 %v1091
        %v1207 = vpop.f32.mrb[0].mxu0
        %v1208 = vadd.f32 %v1063, %v1207
        %v1209 = vpop.f32.mrb[0].mxu0
        %1210 = vmatprep.mubr.f32.mxu0 0.0
        %1211 = vmatmul.mubr.f32.gmra.mrb[0].mxu0 %v1094
        %v1212 = vpop.f32.mrb[0].mxu0
        %v1213 = vadd.f32 %v1064, %v1212
        %v1214 = vpop.f32.mrb[0].mxu0
        %1215 = vmatprep.mubr.f32.mxu0 0.0
        %1216 = vmatmul.mubr.f32.gmra.mrb[0].mxu0 %v1097
        %v1217 = vpop.f32.mrb[0].mxu0
        %v1218 = vadd.f32 %v1065, %v1217
        %v1219 = vpop.f32.mrb[0].mxu0
        %1220 = vmatprep.mubr.f32.mxu0 0.0
        %1221 = vmatmul.mubr.f32.gmra.mrb[0].mxu0 %v1100
        %v1222 = vpop.f32.mrb[0].mxu0
        %v1223 = vadd.f32 %v1066, %v1222
        %v1224 = vpop.f32.mrb[0].mxu0
        %1225 = vmatprep.mubr.f32.mxu0 0.0
        %1226 = vmatmul.mubr.f32.gmra.mrb[0].mxu0 %v1103
        %v1227 = vpop.f32.mrb[0].mxu0
        %v1228 = vadd.f32 %v1067, %v1227
        %v1229 = vpop.f32.mrb[0].mxu0
        %1230 = vmatprep.mubr.f32.mxu0 0.0
        %1231 = vmatmul.mubr.f32.gmra.mrb[0].mxu0 %v1106
        %v1232 = vpop.f32.mrb[0].mxu0
        %v1233 = vadd.f32 %v1068, %v1232
        %v1234 = vpop.f32.mrb[0].mxu0
        %1235 = vmatprep.mubr.f32.mxu0 0.0
        %1236 = vmatmul.mubr.f32.gmra.mrb[0].mxu0 %v1109
        %v1237 = vpop.f32.mrb[0].mxu0
        %v1238 = vadd.f32 %v1069, %v1237
        %v1239 = vpop.f32.mrb[0].mxu0
        %1240 = vmatprep.mubr.f32.mxu0 0.0
        %1241 = vmatmul.mubr.f32.gmra.mrb[0].mxu0 %v1112
        %v1242 = vpop.f32.mrb[0].mxu0
        %v1243 = vadd.f32 %v1070, %v1242
        %v1244 = vpop.f32.mrb[0].mxu0
        %1245 = vmatprep.mubr.f32.mxu0 0.0
        %1246 = vmatmul.mubr.f32.gmra.mrb[0].mxu0 %v1115
        %v1247 = vpop.f32.mrb[0].mxu0
        %v1248 = vadd.f32 %v1071, %v1247
        %v1249 = vpop.f32.mrb[0].mxu0
        %1250 = vmatprep.mubr.f32.mxu0 0.0
        %1251 = vmatmul.mubr.f32.gmra.mrb[0].mxu0 %v1118
        %v1252 = vpop.f32.mrb[0].mxu0
        %v1253 = vadd.f32 %v1072, %v1252
        %v1254 = vpop.f32.mrb[0].mxu0
        %1255 = vmatprep.mubr.f32.mxu0 0.0
        %1256 = vmatmul.mubr.f32.gmra.mrb[0].mxu0 %v1121
        %v1257 = vpop.f32.mrb[0].mxu0
        %v1258 = vadd.f32 %v1073, %v1257
        %v1259 = vpop.f32.mrb[0].mxu0
        %1260 = vmatprep.mubr.f32.mxu0 0.0
        %1261 = vmatmul.mubr.f32.gmra.mrb[0].mxu0 %v1124
        %v1262 = vpop.f32.mrb[0].mxu0
        %v1263 = vadd.f32 %v1074, %v1262
        %v1264 = vpop.f32.mrb[0].mxu0
        %1265 = vmatprep.mubr.f32.mxu0 0.0
        %1266 = vmatmul.mubr.f32.gmra.mrb[0].mxu0 %v1127
        %v1267 = vpop.f32.mrb[0].mxu0
        %v1268 = vadd.f32 %v1075, %v1267
        %v1269 = vpop.f32.mrb[0].mxu0
        %1270 = vmatprep.mubr.f32.mxu0 0.0
        %1271 = vmatmul.mubr.f32.gmra.mrb[0].mxu0 %v1130
        %v1272 = vpop.f32.mrb[0].mxu0
        %v1273 = vadd.f32 %v1076, %v1272
        %v1274 = vpop.f32.mrb[0].mxu0
        %1275 = vmatprep.mubr.f32.mxu0 0.0
        %1276 = vmatmul.mubr.f32.gmra.mrb[0].mxu0 %v1133
        %v1277 = vpop.f32.mrb[0].mxu0
        %v1278 = vadd.f32 %v1077, %v1277
        %v1279 = vpop.f32.mrb[0].mxu0
        %1280 = vmatprep.mubr.f32.mxu0 0.0
        %1281 = vmatmul.mubr.f32.gmra.mrb[0].mxu0 %v1136
        %v1282 = vpop.f32.mrb[0].mxu0
        %v1283 = vadd.f32 %v1078, %v1282
        %v1284 = vpop.f32.mrb[0].mxu0
        %1285 = vdwg.mxu0
        %v1286 = vsub.f32 0.0, %v1208
        %v1287 = vsub.f32 0.0, %v1213
        %v1288 = vsub.f32 0.0, %v1218
        %v1289 = vsub.f32 0.0, %v1223
        %v1290 = vsub.f32 0.0, %v1228
        %v1291 = vsub.f32 0.0, %v1233
        %v1292 = vsub.f32 0.0, %v1238
        %v1293 = vsub.f32 0.0, %v1243
        %v1294 = vsub.f32 0.0, %v1248
        %v1295 = vsub.f32 0.0, %v1253
        %v1296 = vsub.f32 0.0, %v1258
        %v1297 = vsub.f32 0.0, %v1263
        %v1298 = vsub.f32 0.0, %v1268
        %v1299 = vsub.f32 0.0, %v1273
        %v1300 = vsub.f32 0.0, %v1278
        %v1301 = vsub.f32 0.0, %v1283
        %v1302 = vmul.f32 %v1286, 1.442695
        %v1303 = vpow.pop %v1302
        %v1304 = vmul.f32 %v1287, 1.442695
        %v1305 = vpow.pop %v1304
        %v1306 = vmul.f32 %v1288, 1.442695
        %v1307 = vpow.pop %v1306
        %v1308 = vmul.f32 %v1289, 1.442695
        %v1309 = vpow.pop %v1308
        %v1310 = vmul.f32 %v1290, 1.442695
        %v1311 = vpow.pop %v1310
        %v1312 = vmul.f32 %v1291, 1.442695
        %v1313 = vpow.pop %v1312
        %v1314 = vmul.f32 %v1292, 1.442695
        %v1315 = vpow.pop %v1314
        %v1316 = vmul.f32 %v1293, 1.442695
        %v1317 = vpow.pop %v1316
        %v1318 = vmul.f32 %v1294, 1.442695
        %v1319 = vpow.pop %v1318
        %v1320 = vmul.f32 %v1295, 1.442695
        %v1321 = vpow.pop %v1320
        %v1322 = vmul.f32 %v1296, 1.442695
        %v1323 = vpow.pop %v1322
        %v1324 = vmul.f32 %v1297, 1.442695
        %v1325 = vpow.pop %v1324
        %v1326 = vmul.f32 %v1298, 1.442695
        %v1327 = vpow.pop %v1326
        %v1328 = vmul.f32 %v1299, 1.442695
        %v1329 = vpow.pop %v1328
        %v1330 = vmul.f32 %v1300, 1.442695
        %v1331 = vpow.pop %v1330
        %v1332 = vmul.f32 %v1301, 1.442695
        %v1333 = vpow.pop %v1332
        %v1334 = vadd.f32 %v1303, 1.0
        %v1335 = vadd.f32 %v1305, 1.0
        %v1336 = vadd.f32 %v1307, 1.0
        %v1337 = vadd.f32 %v1309, 1.0
        %v1338 = vadd.f32 %v1311, 1.0
        %v1339 = vadd.f32 %v1313, 1.0
        %v1340 = vadd.f32 %v1315, 1.0
        %v1341 = vadd.f32 %v1317, 1.0
        %v1342 = vadd.f32 %v1319, 1.0
        %v1343 = vadd.f32 %v1321, 1.0
        %v1344 = vadd.f32 %v1323, 1.0
        %v1345 = vadd.f32 %v1325, 1.0
        %v1346 = vadd.f32 %v1327, 1.0
        %v1347 = vadd.f32 %v1329, 1.0
        %v1348 = vadd.f32 %v1331, 1.0
        %v1349 = vadd.f32 %v1333, 1.0
        %v1350 = vrcp.pop %v1334
        %v1351 = vmul.f32 1.0, %v1350
        %v1352 = vrcp.pop %v1335
        %v1353 = vmul.f32 1.0, %v1352
        %v1354 = vrcp.pop %v1336
        %v1355 = vmul.f32 1.0, %v1354
        %v1356 = vrcp.pop %v1337
        %v1357 = vmul.f32 1.0, %v1356
        %v1358 = vrcp.pop %v1338
        %v1359 = vmul.f32 1.0, %v1358
        %v1360 = vrcp.pop %v1339
        %v1361 = vmul.f32 1.0, %v1360
        %v1362 = vrcp.pop %v1340
        %v1363 = vmul.f32 1.0, %v1362
        %v1364 = vrcp.pop %v1341
        %v1365 = vmul.f32 1.0, %v1364
        %v1366 = vrcp.pop %v1342
        %v1367 = vmul.f32 1.0, %v1366
        %v1368 = vrcp.pop %v1343
        %v1369 = vmul.f32 1.0, %v1368
        %v1370 = vrcp.pop %v1344
        %v1371 = vmul.f32 1.0, %v1370
        %v1372 = vrcp.pop %v1345
        %v1373 = vmul.f32 1.0, %v1372
        %v1374 = vrcp.pop %v1346
        %v1375 = vmul.f32 1.0, %v1374
        %v1376 = vrcp.pop %v1347
        %v1377 = vmul.f32 1.0, %v1376
        %v1378 = vrcp.pop %v1348
        %v1379 = vmul.f32 1.0, %v1378
        %v1380 = vrcp.pop %v1349
        %v1381 = vmul.f32 1.0, %v1380
        %v1382 = vld [vmem:[%s6] sm:$0xff]
        %v1383 = vld [vmem:[%s6 + $0x8] sm:$0xff]
        %v1384 = vld [vmem:[%s6 + $0x10] sm:$0xff]
        %v1385 = vld [vmem:[%s6 + $0x18] sm:$0xff]
        %v1386 = vld [vmem:[%s6 + $0x20] sm:$0xff]
        %v1387 = vld [vmem:[%s6 + $0x28] sm:$0xff]
        %v1388 = vld [vmem:[%s6 + $0x30] sm:$0xff]
        %v1389 = vld [vmem:[%s6 + $0x38] sm:$0xff]
        %v1390 = vld [vmem:[%s6 + $0x40] sm:$0xff]
        %v1391 = vld [vmem:[%s6 + $0x48] sm:$0xff]
        %v1392 = vld [vmem:[%s6 + $0x50] sm:$0xff]
        %v1393 = vld [vmem:[%s6 + $0x58] sm:$0xff]
        %v1394 = vld [vmem:[%s6 + $0x60] sm:$0xff]
        %v1395 = vld [vmem:[%s6 + $0x68] sm:$0xff]
        %v1396 = vld [vmem:[%s6 + $0x70] sm:$0xff]
        %v1397 = vld [vmem:[%s6 + $0x78] sm:$0xff]
        %1398 = vmatprep.subr.mxu0 0.0
        %1399 = vmatpush1.msra.mxu0 %v1351
        %1400 = vmatprep.subr.mxu0 0.0
        %1401 = vmatpush1.msra.mxu0 %v1353
        %1402 = vmatprep.subr.mxu0 0.0
        %1403 = vmatpush1.msra.mxu0 %v1355
        %1404 = vmatprep.subr.mxu0 0.0
        %1405 = vmatpush1.msra.mxu0 %v1357
        %1406 = vmatprep.subr.mxu0 0.0
        %1407 = vmatpush1.msra.mxu0 %v1359
        %1408 = vmatprep.subr.mxu0 0.0
        %1409 = vmatpush1.msra.mxu0 %v1361
        %1410 = vmatprep.subr.mxu0 0.0
        %1411 = vmatpush1.msra.mxu0 %v1363
        %1412 = vmatprep.subr.mxu0 0.0
        %1413 = vmatpush1.msra.mxu0 %v1365
        %1414 = vmatprep.subr.mxu0 0.0
        %1415 = vmatpush1.msra.mxu0 %v1367
        %1416 = vmatprep.subr.mxu0 0.0
        %1417 = vmatpush1.msra.mxu0 %v1369
        %1418 = vmatprep.subr.mxu0 0.0
        %1419 = vmatpush1.msra.mxu0 %v1371
        %1420 = vmatprep.subr.mxu0 0.0
        %1421 = vmatpush1.msra.mxu0 %v1373
        %1422 = vmatprep.subr.mxu0 0.0
        %1423 = vmatpush1.msra.mxu0 %v1375
        %1424 = vmatprep.subr.mxu0 0.0
        %1425 = vmatpush1.msra.mxu0 %v1377
        %1426 = vmatprep.subr.mxu0 0.0
        %1427 = vmatpush1.msra.mxu0 %v1379
        %1428 = vmatprep.subr.mxu0 0.0
        %1429 = vmatpush1.msra.mxu0 %v1381
        %1430 = vmatprep.subr.mxu0 0.0
        %1431 = vmatpush1.msra.mxu0 0.0
        %1432 = vmatprep.subr.mxu0 0.0
        %1433 = vmatpush1.msra.mxu0 0.0
        %1434 = vmatprep.subr.mxu0 0.0
        %1435 = vmatpush1.msra.mxu0 0.0
        %1436 = vmatprep.subr.mxu0 0.0
        %1437 = vmatpush1.msra.mxu0 0.0
        %1438 = vmatprep.subr.mxu0 0.0
        %1439 = vmatpush1.msra.mxu0 0.0
        %1440 = vmatprep.subr.mxu0 0.0
        %1441 = vmatpush1.msra.mxu0 0.0
        %1442 = vmatprep.subr.mxu0 0.0
        %1443 = vmatpush1.msra.mxu0 0.0
        %1444 = vmatprep.subr.mxu0 0.0
        %1445 = vmatpush1.msra.mxu0 0.0
        %1446 = vmatprep.subr.mxu0 0.0
        %1447 = vmatpush1.msra.mxu0 0.0
        %1448 = vmatprep.subr.mxu0 0.0
        %1449 = vmatpush1.msra.mxu0 0.0
        %1450 = vmatprep.subr.mxu0 0.0
        %1451 = vmatpush1.msra.mxu0 0.0
        %1452 = vmatprep.subr.mxu0 0.0
        %1453 = vmatpush1.msra.mxu0 0.0
        %1454 = vmatprep.subr.mxu0 0.0
        %1455 = vmatpush1.msra.mxu0 0.0
        %1456 = vmatprep.subr.mxu0 0.0
        %1457 = vmatpush1.msra.mxu0 0.0
        %1458 = vmatprep.subr.mxu0 0.0
        %1459 = vmatpush1.msra.mxu0 0.0
        %1460 = vmatprep.subr.mxu0 0.0
        %1461 = vmatpush1.msra.mxu0 0.0
        %1462 = vmatprep.mubr.f32.mxu0 0.0
        %1463 = vmatmul.mubr.f32.gmra.mrb[0].mxu0 %v1382
        %v1464 = vpop.f32.mrb[0].mxu0
        %v1465 = vadd.f32 0.0, %v1464
        %v1466 = vpop.f32.mrb[0].mxu0
        %1467 = vmatprep.mubr.f32.mxu0 0.0
        %1468 = vmatmul.mubr.f32.gmra.mrb[0].mxu0 %v1383
        %v1469 = vpop.f32.mrb[0].mxu0
        %v1470 = vadd.f32 0.0, %v1469
        %v1471 = vpop.f32.mrb[0].mxu0
        %1472 = vmatprep.mubr.f32.mxu0 0.0
        %1473 = vmatmul.mubr.f32.gmra.mrb[0].mxu0 %v1384
        %v1474 = vpop.f32.mrb[0].mxu0
        %v1475 = vadd.f32 0.0, %v1474
        %v1476 = vpop.f32.mrb[0].mxu0
        %1477 = vmatprep.mubr.f32.mxu0 0.0
        %1478 = vmatmul.mubr.f32.gmra.mrb[0].mxu0 %v1385
        %v1479 = vpop.f32.mrb[0].mxu0
        %v1480 = vadd.f32 0.0, %v1479
        %v1481 = vpop.f32.mrb[0].mxu0
        %1482 = vmatprep.mubr.f32.mxu0 0.0
        %1483 = vmatmul.mubr.f32.gmra.mrb[0].mxu0 %v1386
        %v1484 = vpop.f32.mrb[0].mxu0
        %v1485 = vadd.f32 0.0, %v1484
        %v1486 = vpop.f32.mrb[0].mxu0
        %1487 = vmatprep.mubr.f32.mxu0 0.0
        %1488 = vmatmul.mubr.f32.gmra.mrb[0].mxu0 %v1387
        %v1489 = vpop.f32.mrb[0].mxu0
        %v1490 = vadd.f32 0.0, %v1489
        %v1491 = vpop.f32.mrb[0].mxu0
        %1492 = vmatprep.mubr.f32.mxu0 0.0
        %1493 = vmatmul.mubr.f32.gmra.mrb[0].mxu0 %v1388
        %v1494 = vpop.f32.mrb[0].mxu0
        %v1495 = vadd.f32 0.0, %v1494
        %v1496 = vpop.f32.mrb[0].mxu0
        %1497 = vmatprep.mubr.f32.mxu0 0.0
        %1498 = vmatmul.mubr.f32.gmra.mrb[0].mxu0 %v1389
        %v1499 = vpop.f32.mrb[0].mxu0
        %v1500 = vadd.f32 0.0, %v1499
        %v1501 = vpop.f32.mrb[0].mxu0
        %1502 = vmatprep.mubr.f32.mxu0 0.0
        %1503 = vmatmul.mubr.f32.gmra.mrb[0].mxu0 %v1390
        %v1504 = vpop.f32.mrb[0].mxu0
        %v1505 = vadd.f32 0.0, %v1504
        %v1506 = vpop.f32.mrb[0].mxu0
        %1507 = vmatprep.mubr.f32.mxu0 0.0
        %1508 = vmatmul.mubr.f32.gmra.mrb[0].mxu0 %v1391
        %v1509 = vpop.f32.mrb[0].mxu0
        %v1510 = vadd.f32 0.0, %v1509
        %v1511 = vpop.f32.mrb[0].mxu0
        %1512 = vmatprep.mubr.f32.mxu0 0.0
        %1513 = vmatmul.mubr.f32.gmra.mrb[0].mxu0 %v1392
        %v1514 = vpop.f32.mrb[0].mxu0
        %v1515 = vadd.f32 0.0, %v1514
        %v1516 = vpop.f32.mrb[0].mxu0
        %1517 = vmatprep.mubr.f32.mxu0 0.0
        %1518 = vmatmul.mubr.f32.gmra.mrb[0].mxu0 %v1393
        %v1519 = vpop.f32.mrb[0].mxu0
        %v1520 = vadd.f32 0.0, %v1519
        %v1521 = vpop.f32.mrb[0].mxu0
        %1522 = vmatprep.mubr.f32.mxu0 0.0
        %1523 = vmatmul.mubr.f32.gmra.mrb[0].mxu0 %v1394
        %v1524 = vpop.f32.mrb[0].mxu0
        %v1525 = vadd.f32 0.0, %v1524
        %v1526 = vpop.f32.mrb[0].mxu0
        %1527 = vmatprep.mubr.f32.mxu0 0.0
        %1528 = vmatmul.mubr.f32.gmra.mrb[0].mxu0 %v1395
        %v1529 = vpop.f32.mrb[0].mxu0
        %v1530 = vadd.f32 0.0, %v1529
        %v1531 = vpop.f32.mrb[0].mxu0
        %1532 = vmatprep.mubr.f32.mxu0 0.0
        %1533 = vmatmul.mubr.f32.gmra.mrb[0].mxu0 %v1396
        %v1534 = vpop.f32.mrb[0].mxu0
        %v1535 = vadd.f32 0.0, %v1534
        %v1536 = vpop.f32.mrb[0].mxu0
        %1537 = vmatprep.mubr.f32.mxu0 0.0
        %1538 = vmatmul.mubr.f32.gmra.mrb[0].mxu0 %v1397
        %v1539 = vpop.f32.mrb[0].mxu0
        %v1540 = vadd.f32 0.0, %v1539
        %v1541 = vpop.f32.mrb[0].mxu0
        %1542 = vdwg.mxu0
        %v1543 = vmax.f32 %v1465, %v1485
        %v1544 = vmax.f32 %v1470, %v1490
        %v1545 = vmax.f32 %v1475, %v1495
        %v1546 = vmax.f32 %v1480, %v1500
        %v1547 = vmax.f32 %v1543, %v1505
        %v1548 = vmax.f32 %v1544, %v1510
        %v1549 = vmax.f32 %v1545, %v1515
        %v1550 = vmax.f32 %v1546, %v1520
        %v1551 = vmax.f32 %v1547, %v1525
        %v1552 = vmax.f32 %v1548, %v1530
        %v1553 = vmax.f32 %v1549, %v1535
        %v1554 = vmax.f32 %v1550, %v1540
        %v1555 = vmax.f32 %v1551, %v1552
        %v1556 = vmax.f32 %v1553, %v1554
        %v1557 = vmax.f32 %v1555, %v1556
        %v1558 = vrot.slane %v1557, 4
        %v1559 = vmax.f32 %v1557, %v1558
        %v1560 = vrot.slane %v1559, 2
        %v1561 = vmax.f32 %v1559, %v1560
        %v1562 = vrot.slane %v1561, 1
        %v1563 = vmax.f32 %v1561, %v1562
        %v1564 = vsub.f32 %v1465, %v1563
        %v1565 = vsub.f32 %v1470, %v1563
        %v1566 = vsub.f32 %v1475, %v1563
        %v1567 = vsub.f32 %v1480, %v1563
        %v1568 = vsub.f32 %v1485, %v1563
        %v1569 = vsub.f32 %v1490, %v1563
        %v1570 = vsub.f32 %v1495, %v1563
        %v1571 = vsub.f32 %v1500, %v1563
        %v1572 = vsub.f32 %v1505, %v1563
        %v1573 = vsub.f32 %v1510, %v1563
        %v1574 = vsub.f32 %v1515, %v1563
        %v1575 = vsub.f32 %v1520, %v1563
        %v1576 = vsub.f32 %v1525, %v1563
        %v1577 = vsub.f32 %v1530, %v1563
        %v1578 = vsub.f32 %v1535, %v1563
        %v1579 = vsub.f32 %v1540, %v1563
        %1580 = vmax.xlane.f32.xlu0 %v1564
        %v1581 = vpop.xlane.xlu0 %1580
        %1582 = vmax.xlane.f32.xlu0 %v1565
        %v1583 = vpop.xlane.xlu0 %1582
        %1584 = vmax.xlane.f32.xlu0 %v1566
        %v1585 = vpop.xlane.xlu0 %1584
        %1586 = vmax.xlane.f32.xlu0 %v1567
        %v1587 = vpop.xlane.xlu0 %1586
        %1588 = vmax.xlane.f32.xlu0 %v1568
        %v1589 = vpop.xlane.xlu0 %1588
        %1590 = vmax.xlane.f32.xlu0 %v1569
        %v1591 = vpop.xlane.xlu0 %1590
        %1592 = vmax.xlane.f32.xlu0 %v1570
        %v1593 = vpop.xlane.xlu0 %1592
        %1594 = vmax.xlane.f32.xlu0 %v1571
        %v1595 = vpop.xlane.xlu0 %1594
        %1596 = vmax.xlane.f32.xlu0 %v1572
        %v1597 = vpop.xlane.xlu0 %1596
        %1598 = vmax.xlane.f32.xlu0 %v1573
        %v1599 = vpop.xlane.xlu0 %1598
        %1600 = vmax.xlane.f32.xlu0 %v1574
        %v1601 = vpop.xlane.xlu0 %1600
        %1602 = vmax.xlane.f32.xlu0 %v1575
        %v1603 = vpop.xlane.xlu0 %1602
        %1604 = vmax.xlane.f32.xlu0 %v1576
        %v1605 = vpop.xlane.xlu0 %1604
        %1606 = vmax.xlane.f32.xlu0 %v1577
        %v1607 = vpop.xlane.xlu0 %1606
        %1608 = vmax.xlane.f32.xlu0 %v1578
        %v1609 = vpop.xlane.xlu0 %1608
        %1610 = vmax.xlane.f32.xlu0 %v1579
        %v1611 = vpop.xlane.xlu0 %1610
        %v1612 = vsub.f32 %v1564, %v1581
        %v1613 = vsub.f32 %v1565, %v1583
        %v1614 = vsub.f32 %v1566, %v1585
        %v1615 = vsub.f32 %v1567, %v1587
        %v1616 = vsub.f32 %v1568, %v1589
        %v1617 = vsub.f32 %v1569, %v1591
        %v1618 = vsub.f32 %v1570, %v1593
        %v1619 = vsub.f32 %v1571, %v1595
        %v1620 = vsub.f32 %v1572, %v1597
        %v1621 = vsub.f32 %v1573, %v1599
        %v1622 = vsub.f32 %v1574, %v1601
        %v1623 = vsub.f32 %v1575, %v1603
        %v1624 = vsub.f32 %v1576, %v1605
        %v1625 = vsub.f32 %v1577, %v1607
        %v1626 = vsub.f32 %v1578, %v1609
        %v1627 = vsub.f32 %v1579, %v1611
        %v1628 = vmul.f32 %v1612, 1.442695
        %v1629 = vpow.pop %v1628
        %v1630 = vmul.f32 %v1613, 1.442695
        %v1631 = vpow.pop %v1630
        %v1632 = vmul.f32 %v1614, 1.442695
        %v1633 = vpow.pop %v1632
        %v1634 = vmul.f32 %v1615, 1.442695
        %v1635 = vpow.pop %v1634
        %v1636 = vmul.f32 %v1616, 1.442695
        %v1637 = vpow.pop %v1636
        %v1638 = vmul.f32 %v1617, 1.442695
        %v1639 = vpow.pop %v1638
        %v1640 = vmul.f32 %v1618, 1.442695
        %v1641 = vpow.pop %v1640
        %v1642 = vmul.f32 %v1619, 1.442695
        %v1643 = vpow.pop %v1642
        %v1644 = vmul.f32 %v1620, 1.442695
        %v1645 = vpow.pop %v1644
        %v1646 = vmul.f32 %v1621, 1.442695
        %v1647 = vpow.pop %v1646
        %v1648 = vmul.f32 %v1622, 1.442695
        %v1649 = vpow.pop %v1648
        %v1650 = vmul.f32 %v1623, 1.442695
        %v1651 = vpow.pop %v1650
        %v1652 = vmul.f32 %v1624, 1.442695
        %v1653 = vpow.pop %v1652
        %v1654 = vmul.f32 %v1625, 1.442695
        %v1655 = vpow.pop %v1654
        %v1656 = vmul.f32 %v1626, 1.442695
        %v1657 = vpow.pop %v1656
        %v1658 = vmul.f32 %v1627, 1.442695
        %v1659 = vpow.pop %v1658
        %1660 = vadd.xlane.f32.xlu0 %v1629
        %v1661 = vpop.xlane.xlu0 %1660
        %1662 = vadd.xlane.f32.xlu0 %v1631
        %v1663 = vpop.xlane.xlu0 %1662
        %1664 = vadd.xlane.f32.xlu0 %v1633
        %v1665 = vpop.xlane.xlu0 %1664
        %1666 = vadd.xlane.f32.xlu0 %v1635
        %v1667 = vpop.xlane.xlu0 %1666
        %1668 = vadd.xlane.f32.xlu0 %v1637
        %v1669 = vpop.xlane.xlu0 %1668
        %1670 = vadd.xlane.f32.xlu0 %v1639
        %v1671 = vpop.xlane.xlu0 %1670
        %1672 = vadd.xlane.f32.xlu0 %v1641
        %v1673 = vpop.xlane.xlu0 %1672
        %1674 = vadd.xlane.f32.xlu0 %v1643
        %v1675 = vpop.xlane.xlu0 %1674
        %1676 = vadd.xlane.f32.xlu0 %v1645
        %v1677 = vpop.xlane.xlu0 %1676
        %1678 = vadd.xlane.f32.xlu0 %v1647
        %v1679 = vpop.xlane.xlu0 %1678
        %1680 = vadd.xlane.f32.xlu0 %v1649
        %v1681 = vpop.xlane.xlu0 %1680
        %1682 = vadd.xlane.f32.xlu0 %v1651
        %v1683 = vpop.xlane.xlu0 %1682
        %1684 = vadd.xlane.f32.xlu0 %v1653
        %v1685 = vpop.xlane.xlu0 %1684
        %1686 = vadd.xlane.f32.xlu0 %v1655
        %v1687 = vpop.xlane.xlu0 %1686
        %1688 = vadd.xlane.f32.xlu0 %v1657
        %v1689 = vpop.xlane.xlu0 %1688
        %1690 = vadd.xlane.f32.xlu0 %v1659
        %v1691 = vpop.xlane.xlu0 %1690
        %v1692 = vrcp.pop %v1661
        %v1693 = vrcp.pop %v1663
        %v1694 = vrcp.pop %v1665
        %v1695 = vrcp.pop %v1667
        %v1696 = vrcp.pop %v1669
        %v1697 = vrcp.pop %v1671
        %v1698 = vrcp.pop %v1673
        %v1699 = vrcp.pop %v1675
        %v1700 = vrcp.pop %v1677
        %v1701 = vrcp.pop %v1679
        %v1702 = vrcp.pop %v1681
        %v1703 = vrcp.pop %v1683
        %v1704 = vrcp.pop %v1685
        %v1705 = vrcp.pop %v1687
        %v1706 = vrcp.pop %v1689
        %v1707 = vrcp.pop %v1691
        %v1708 = vmul.f32 %v1629, %v1692
        %v1709 = vmul.f32 %v1631, %v1693
        %v1710 = vmul.f32 %v1633, %v1694
        %v1711 = vmul.f32 %v1635, %v1695
        %v1712 = vmul.f32 %v1637, %v1696
        %v1713 = vmul.f32 %v1639, %v1697
        %v1714 = vmul.f32 %v1641, %v1698
        %v1715 = vmul.f32 %v1643, %v1699
        %v1716 = vmul.f32 %v1645, %v1700
        %v1717 = vmul.f32 %v1647, %v1701
        %v1718 = vmul.f32 %v1649, %v1702
        %v1719 = vmul.f32 %v1651, %v1703
        %v1720 = vmul.f32 %v1653, %v1704
        %v1721 = vmul.f32 %v1655, %v1705
        %v1722 = vmul.f32 %v1657, %v1706
        %v1723 = vmul.f32 %v1659, %v1707
        %1724 = vxpose.xlu0.b32.start [1/16] %v1708, 128
        %1725 = vxpose.xlu0.b32.cont [2/16] %v1709, 128
        %1726 = vxpose.xlu0.b32.cont [3/16] %v1710, 128
        %1727 = vxpose.xlu0.b32.cont [4/16] %v1711, 128
        %1728 = vxpose.xlu0.b32.cont [5/16] %v1712, 128
        %1729 = vxpose.xlu0.b32.cont [6/16] %v1713, 128
        %1730 = vxpose.xlu0.b32.cont [7/16] %v1714, 128
        %1731 = vxpose.xlu0.b32.cont [8/16] %v1715, 128
        %1732 = vxpose.xlu0.b32.cont [9/16] %v1716, 128
        %1733 = vxpose.xlu0.b32.cont [10/16] %v1717, 128
        %1734 = vxpose.xlu0.b32.cont [11/16] %v1718, 128
        %1735 = vxpose.xlu0.b32.cont [12/16] %v1719, 128
        %1736 = vxpose.xlu0.b32.cont [13/16] %v1720, 128
        %1737 = vxpose.xlu0.b32.cont [14/16] %v1721, 128
        %1738 = vxpose.xlu0.b32.cont [15/16] %v1722, 128
        %1739 = vxpose.xlu0.b32.end [16/16] %v1723, 128
        %v1740 = vpop.trf.xlu0
        %v1741 = vpop.trf.xlu0
        %v1742 = vpop.trf.xlu0
        %v1743 = vpop.trf.xlu0
        %v1744 = vpop.trf.xlu0
        %v1745 = vpop.trf.xlu0
        %v1746 = vpop.trf.xlu0
        %v1747 = vpop.trf.xlu0
        %v1748 = vpop.trf.xlu0
        %v1749 = vpop.trf.xlu0
        %v1750 = vpop.trf.xlu0
        %v1751 = vpop.trf.xlu0
        %v1752 = vpop.trf.xlu0
        %v1753 = vpop.trf.xlu0
        %v1754 = vpop.trf.xlu0
        %v1755 = vpop.trf.xlu0
        %1756 = vst [vmem:[%s736] sm:$0xff] %v1740
        %1757 = vst [vmem:[%s736 + $0x8] sm:$0xff] %v1741
        %1758 = vst [vmem:[%s736 + $0x10] sm:$0xff] %v1742
        %1759 = vst [vmem:[%s736 + $0x18] sm:$0xff] %v1743
        %1760 = vst [vmem:[%s736 + $0x20] sm:$0xff] %v1744
        %1761 = vst [vmem:[%s736 + $0x28] sm:$0xff] %v1745
        %1762 = vst [vmem:[%s736 + $0x30] sm:$0xff] %v1746
        %1763 = vst [vmem:[%s736 + $0x38] sm:$0xff] %v1747
        %1764 = vst [vmem:[%s736 + $0x40] sm:$0xff] %v1748
        %1765 = vst [vmem:[%s736 + $0x48] sm:$0xff] %v1749
        %1766 = vst [vmem:[%s736 + $0x50] sm:$0xff] %v1750
        %1767 = vst [vmem:[%s736 + $0x58] sm:$0xff] %v1751
        %1768 = vst [vmem:[%s736 + $0x60] sm:$0xff] %v1752
        %1769 = vst [vmem:[%s736 + $0x68] sm:$0xff] %v1753
        %1770 = vst [vmem:[%s736 + $0x70] sm:$0xff] %v1754
        %1771 = vst [vmem:[%s736 + $0x78] sm:$0xff] %v1755
        %1772 = vmatprep.subr.mxu0 0.0
        %1773 = vmatpush1.msra.mxu0 %v1740
        %1774 = vmatprep.subr.mxu0 0.0
        %1775 = vmatpush1.msra.mxu0 %v1741
        %1776 = vmatprep.subr.mxu0 0.0
        %1777 = vmatpush1.msra.mxu0 %v1742
        %1778 = vmatprep.subr.mxu0 0.0
        %1779 = vmatpush1.msra.mxu0 %v1743
        %1780 = vmatprep.subr.mxu0 0.0
        %1781 = vmatpush1.msra.mxu0 %v1744
        %1782 = vmatprep.subr.mxu0 0.0
        %1783 = vmatpush1.msra.mxu0 %v1745
        %1784 = vmatprep.subr.mxu0 0.0
        %1785 = vmatpush1.msra.mxu0 %v1746
        %1786 = vmatprep.subr.mxu0 0.0
        %1787 = vmatpush1.msra.mxu0 %v1747
        %1788 = vmatprep.subr.mxu0 0.0
        %1789 = vmatpush1.msra.mxu0 %v1748
        %1790 = vmatprep.subr.mxu0 0.0
        %1791 = vmatpush1.msra.mxu0 %v1749
        %1792 = vmatprep.subr.mxu0 0.0
        %1793 = vmatpush1.msra.mxu0 %v1750
        %1794 = vmatprep.subr.mxu0 0.0
        %1795 = vmatpush1.msra.mxu0 %v1751
        %1796 = vmatprep.subr.mxu0 0.0
        %1797 = vmatpush1.msra.mxu0 %v1752
        %1798 = vmatprep.subr.mxu0 0.0
        %1799 = vmatpush1.msra.mxu0 %v1753
        %1800 = vmatprep.subr.mxu0 0.0
        %1801 = vmatpush1.msra.mxu0 %v1754
        %1802 = vmatprep.subr.mxu0 0.0
        %1803 = vmatpush1.msra.mxu0 %v1755
        %1804 = vmatprep.subr.mxu0 0.0
        %1805 = vmatpush1.msra.mxu0 0.0
        %1806 = vmatprep.subr.mxu0 0.0
        %1807 = vmatpush1.msra.mxu0 0.0
        %1808 = vmatprep.subr.mxu0 0.0
        %1809 = vmatpush1.msra.mxu0 0.0
        %1810 = vmatprep.subr.mxu0 0.0
        %1811 = vmatpush1.msra.mxu0 0.0
        %1812 = vmatprep.subr.mxu0 0.0
        %1813 = vmatpush1.msra.mxu0 0.0
        %1814 = vmatprep.subr.mxu0 0.0
        %1815 = vmatpush1.msra.mxu0 0.0
        %1816 = vmatprep.subr.mxu0 0.0
        %1817 = vmatpush1.msra.mxu0 0.0
        %1818 = vmatprep.subr.mxu0 0.0
        %1819 = vmatpush1.msra.mxu0 0.0
        %1820 = vmatprep.subr.mxu0 0.0
        %1821 = vmatpush1.msra.mxu0 0.0
        %1822 = vmatprep.subr.mxu0 0.0
        %1823 = vmatpush1.msra.mxu0 0.0
        %1824 = vmatprep.subr.mxu0 0.0
        %1825 = vmatpush1.msra.mxu0 0.0
        %1826 = vmatprep.subr.mxu0 0.0
        %1827 = vmatpush1.msra.mxu0 0.0
        %1828 = vmatprep.subr.mxu0 0.0
        %1829 = vmatpush1.msra.mxu0 0.0
        %1830 = vmatprep.subr.mxu0 0.0
        %1831 = vmatpush1.msra.mxu0 0.0
        %1832 = vmatprep.subr.mxu0 0.0
        %1833 = vmatpush1.msra.mxu0 0.0
        %1834 = vmatprep.subr.mxu0 0.0
        %1835 = vmatpush1.msra.mxu0 0.0
        %1836 = vmatprep.mubr.f32.mxu0 0.0
        %1837 = vmatmul.mubr.f32.gmra.mrb[0].mxu0 %v751
        %v1838 = vpop.f32.mrb[0].mxu0
        %v1839 = vadd.f32 0.0, %v1838
        %v1840 = vpop.f32.mrb[0].mxu0
        %1841 = vmatprep.mubr.f32.mxu0 0.0
        %1842 = vmatmul.mubr.f32.gmra.mrb[0].mxu0 %v752
        %v1843 = vpop.f32.mrb[0].mxu0
        %v1844 = vadd.f32 0.0, %v1843
        %v1845 = vpop.f32.mrb[0].mxu0
        %1846 = vmatprep.mubr.f32.mxu0 0.0
        %1847 = vmatmul.mubr.f32.gmra.mrb[0].mxu0 %v753
        %v1848 = vpop.f32.mrb[0].mxu0
        %v1849 = vadd.f32 0.0, %v1848
        %v1850 = vpop.f32.mrb[0].mxu0
        %1851 = vmatprep.mubr.f32.mxu0 0.0
        %1852 = vmatmul.mubr.f32.gmra.mrb[0].mxu0 %v754
        %v1853 = vpop.f32.mrb[0].mxu0
        %v1854 = vadd.f32 0.0, %v1853
        %v1855 = vpop.f32.mrb[0].mxu0
        %1856 = vdwg.mxu0
        %v1857 = vld [vmem:[%s7] sm:$0x1]
        %v1858 = vld [vmem:[%s7 + $0x1] sm:$0x1]
        %v1859 = vld [vmem:[%s7 + $0x2] sm:$0x1]
        %v1860 = vld [vmem:[%s7 + $0x3] sm:$0x1]
        %v1865 = vlaneseq
        %v1866 = vshrl.u32 %v1865, 7
        %v1867 = vsub.s32 0, %v1866
        %v1868 = vrot.slane %v1857, %v1867
        %v1869 = vlaneseq
        %v1870 = vshrl.u32 %v1869, 7
        %v1871 = vsub.s32 0, %v1870
        %v1872 = vrot.slane %v1858, %v1871
        %v1873 = vlaneseq
        %v1874 = vshrl.u32 %v1873, 7
        %v1875 = vsub.s32 0, %v1874
        %v1876 = vrot.slane %v1859, %v1875
        %v1877 = vlaneseq
        %v1878 = vshrl.u32 %v1877, 7
        %v1879 = vsub.s32 0, %v1878
        %v1880 = vrot.slane %v1860, %v1879
        %1881 = vset.pattern.permute.xlu0 0
        %1882 = vperm.xlu0 %1881, %v1868
        %v1883 = vpop.permute.xlu0 %1882
        %1885 = vset.pattern.permute.xlu0 0
        %1886 = vperm.xlu0 %1885, %v1872
        %v1887 = vpop.permute.xlu0 %1886
        %1889 = vset.pattern.permute.xlu0 0
        %1890 = vperm.xlu0 %1889, %v1876
        %v1891 = vpop.permute.xlu0 %1890
        %1893 = vset.pattern.permute.xlu0 0
        %1894 = vperm.xlu0 %1893, %v1880
        %v1895 = vpop.permute.xlu0 %1894
        %v1897 = vmul.f32 %v1883, %v747
        %v1898 = vmul.f32 %v1887, %v748
        %v1899 = vmul.f32 %v1891, %v749
        %v1900 = vmul.f32 %v1895, %v750
        %v1901 = vadd.f32 %v1897, %v1898
        %v1902 = vadd.f32 %v1901, %v1899
        %v1903 = vadd.f32 %v1902, %v1900
        %v1904 = vld [vmem:[%s8] sm:$0x1]
        %v1906 = vlaneseq
        %v1907 = vshrl.u32 %v1906, 7
        %v1908 = vsub.s32 0, %v1907
        %v1909 = vrot.slane %v1904, %v1908
        %v1911 = vmul.f32 %v1909, %v747
        %v1912 = vmul.f32 %v1909, %v748
        %v1913 = vmul.f32 %v1909, %v749
        %v1914 = vmul.f32 %v1909, %v750
        %1915 = vadd.xlane.f32.xlu0 %v1911
        %v1916 = vpop.xlane.xlu0 %1915
        %1917 = vadd.xlane.f32.xlu0 %v1912
        %v1918 = vpop.xlane.xlu0 %1917
        %1919 = vadd.xlane.f32.xlu0 %v1913
        %v1920 = vpop.xlane.xlu0 %1919
        %1921 = vadd.xlane.f32.xlu0 %v1914
        %v1922 = vpop.xlane.xlu0 %1921
        %v1923 = vld [vmem:[%s9] sm:$0xff]
        %v1924 = vld [vmem:[%s9 + $0x8] sm:$0xff]
        %v1925 = vld [vmem:[%s9 + $0x10] sm:$0xff]
        %v1926 = vld [vmem:[%s9 + $0x18] sm:$0xff]
        %v1927 = vld [vmem:[%s9 + $0x20] sm:$0xff]
        %v1928 = vld [vmem:[%s9 + $0x28] sm:$0xff]
        %v1929 = vld [vmem:[%s9 + $0x30] sm:$0xff]
        %v1930 = vld [vmem:[%s9 + $0x38] sm:$0xff]
        %v1931 = vld [vmem:[%s9 + $0x40] sm:$0xff]
        %v1932 = vld [vmem:[%s9 + $0x48] sm:$0xff]
        %v1933 = vld [vmem:[%s9 + $0x50] sm:$0xff]
        %v1934 = vld [vmem:[%s9 + $0x58] sm:$0xff]
        %v1935 = vld [vmem:[%s9 + $0x60] sm:$0xff]
        %v1936 = vld [vmem:[%s9 + $0x68] sm:$0xff]
        %v1937 = vld [vmem:[%s9 + $0x70] sm:$0xff]
        %v1938 = vld [vmem:[%s9 + $0x78] sm:$0xff]
        %1939 = vmatprep.subr.mxu0 0.0
        %1940 = vmatpush1.msra.mxu0 %v1923
        %1941 = vmatprep.subr.mxu0 0.0
        %1942 = vmatpush1.msra.mxu0 %v1924
        %1943 = vmatprep.subr.mxu0 0.0
        %1944 = vmatpush1.msra.mxu0 %v1925
        %1945 = vmatprep.subr.mxu0 0.0
        %1946 = vmatpush1.msra.mxu0 %v1926
        %1947 = vmatprep.subr.mxu0 0.0
        %1948 = vmatpush1.msra.mxu0 %v1927
        %1949 = vmatprep.subr.mxu0 0.0
        %1950 = vmatpush1.msra.mxu0 %v1928
        %1951 = vmatprep.subr.mxu0 0.0
        %1952 = vmatpush1.msra.mxu0 %v1929
        %1953 = vmatprep.subr.mxu0 0.0
        %1954 = vmatpush1.msra.mxu0 %v1930
        %1955 = vmatprep.subr.mxu0 0.0
        %1956 = vmatpush1.msra.mxu0 %v1931
        %1957 = vmatprep.subr.mxu0 0.0
        %1958 = vmatpush1.msra.mxu0 %v1932
        %1959 = vmatprep.subr.mxu0 0.0
        %1960 = vmatpush1.msra.mxu0 %v1933
        %1961 = vmatprep.subr.mxu0 0.0
        %1962 = vmatpush1.msra.mxu0 %v1934
        %1963 = vmatprep.subr.mxu0 0.0
        %1964 = vmatpush1.msra.mxu0 %v1935
        %1965 = vmatprep.subr.mxu0 0.0
        %1966 = vmatpush1.msra.mxu0 %v1936
        %1967 = vmatprep.subr.mxu0 0.0
        %1968 = vmatpush1.msra.mxu0 %v1937
        %1969 = vmatprep.subr.mxu0 0.0
        %1970 = vmatpush1.msra.mxu0 %v1938
        %1971 = vmatprep.subr.mxu0 0.0
        %1972 = vmatpush1.msra.mxu0 0.0
        %1973 = vmatprep.subr.mxu0 0.0
        %1974 = vmatpush1.msra.mxu0 0.0
        %1975 = vmatprep.subr.mxu0 0.0
        %1976 = vmatpush1.msra.mxu0 0.0
        %1977 = vmatprep.subr.mxu0 0.0
        %1978 = vmatpush1.msra.mxu0 0.0
        %1979 = vmatprep.subr.mxu0 0.0
        %1980 = vmatpush1.msra.mxu0 0.0
        %1981 = vmatprep.subr.mxu0 0.0
        %1982 = vmatpush1.msra.mxu0 0.0
        %1983 = vmatprep.subr.mxu0 0.0
        %1984 = vmatpush1.msra.mxu0 0.0
        %1985 = vmatprep.subr.mxu0 0.0
        %1986 = vmatpush1.msra.mxu0 0.0
        %1987 = vmatprep.subr.mxu0 0.0
        %1988 = vmatpush1.msra.mxu0 0.0
        %1989 = vmatprep.subr.mxu0 0.0
        %1990 = vmatpush1.msra.mxu0 0.0
        %1991 = vmatprep.subr.mxu0 0.0
        %1992 = vmatpush1.msra.mxu0 0.0
        %1993 = vmatprep.subr.mxu0 0.0
        %1994 = vmatpush1.msra.mxu0 0.0
        %1995 = vmatprep.subr.mxu0 0.0
        %1996 = vmatpush1.msra.mxu0 0.0
        %1997 = vmatprep.subr.mxu0 0.0
        %1998 = vmatpush1.msra.mxu0 0.0
        %1999 = vmatprep.subr.mxu0 0.0
        %2000 = vmatpush1.msra.mxu0 0.0
        %2001 = vmatprep.subr.mxu0 0.0
        %2002 = vmatpush1.msra.mxu0 0.0
        %2003 = vmatprep.mubr.f32.mxu0 0.0
        %2004 = vmatmul.mubr.f32.gmra.mrb[0].mxu0 %v1903
        %v2005 = vpop.f32.mrb[0].mxu0
        %v2006 = vadd.f32 0.0, %v2005
        %v2007 = vpop.f32.mrb[0].mxu0
        %2008 = vdwg.mxu0
        %v2009 = vld [vmem:[%s10] sm:$0xff]
        %v2014 = vlaneseq
        %v2015 = vand.u32 %v2014, 127
        %v2016 = vlaneseq
        %v2017 = vshrl.u32 %v2016, 7
        %v2018 = vsub.s32 %v2015, %v2017
        %v2019 = vrot.slane %v1916, %v2018
        %v2020 = vlaneseq
        %v2021 = vshrl.u32 %v2020, 7
        %v2022 = vsub.s32 %v2015, %v2021
        %v2023 = vrot.slane %v1918, %v2022
        %v2024 = vlaneseq
        %v2025 = vshrl.u32 %v2024, 7
        %v2026 = vsub.s32 %v2015, %v2025
        %v2027 = vrot.slane %v1920, %v2026
        %v2028 = vlaneseq
        %v2029 = vshrl.u32 %v2028, 7
        %v2030 = vsub.s32 %v2015, %v2029
        %v2031 = vrot.slane %v1922, %v2030
        %v2032 = vsel %vm1083, %v2023, %v2019
        %v2033 = vsel %vm1085, %v2027, %v2032
        %v2034 = vsel %vm1087, %v2031, %v2033
        %v2036 = vsel %vm1089, %v2006, 0
        %v2038 = vsel %vm1138, %v2034, 0
        %2040 = vmatprep.subr.mxu0 0.0
        %2041 = vmatpush1.msra.mxu0 %v2038
        %2042 = vmatprep.subr.mxu0 0.0
        %2043 = vmatpush1.msra.mxu0 0.0
        %2044 = vmatprep.subr.mxu0 0.0
        %2045 = vmatpush1.msra.mxu0 0.0
        %2046 = vmatprep.subr.mxu0 0.0
        %2047 = vmatpush1.msra.mxu0 0.0
        %2048 = vmatprep.subr.mxu0 0.0
        %2049 = vmatpush1.msra.mxu0 0.0
        %2050 = vmatprep.subr.mxu0 0.0
        %2051 = vmatpush1.msra.mxu0 0.0
        %2052 = vmatprep.subr.mxu0 0.0
        %2053 = vmatpush1.msra.mxu0 0.0
        %2054 = vmatprep.subr.mxu0 0.0
        %2055 = vmatpush1.msra.mxu0 0.0
        %2056 = vmatprep.subr.mxu0 0.0
        %2057 = vmatpush1.msra.mxu0 0.0
        %2058 = vmatprep.subr.mxu0 0.0
        %2059 = vmatpush1.msra.mxu0 0.0
        %2060 = vmatprep.subr.mxu0 0.0
        %2061 = vmatpush1.msra.mxu0 0.0
        %2062 = vmatprep.subr.mxu0 0.0
        %2063 = vmatpush1.msra.mxu0 0.0
        %2064 = vmatprep.subr.mxu0 0.0
        %2065 = vmatpush1.msra.mxu0 0.0
        %2066 = vmatprep.subr.mxu0 0.0
        %2067 = vmatpush1.msra.mxu0 0.0
        %2068 = vmatprep.subr.mxu0 0.0
        %2069 = vmatpush1.msra.mxu0 0.0
        %2070 = vmatprep.subr.mxu0 0.0
        %2071 = vmatpush1.msra.mxu0 0.0
        %2072 = vmatprep.subr.mxu0 0.0
        %2073 = vmatpush1.msra.mxu0 0.0
        %2074 = vmatprep.subr.mxu0 0.0
        %2075 = vmatpush1.msra.mxu0 0.0
        %2076 = vmatprep.subr.mxu0 0.0
        %2077 = vmatpush1.msra.mxu0 0.0
        %2078 = vmatprep.subr.mxu0 0.0
        %2079 = vmatpush1.msra.mxu0 0.0
        %2080 = vmatprep.subr.mxu0 0.0
        %2081 = vmatpush1.msra.mxu0 0.0
        %2082 = vmatprep.subr.mxu0 0.0
        %2083 = vmatpush1.msra.mxu0 0.0
        %2084 = vmatprep.subr.mxu0 0.0
        %2085 = vmatpush1.msra.mxu0 0.0
        %2086 = vmatprep.subr.mxu0 0.0
        %2087 = vmatpush1.msra.mxu0 0.0
        %2088 = vmatprep.subr.mxu0 0.0
        %2089 = vmatpush1.msra.mxu0 0.0
        %2090 = vmatprep.subr.mxu0 0.0
        %2091 = vmatpush1.msra.mxu0 0.0
        %2092 = vmatprep.subr.mxu0 0.0
        %2093 = vmatpush1.msra.mxu0 0.0
        %2094 = vmatprep.subr.mxu0 0.0
        %2095 = vmatpush1.msra.mxu0 0.0
        %2096 = vmatprep.subr.mxu0 0.0
        %2097 = vmatpush1.msra.mxu0 0.0
        %2098 = vmatprep.subr.mxu0 0.0
        %2099 = vmatpush1.msra.mxu0 0.0
        %2100 = vmatprep.subr.mxu0 0.0
        %2101 = vmatpush1.msra.mxu0 0.0
        %2102 = vmatprep.subr.mxu0 0.0
        %2103 = vmatpush1.msra.mxu0 0.0
        %2104 = vmatprep.mubr.f32.mxu0 0.0
        %2105 = vmatmul.mubr.f32.gmra.mrb[0].mxu0 %v2036
        %v2106 = vpop.f32.mrb[0].mxu0
        %v2107 = vadd.f32 %v2009, %v2106
        %v2108 = vpop.f32.mrb[0].mxu0
        %2109 = vdwg.mxu0
        %v2110 = vsub.f32 0.0, %v2107
        %v2111 = vmul.f32 %v2110, 1.442695
        %v2112 = vpow.pop %v2111
        %v2113 = vadd.f32 %v2112, 1.0
        %v2114 = vrcp.pop %v2113
        %v2115 = vmul.f32 1.0, %v2114
        %v2116 = vld [vmem:[%s11] sm:$0xff]
        %v2118 = vsel %vm869, %v2116, 0
        %2120 = vmatprep.subr.mxu0 0.0
        %2121 = vmatpush1.msra.mxu0 %v2115
        %2122 = vmatprep.subr.mxu0 0.0
        %2123 = vmatpush1.msra.mxu0 0.0
        %2124 = vmatprep.subr.mxu0 0.0
        %2125 = vmatpush1.msra.mxu0 0.0
        %2126 = vmatprep.subr.mxu0 0.0
        %2127 = vmatpush1.msra.mxu0 0.0
        %2128 = vmatprep.subr.mxu0 0.0
        %2129 = vmatpush1.msra.mxu0 0.0
        %2130 = vmatprep.subr.mxu0 0.0
        %2131 = vmatpush1.msra.mxu0 0.0
        %2132 = vmatprep.subr.mxu0 0.0
        %2133 = vmatpush1.msra.mxu0 0.0
        %2134 = vmatprep.subr.mxu0 0.0
        %2135 = vmatpush1.msra.mxu0 0.0
        %2136 = vmatprep.subr.mxu0 0.0
        %2137 = vmatpush1.msra.mxu0 0.0
        %2138 = vmatprep.subr.mxu0 0.0
        %2139 = vmatpush1.msra.mxu0 0.0
        %2140 = vmatprep.subr.mxu0 0.0
        %2141 = vmatpush1.msra.mxu0 0.0
        %2142 = vmatprep.subr.mxu0 0.0
        %2143 = vmatpush1.msra.mxu0 0.0
        %2144 = vmatprep.subr.mxu0 0.0
        %2145 = vmatpush1.msra.mxu0 0.0
        %2146 = vmatprep.subr.mxu0 0.0
        %2147 = vmatpush1.msra.mxu0 0.0
        %2148 = vmatprep.subr.mxu0 0.0
        %2149 = vmatpush1.msra.mxu0 0.0
        %2150 = vmatprep.subr.mxu0 0.0
        %2151 = vmatpush1.msra.mxu0 0.0
        %2152 = vmatprep.subr.mxu0 0.0
        %2153 = vmatpush1.msra.mxu0 0.0
        %2154 = vmatprep.subr.mxu0 0.0
        %2155 = vmatpush1.msra.mxu0 0.0
        %2156 = vmatprep.subr.mxu0 0.0
        %2157 = vmatpush1.msra.mxu0 0.0
        %2158 = vmatprep.subr.mxu0 0.0
        %2159 = vmatpush1.msra.mxu0 0.0
        %2160 = vmatprep.subr.mxu0 0.0
        %2161 = vmatpush1.msra.mxu0 0.0
        %2162 = vmatprep.subr.mxu0 0.0
        %2163 = vmatpush1.msra.mxu0 0.0
        %2164 = vmatprep.subr.mxu0 0.0
        %2165 = vmatpush1.msra.mxu0 0.0
        %2166 = vmatprep.subr.mxu0 0.0
        %2167 = vmatpush1.msra.mxu0 0.0
        %2168 = vmatprep.subr.mxu0 0.0
        %2169 = vmatpush1.msra.mxu0 0.0
        %2170 = vmatprep.subr.mxu0 0.0
        %2171 = vmatpush1.msra.mxu0 0.0
        %2172 = vmatprep.subr.mxu0 0.0
        %2173 = vmatpush1.msra.mxu0 0.0
        %2174 = vmatprep.subr.mxu0 0.0
        %2175 = vmatpush1.msra.mxu0 0.0
        %2176 = vmatprep.subr.mxu0 0.0
        %2177 = vmatpush1.msra.mxu0 0.0
        %2178 = vmatprep.subr.mxu0 0.0
        %2179 = vmatpush1.msra.mxu0 0.0
        %2180 = vmatprep.subr.mxu0 0.0
        %2181 = vmatpush1.msra.mxu0 0.0
        %2182 = vmatprep.subr.mxu0 0.0
        %2183 = vmatpush1.msra.mxu0 0.0
        %2184 = vmatprep.mubr.f32.mxu0 0.0
        %2185 = vmatmul.mubr.f32.gmra.mrb[0].mxu0 %v2118
        %v2186 = vpop.f32.mrb[0].mxu0
        %v2187 = vadd.f32 0.0, %v2186
        %v2188 = vpop.f32.mrb[0].mxu0
        %2189 = vdwg.mxu0
        %v2190 = vsel %vm869, %v2187, -inf
        %v2191 = vrot.slane %v2190, 4
        %v2192 = vmax.f32 %v2190, %v2191
        %v2193 = vrot.slane %v2192, 2
        %v2194 = vmax.f32 %v2192, %v2193
        %v2195 = vrot.slane %v2194, 1
        %v2196 = vmax.f32 %v2194, %v2195
        %v2197 = vsub.f32 %v2187, %v2196
        %v2198 = vsel %vm869, %v2197, -inf
        %2199 = vmax.xlane.f32.xlu0 %v2198
        %v2200 = vpop.xlane.xlu0 %2199
        %v2201 = vsub.f32 %v2197, %v2200
        %v2202 = vmul.f32 %v2201, 1.442695
        %v2203 = vpow.pop %v2202
        %v2204 = vsel %vm869, %v2203, 0.0
        %2205 = vadd.xlane.f32.xlu0 %v2204
        %v2206 = vpop.xlane.xlu0 %2205
        %v2207 = vrcp.pop %v2206
        %v2208 = vmul.f32 %v2203, %v2207
        %2209 = vst.msk [vmem:[%s729] sm:$0xff] %vm869, %v2208
        %v2210 = vld [vmem:[%s12] sm:$0xff]
        %v2211 = vld [vmem:[%s12 + $0x8] sm:$0xff]
        %v2212 = vld [vmem:[%s12 + $0x10] sm:$0xff]
        %v2213 = vld [vmem:[%s12 + $0x18] sm:$0xff]
        %v2214 = vld [vmem:[%s12 + $0x20] sm:$0xff]
        %v2215 = vld [vmem:[%s12 + $0x28] sm:$0xff]
        %v2216 = vld [vmem:[%s12 + $0x30] sm:$0xff]
        %v2217 = vld [vmem:[%s12 + $0x38] sm:$0xff]
        %vm2218 = vcmask 261120
        %v2220 = vsel %vm2218, %v2210, 0
        %v2223 = vsel %vm2218, %v2211, 0
        %v2226 = vsel %vm2218, %v2212, 0
        %v2229 = vsel %vm2218, %v2213, 0
        %v2232 = vsel %vm2218, %v2214, 0
        %v2235 = vsel %vm2218, %v2215, 0
        %v2238 = vsel %vm2218, %v2216, 0
        %v2241 = vsel %vm2218, %v2217, 0
        %2243 = vmatprep.subr.mxu0 0.0
        %2244 = vmatpush1.msra.mxu0 %v751
        %2245 = vmatprep.subr.mxu0 0.0
        %2246 = vmatpush1.msra.mxu0 %v752
        %2247 = vmatprep.subr.mxu0 0.0
        %2248 = vmatpush1.msra.mxu0 %v753
        %2249 = vmatprep.subr.mxu0 0.0
        %2250 = vmatpush1.msra.mxu0 %v754
        %2251 = vmatprep.subr.mxu0 0.0
        %2252 = vmatpush1.msra.mxu0 0.0
        %2253 = vmatprep.subr.mxu0 0.0
        %2254 = vmatpush1.msra.mxu0 0.0
        %2255 = vmatprep.subr.mxu0 0.0
        %2256 = vmatpush1.msra.mxu0 0.0
        %2257 = vmatprep.subr.mxu0 0.0
        %2258 = vmatpush1.msra.mxu0 0.0
        %2259 = vmatprep.subr.mxu0 0.0
        %2260 = vmatpush1.msra.mxu0 0.0
        %2261 = vmatprep.subr.mxu0 0.0
        %2262 = vmatpush1.msra.mxu0 0.0
        %2263 = vmatprep.subr.mxu0 0.0
        %2264 = vmatpush1.msra.mxu0 0.0
        %2265 = vmatprep.subr.mxu0 0.0
        %2266 = vmatpush1.msra.mxu0 0.0
        %2267 = vmatprep.subr.mxu0 0.0
        %2268 = vmatpush1.msra.mxu0 0.0
        %2269 = vmatprep.subr.mxu0 0.0
        %2270 = vmatpush1.msra.mxu0 0.0
        %2271 = vmatprep.subr.mxu0 0.0
        %2272 = vmatpush1.msra.mxu0 0.0
        %2273 = vmatprep.subr.mxu0 0.0
        %2274 = vmatpush1.msra.mxu0 0.0
        %2275 = vmatprep.subr.mxu0 0.0
        %2276 = vmatpush1.msra.mxu0 0.0
        %2277 = vmatprep.subr.mxu0 0.0
        %2278 = vmatpush1.msra.mxu0 0.0
        %2279 = vmatprep.subr.mxu0 0.0
        %2280 = vmatpush1.msra.mxu0 0.0
        %2281 = vmatprep.subr.mxu0 0.0
        %2282 = vmatpush1.msra.mxu0 0.0
        %2283 = vmatprep.subr.mxu0 0.0
        %2284 = vmatpush1.msra.mxu0 0.0
        %2285 = vmatprep.subr.mxu0 0.0
        %2286 = vmatpush1.msra.mxu0 0.0
        %2287 = vmatprep.subr.mxu0 0.0
        %2288 = vmatpush1.msra.mxu0 0.0
        %2289 = vmatprep.subr.mxu0 0.0
        %2290 = vmatpush1.msra.mxu0 0.0
        %2291 = vmatprep.subr.mxu0 0.0
        %2292 = vmatpush1.msra.mxu0 0.0
        %2293 = vmatprep.subr.mxu0 0.0
        %2294 = vmatpush1.msra.mxu0 0.0
        %2295 = vmatprep.subr.mxu0 0.0
        %2296 = vmatpush1.msra.mxu0 0.0
        %2297 = vmatprep.subr.mxu0 0.0
        %2298 = vmatpush1.msra.mxu0 0.0
        %2299 = vmatprep.subr.mxu0 0.0
        %2300 = vmatpush1.msra.mxu0 0.0
        %2301 = vmatprep.subr.mxu0 0.0
        %2302 = vmatpush1.msra.mxu0 0.0
        %2303 = vmatprep.subr.mxu0 0.0
        %2304 = vmatpush1.msra.mxu0 0.0
        %2305 = vmatprep.subr.mxu0 0.0
        %2306 = vmatpush1.msra.mxu0 0.0
        %2307 = vmatprep.mubr.f32.mxu0 0.0
        %2308 = vmatmul.mubr.f32.gmra.mrb[0].mxu0 %v2220
        %v2309 = vpop.f32.mrb[0].mxu0
        %v2310 = vadd.f32 0.0, %v2309
        %v2311 = vpop.f32.mrb[0].mxu0
        %2312 = vmatprep.mubr.f32.mxu0 0.0
        %2313 = vmatmul.mubr.f32.gmra.mrb[0].mxu0 %v2223
        %v2314 = vpop.f32.mrb[0].mxu0
        %v2315 = vadd.f32 0.0, %v2314
        %v2316 = vpop.f32.mrb[0].mxu0
        %2317 = vmatprep.mubr.f32.mxu0 0.0
        %2318 = vmatmul.mubr.f32.gmra.mrb[0].mxu0 %v2226
        %v2319 = vpop.f32.mrb[0].mxu0
        %v2320 = vadd.f32 0.0, %v2319
        %v2321 = vpop.f32.mrb[0].mxu0
        %2322 = vmatprep.mubr.f32.mxu0 0.0
        %2323 = vmatmul.mubr.f32.gmra.mrb[0].mxu0 %v2229
        %v2324 = vpop.f32.mrb[0].mxu0
        %v2325 = vadd.f32 0.0, %v2324
        %v2326 = vpop.f32.mrb[0].mxu0
        %2327 = vmatprep.mubr.f32.mxu0 0.0
        %2328 = vmatmul.mubr.f32.gmra.mrb[0].mxu0 %v2232
        %v2329 = vpop.f32.mrb[0].mxu0
        %v2330 = vadd.f32 0.0, %v2329
        %v2331 = vpop.f32.mrb[0].mxu0
        %2332 = vmatprep.mubr.f32.mxu0 0.0
        %2333 = vmatmul.mubr.f32.gmra.mrb[0].mxu0 %v2235
        %v2334 = vpop.f32.mrb[0].mxu0
        %v2335 = vadd.f32 0.0, %v2334
        %v2336 = vpop.f32.mrb[0].mxu0
        %2337 = vmatprep.mubr.f32.mxu0 0.0
        %2338 = vmatmul.mubr.f32.gmra.mrb[0].mxu0 %v2238
        %v2339 = vpop.f32.mrb[0].mxu0
        %v2340 = vadd.f32 0.0, %v2339
        %v2341 = vpop.f32.mrb[0].mxu0
        %2342 = vmatprep.mubr.f32.mxu0 0.0
        %2343 = vmatmul.mubr.f32.gmra.mrb[0].mxu0 %v2241
        %v2344 = vpop.f32.mrb[0].mxu0
        %v2345 = vadd.f32 0.0, %v2344
        %v2346 = vpop.f32.mrb[0].mxu0
        %2347 = vdwg.mxu0
        %v2348 = vld [vmem:[%s16] sm:$0xff]
        %v2350 = vsel %vm869, %v2208, 0
        %2352 = vmatprep.subr.mxu0 0.0
        %2353 = vmatpush1.msra.mxu0 %v2348
        %2354 = vmatprep.subr.mxu0 0.0
        %2355 = vmatpush1.msra.mxu0 0.0
        %2356 = vmatprep.subr.mxu0 0.0
        %2357 = vmatpush1.msra.mxu0 0.0
        %2358 = vmatprep.subr.mxu0 0.0
        %2359 = vmatpush1.msra.mxu0 0.0
        %2360 = vmatprep.subr.mxu0 0.0
        %2361 = vmatpush1.msra.mxu0 0.0
        %2362 = vmatprep.subr.mxu0 0.0
        %2363 = vmatpush1.msra.mxu0 0.0
        %2364 = vmatprep.subr.mxu0 0.0
        %2365 = vmatpush1.msra.mxu0 0.0
        %2366 = vmatprep.subr.mxu0 0.0
        %2367 = vmatpush1.msra.mxu0 0.0
        %2368 = vmatprep.subr.mxu0 0.0
        %2369 = vmatpush1.msra.mxu0 0.0
        %2370 = vmatprep.subr.mxu0 0.0
        %2371 = vmatpush1.msra.mxu0 0.0
        %2372 = vmatprep.subr.mxu0 0.0
        %2373 = vmatpush1.msra.mxu0 0.0
        %2374 = vmatprep.subr.mxu0 0.0
        %2375 = vmatpush1.msra.mxu0 0.0
        %2376 = vmatprep.subr.mxu0 0.0
        %2377 = vmatpush1.msra.mxu0 0.0
        %2378 = vmatprep.subr.mxu0 0.0
        %2379 = vmatpush1.msra.mxu0 0.0
        %2380 = vmatprep.subr.mxu0 0.0
        %2381 = vmatpush1.msra.mxu0 0.0
        %2382 = vmatprep.subr.mxu0 0.0
        %2383 = vmatpush1.msra.mxu0 0.0
        %2384 = vmatprep.subr.mxu0 0.0
        %2385 = vmatpush1.msra.mxu0 0.0
        %2386 = vmatprep.subr.mxu0 0.0
        %2387 = vmatpush1.msra.mxu0 0.0
        %2388 = vmatprep.subr.mxu0 0.0
        %2389 = vmatpush1.msra.mxu0 0.0
        %2390 = vmatprep.subr.mxu0 0.0
        %2391 = vmatpush1.msra.mxu0 0.0
        %2392 = vmatprep.subr.mxu0 0.0
        %2393 = vmatpush1.msra.mxu0 0.0
        %2394 = vmatprep.subr.mxu0 0.0
        %2395 = vmatpush1.msra.mxu0 0.0
        %2396 = vmatprep.subr.mxu0 0.0
        %2397 = vmatpush1.msra.mxu0 0.0
        %2398 = vmatprep.subr.mxu0 0.0
        %2399 = vmatpush1.msra.mxu0 0.0
        %2400 = vmatprep.subr.mxu0 0.0
        %2401 = vmatpush1.msra.mxu0 0.0
        %2402 = vmatprep.subr.mxu0 0.0
        %2403 = vmatpush1.msra.mxu0 0.0
        %2404 = vmatprep.subr.mxu0 0.0
        %2405 = vmatpush1.msra.mxu0 0.0
        %2406 = vmatprep.subr.mxu0 0.0
        %2407 = vmatpush1.msra.mxu0 0.0
        %2408 = vmatprep.subr.mxu0 0.0
        %2409 = vmatpush1.msra.mxu0 0.0
        %2410 = vmatprep.subr.mxu0 0.0
        %2411 = vmatpush1.msra.mxu0 0.0
        %2412 = vmatprep.subr.mxu0 0.0
        %2413 = vmatpush1.msra.mxu0 0.0
        %2414 = vmatprep.subr.mxu0 0.0
        %2415 = vmatpush1.msra.mxu0 0.0
        %2416 = vmatprep.mubr.f32.mxu0 0.0
        %2417 = vmatmul.mubr.f32.gmra.mrb[0].mxu0 %v2350
        %v2418 = vpop.f32.mrb[0].mxu0
        %v2419 = vadd.f32 0.0, %v2418
        %v2420 = vpop.f32.mrb[0].mxu0
        %2421 = vdwg.mxu0
        %v2422 = vld [vmem:[%s15] sm:$0xff]
        %v2423 = vld [vmem:[%s15 + $0x8] sm:$0xff]
        %v2424 = vld [vmem:[%s15 + $0x10] sm:$0xff]
        %v2425 = vld [vmem:[%s15 + $0x18] sm:$0xff]
        %v2426 = vld [vmem:[%s15 + $0x20] sm:$0xff]
        %v2427 = vld [vmem:[%s15 + $0x28] sm:$0xff]
        %v2428 = vld [vmem:[%s15 + $0x30] sm:$0xff]
        %v2429 = vld [vmem:[%s15 + $0x38] sm:$0xff]
        %v2431 = vsel %vm869, %v2422, 0
        %v2434 = vsel %vm869, %v2423, 0
        %v2437 = vsel %vm869, %v2424, 0
        %v2440 = vsel %vm869, %v2425, 0
        %v2443 = vsel %vm869, %v2426, 0
        %v2446 = vsel %vm869, %v2427, 0
        %v2449 = vsel %vm869, %v2428, 0
        %v2452 = vsel %vm869, %v2429, 0
        %2454 = vmatprep.subr.mxu0 0.0
        %2455 = vmatpush1.msra.mxu0 %v2419
        %2456 = vmatprep.subr.mxu0 0.0
        %2457 = vmatpush1.msra.mxu0 0.0
        %2458 = vmatprep.subr.mxu0 0.0
        %2459 = vmatpush1.msra.mxu0 0.0
        %2460 = vmatprep.subr.mxu0 0.0
        %2461 = vmatpush1.msra.mxu0 0.0
        %2462 = vmatprep.subr.mxu0 0.0
        %2463 = vmatpush1.msra.mxu0 0.0
        %2464 = vmatprep.subr.mxu0 0.0
        %2465 = vmatpush1.msra.mxu0 0.0
        %2466 = vmatprep.subr.mxu0 0.0
        %2467 = vmatpush1.msra.mxu0 0.0
        %2468 = vmatprep.subr.mxu0 0.0
        %2469 = vmatpush1.msra.mxu0 0.0
        %2470 = vmatprep.subr.mxu0 0.0
        %2471 = vmatpush1.msra.mxu0 0.0
        %2472 = vmatprep.subr.mxu0 0.0
        %2473 = vmatpush1.msra.mxu0 0.0
        %2474 = vmatprep.subr.mxu0 0.0
        %2475 = vmatpush1.msra.mxu0 0.0
        %2476 = vmatprep.subr.mxu0 0.0
        %2477 = vmatpush1.msra.mxu0 0.0
        %2478 = vmatprep.subr.mxu0 0.0
        %2479 = vmatpush1.msra.mxu0 0.0
        %2480 = vmatprep.subr.mxu0 0.0
        %2481 = vmatpush1.msra.mxu0 0.0
        %2482 = vmatprep.subr.mxu0 0.0
        %2483 = vmatpush1.msra.mxu0 0.0
        %2484 = vmatprep.subr.mxu0 0.0
        %2485 = vmatpush1.msra.mxu0 0.0
        %2486 = vmatprep.subr.mxu0 0.0
        %2487 = vmatpush1.msra.mxu0 0.0
        %2488 = vmatprep.subr.mxu0 0.0
        %2489 = vmatpush1.msra.mxu0 0.0
        %2490 = vmatprep.subr.mxu0 0.0
        %2491 = vmatpush1.msra.mxu0 0.0
        %2492 = vmatprep.subr.mxu0 0.0
        %2493 = vmatpush1.msra.mxu0 0.0
        %2494 = vmatprep.subr.mxu0 0.0
        %2495 = vmatpush1.msra.mxu0 0.0
        %2496 = vmatprep.subr.mxu0 0.0
        %2497 = vmatpush1.msra.mxu0 0.0
        %2498 = vmatprep.subr.mxu0 0.0
        %2499 = vmatpush1.msra.mxu0 0.0
        %2500 = vmatprep.subr.mxu0 0.0
        %2501 = vmatpush1.msra.mxu0 0.0
        %2502 = vmatprep.subr.mxu0 0.0
        %2503 = vmatpush1.msra.mxu0 0.0
        %2504 = vmatprep.subr.mxu0 0.0
        %2505 = vmatpush1.msra.mxu0 0.0
        %2506 = vmatprep.subr.mxu0 0.0
        %2507 = vmatpush1.msra.mxu0 0.0
        %2508 = vmatprep.subr.mxu0 0.0
        %2509 = vmatpush1.msra.mxu0 0.0
        %2510 = vmatprep.subr.mxu0 0.0
        %2511 = vmatpush1.msra.mxu0 0.0
        %2512 = vmatprep.subr.mxu0 0.0
        %2513 = vmatpush1.msra.mxu0 0.0
        %2514 = vmatprep.subr.mxu0 0.0
        %2515 = vmatpush1.msra.mxu0 0.0
        %2516 = vmatprep.subr.mxu0 0.0
        %2517 = vmatpush1.msra.mxu0 0.0
        %2518 = vmatprep.mubr.f32.mxu0 0.0
        %2519 = vmatmul.mubr.f32.gmra.mrb[0].mxu0 %v2431
        %v2520 = vpop.f32.mrb[0].mxu0
        %v2521 = vadd.f32 0.0, %v2520
        %v2522 = vpop.f32.mrb[0].mxu0
        %2523 = vmatprep.mubr.f32.mxu0 0.0
        %2524 = vmatmul.mubr.f32.gmra.mrb[0].mxu0 %v2434
        %v2525 = vpop.f32.mrb[0].mxu0
        %v2526 = vadd.f32 0.0, %v2525
        %v2527 = vpop.f32.mrb[0].mxu0
        %2528 = vmatprep.mubr.f32.mxu0 0.0
        %2529 = vmatmul.mubr.f32.gmra.mrb[0].mxu0 %v2437
        %v2530 = vpop.f32.mrb[0].mxu0
        %v2531 = vadd.f32 0.0, %v2530
        %v2532 = vpop.f32.mrb[0].mxu0
        %2533 = vmatprep.mubr.f32.mxu0 0.0
        %2534 = vmatmul.mubr.f32.gmra.mrb[0].mxu0 %v2440
        %v2535 = vpop.f32.mrb[0].mxu0
        %v2536 = vadd.f32 0.0, %v2535
        %v2537 = vpop.f32.mrb[0].mxu0
        %2538 = vmatprep.mubr.f32.mxu0 0.0
        %2539 = vmatmul.mubr.f32.gmra.mrb[0].mxu0 %v2443
        %v2540 = vpop.f32.mrb[0].mxu0
        %v2541 = vadd.f32 0.0, %v2540
        %v2542 = vpop.f32.mrb[0].mxu0
        %2543 = vmatprep.mubr.f32.mxu0 0.0
        %2544 = vmatmul.mubr.f32.gmra.mrb[0].mxu0 %v2446
        %v2545 = vpop.f32.mrb[0].mxu0
        %v2546 = vadd.f32 0.0, %v2545
        %v2547 = vpop.f32.mrb[0].mxu0
        %2548 = vmatprep.mubr.f32.mxu0 0.0
        %2549 = vmatmul.mubr.f32.gmra.mrb[0].mxu0 %v2449
        %v2550 = vpop.f32.mrb[0].mxu0
        %v2551 = vadd.f32 0.0, %v2550
        %v2552 = vpop.f32.mrb[0].mxu0
        %2553 = vmatprep.mubr.f32.mxu0 0.0
        %2554 = vmatmul.mubr.f32.gmra.mrb[0].mxu0 %v2452
        %v2555 = vpop.f32.mrb[0].mxu0
        %v2556 = vadd.f32 0.0, %v2555
        %v2557 = vpop.f32.mrb[0].mxu0
        %2558 = vdwg.mxu0
        %v2559 = vld [vmem:[%s13] sm:$0xff]
        %v2560 = vld [vmem:[%s13 + $0x8] sm:$0xff]
        %v2561 = vld [vmem:[%s13 + $0x10] sm:$0xff]
        %v2562 = vld [vmem:[%s13 + $0x18] sm:$0xff]
        %v2563 = vld [vmem:[%s13 + $0x20] sm:$0xff]
        %v2564 = vld [vmem:[%s13 + $0x28] sm:$0xff]
        %v2565 = vld [vmem:[%s13 + $0x30] sm:$0xff]
        %v2566 = vld [vmem:[%s13 + $0x38] sm:$0xff]
        %v2567 = vmul.f32 %v2521, %v2559
        %v2568 = vmul.f32 %v2526, %v2560
        %v2569 = vmul.f32 %v2531, %v2561
        %v2570 = vmul.f32 %v2536, %v2562
        %v2571 = vmul.f32 %v2541, %v2563
        %v2572 = vmul.f32 %v2546, %v2564
        %v2573 = vmul.f32 %v2551, %v2565
        %v2574 = vmul.f32 %v2556, %v2566
        %v2575 = vld [vmem:[%s17] sm:$0xff]
        %v2576 = vld [vmem:[%s17 + $0x8] sm:$0xff]
        %v2577 = vld [vmem:[%s17 + $0x10] sm:$0xff]
        %v2578 = vld [vmem:[%s17 + $0x18] sm:$0xff]
        %v2579 = vld [vmem:[%s17 + $0x20] sm:$0xff]
        %v2580 = vld [vmem:[%s17 + $0x28] sm:$0xff]
        %v2581 = vld [vmem:[%s17 + $0x30] sm:$0xff]
        %v2582 = vld [vmem:[%s17 + $0x38] sm:$0xff]
        %2584 = vset.pattern.permute.xlu0 0
        %2585 = vperm.xlu0 %2584, %v2575
        %v2586 = vpop.permute.xlu0 %2585
        %2589 = vset.pattern.permute.xlu0 0
        %2590 = vperm.xlu0 %2589, %v2576
        %v2591 = vpop.permute.xlu0 %2590
        %2594 = vset.pattern.permute.xlu0 0
        %2595 = vperm.xlu0 %2594, %v2577
        %v2596 = vpop.permute.xlu0 %2595
        %2599 = vset.pattern.permute.xlu0 0
        %2600 = vperm.xlu0 %2599, %v2578
        %v2601 = vpop.permute.xlu0 %2600
        %2604 = vset.pattern.permute.xlu0 0
        %2605 = vperm.xlu0 %2604, %v2579
        %v2606 = vpop.permute.xlu0 %2605
        %2609 = vset.pattern.permute.xlu0 0
        %2610 = vperm.xlu0 %2609, %v2580
        %v2611 = vpop.permute.xlu0 %2610
        %2614 = vset.pattern.permute.xlu0 0
        %2615 = vperm.xlu0 %2614, %v2581
        %v2616 = vpop.permute.xlu0 %2615
        %2619 = vset.pattern.permute.xlu0 0
        %2620 = vperm.xlu0 %2619, %v2582
        %v2621 = vpop.permute.xlu0 %2620
        %v2624 = vsel %vm2218, %v2567, 0
        %v2627 = vsel %vm2218, %v2568, 0
        %v2630 = vsel %vm2218, %v2569, 0
        %v2633 = vsel %vm2218, %v2570, 0
        %v2636 = vsel %vm2218, %v2571, 0
        %v2639 = vsel %vm2218, %v2572, 0
        %v2642 = vsel %vm2218, %v2573, 0
        %v2645 = vsel %vm2218, %v2574, 0
        %2647 = vmatprep.subr.mxu0 0.0
        %2648 = vmatpush1.msra.mxu0 %v1839
        %2649 = vmatprep.subr.mxu0 0.0
        %2650 = vmatpush1.msra.mxu0 %v1844
        %2651 = vmatprep.subr.mxu0 0.0
        %2652 = vmatpush1.msra.mxu0 %v1849
        %2653 = vmatprep.subr.mxu0 0.0
        %2654 = vmatpush1.msra.mxu0 %v1854
        %2655 = vmatprep.subr.mxu0 0.0
        %2656 = vmatpush1.msra.mxu0 0.0
        %2657 = vmatprep.subr.mxu0 0.0
        %2658 = vmatpush1.msra.mxu0 0.0
        %2659 = vmatprep.subr.mxu0 0.0
        %2660 = vmatpush1.msra.mxu0 0.0
        %2661 = vmatprep.subr.mxu0 0.0
        %2662 = vmatpush1.msra.mxu0 0.0
        %2663 = vmatprep.subr.mxu0 0.0
        %2664 = vmatpush1.msra.mxu0 0.0
        %2665 = vmatprep.subr.mxu0 0.0
        %2666 = vmatpush1.msra.mxu0 0.0
        %2667 = vmatprep.subr.mxu0 0.0
        %2668 = vmatpush1.msra.mxu0 0.0
        %2669 = vmatprep.subr.mxu0 0.0
        %2670 = vmatpush1.msra.mxu0 0.0
        %2671 = vmatprep.subr.mxu0 0.0
        %2672 = vmatpush1.msra.mxu0 0.0
        %2673 = vmatprep.subr.mxu0 0.0
        %2674 = vmatpush1.msra.mxu0 0.0
        %2675 = vmatprep.subr.mxu0 0.0
        %2676 = vmatpush1.msra.mxu0 0.0
        %2677 = vmatprep.subr.mxu0 0.0
        %2678 = vmatpush1.msra.mxu0 0.0
        %2679 = vmatprep.subr.mxu0 0.0
        %2680 = vmatpush1.msra.mxu0 0.0
        %2681 = vmatprep.subr.mxu0 0.0
        %2682 = vmatpush1.msra.mxu0 0.0
        %2683 = vmatprep.subr.mxu0 0.0
        %2684 = vmatpush1.msra.mxu0 0.0
        %2685 = vmatprep.subr.mxu0 0.0
        %2686 = vmatpush1.msra.mxu0 0.0
        %2687 = vmatprep.subr.mxu0 0.0
        %2688 = vmatpush1.msra.mxu0 0.0
        %2689 = vmatprep.subr.mxu0 0.0
        %2690 = vmatpush1.msra.mxu0 0.0
        %2691 = vmatprep.subr.mxu0 0.0
        %2692 = vmatpush1.msra.mxu0 0.0
        %2693 = vmatprep.subr.mxu0 0.0
        %2694 = vmatpush1.msra.mxu0 0.0
        %2695 = vmatprep.subr.mxu0 0.0
        %2696 = vmatpush1.msra.mxu0 0.0
        %2697 = vmatprep.subr.mxu0 0.0
        %2698 = vmatpush1.msra.mxu0 0.0
        %2699 = vmatprep.subr.mxu0 0.0
        %2700 = vmatpush1.msra.mxu0 0.0
        %2701 = vmatprep.subr.mxu0 0.0
        %2702 = vmatpush1.msra.mxu0 0.0
        %2703 = vmatprep.subr.mxu0 0.0
        %2704 = vmatpush1.msra.mxu0 0.0
        %2705 = vmatprep.subr.mxu0 0.0
        %2706 = vmatpush1.msra.mxu0 0.0
        %2707 = vmatprep.subr.mxu0 0.0
        %2708 = vmatpush1.msra.mxu0 0.0
        %2709 = vmatprep.subr.mxu0 0.0
        %2710 = vmatpush1.msra.mxu0 0.0
        %2711 = vmatprep.mubr.f32.mxu0 0.0
        %2712 = vmatmul.mubr.f32.gmra.mrb[0].mxu0 %v2624
        %v2713 = vpop.f32.mrb[0].mxu0
        %v2714 = vadd.f32 %v2586, %v2713
        %v2715 = vpop.f32.mrb[0].mxu0
        %2716 = vmatprep.mubr.f32.mxu0 0.0
        %2717 = vmatmul.mubr.f32.gmra.mrb[0].mxu0 %v2627
        %v2718 = vpop.f32.mrb[0].mxu0
        %v2719 = vadd.f32 %v2591, %v2718
        %v2720 = vpop.f32.mrb[0].mxu0
        %2721 = vmatprep.mubr.f32.mxu0 0.0
        %2722 = vmatmul.mubr.f32.gmra.mrb[0].mxu0 %v2630
        %v2723 = vpop.f32.mrb[0].mxu0
        %v2724 = vadd.f32 %v2596, %v2723
        %v2725 = vpop.f32.mrb[0].mxu0
        %2726 = vmatprep.mubr.f32.mxu0 0.0
        %2727 = vmatmul.mubr.f32.gmra.mrb[0].mxu0 %v2633
        %v2728 = vpop.f32.mrb[0].mxu0
        %v2729 = vadd.f32 %v2601, %v2728
        %v2730 = vpop.f32.mrb[0].mxu0
        %2731 = vmatprep.mubr.f32.mxu0 0.0
        %2732 = vmatmul.mubr.f32.gmra.mrb[0].mxu0 %v2636
        %v2733 = vpop.f32.mrb[0].mxu0
        %v2734 = vadd.f32 %v2606, %v2733
        %v2735 = vpop.f32.mrb[0].mxu0
        %2736 = vmatprep.mubr.f32.mxu0 0.0
        %2737 = vmatmul.mubr.f32.gmra.mrb[0].mxu0 %v2639
        %v2738 = vpop.f32.mrb[0].mxu0
        %v2739 = vadd.f32 %v2611, %v2738
        %v2740 = vpop.f32.mrb[0].mxu0
        %2741 = vmatprep.mubr.f32.mxu0 0.0
        %2742 = vmatmul.mubr.f32.gmra.mrb[0].mxu0 %v2642
        %v2743 = vpop.f32.mrb[0].mxu0
        %v2744 = vadd.f32 %v2616, %v2743
        %v2745 = vpop.f32.mrb[0].mxu0
        %2746 = vmatprep.mubr.f32.mxu0 0.0
        %2747 = vmatmul.mubr.f32.gmra.mrb[0].mxu0 %v2645
        %v2748 = vpop.f32.mrb[0].mxu0
        %v2749 = vadd.f32 %v2621, %v2748
        %v2750 = vpop.f32.mrb[0].mxu0
        %2751 = vdwg.mxu0
        %v2752 = vmax.f32 %v2714, 0.0
        %v2753 = vmax.f32 %v2719, 0.0
        %v2754 = vmax.f32 %v2724, 0.0
        %v2755 = vmax.f32 %v2729, 0.0
        %v2756 = vmax.f32 %v2734, 0.0
        %v2757 = vmax.f32 %v2739, 0.0
        %v2758 = vmax.f32 %v2744, 0.0
        %v2759 = vmax.f32 %v2749, 0.0
        %v2760 = vld [vmem:[%s14] sm:$0xff]
        %v2761 = vld [vmem:[%s14 + $0x8] sm:$0xff]
        %v2762 = vld [vmem:[%s14 + $0x10] sm:$0xff]
        %v2763 = vld [vmem:[%s14 + $0x18] sm:$0xff]
        %v2764 = vld [vmem:[%s14 + $0x20] sm:$0xff]
        %v2765 = vld [vmem:[%s14 + $0x28] sm:$0xff]
        %v2766 = vld [vmem:[%s14 + $0x30] sm:$0xff]
        %v2767 = vld [vmem:[%s14 + $0x38] sm:$0xff]
        %v2768 = vld [vmem:[%s14 + $0x40] sm:$0xff]
        %v2769 = vld [vmem:[%s14 + $0x48] sm:$0xff]
        %v2770 = vld [vmem:[%s14 + $0x50] sm:$0xff]
        %v2771 = vld [vmem:[%s14 + $0x58] sm:$0xff]
        %v2772 = vld [vmem:[%s14 + $0x60] sm:$0xff]
        %v2773 = vld [vmem:[%s14 + $0x68] sm:$0xff]
        %v2774 = vld [vmem:[%s14 + $0x70] sm:$0xff]
        %v2775 = vld [vmem:[%s14 + $0x78] sm:$0xff]
        %v2776 = vld [vmem:[%s14 + $0x80] sm:$0xff]
        %v2777 = vld [vmem:[%s14 + $0x88] sm:$0xff]
        %v2778 = vld [vmem:[%s14 + $0x90] sm:$0xff]
        %v2779 = vld [vmem:[%s14 + $0x98] sm:$0xff]
        %v2780 = vld [vmem:[%s14 + $0xa0] sm:$0xff]
        %v2781 = vld [vmem:[%s14 + $0xa8] sm:$0xff]
        %v2782 = vld [vmem:[%s14 + $0xb0] sm:$0xff]
        %v2783 = vld [vmem:[%s14 + $0xb8] sm:$0xff]
        %vm2784 = vcmask 523264
        %v2786 = vsel %vm2784, %v2760, 0
        %v2789 = vsel %vm2784, %v2761, 0
        %v2792 = vsel %vm2784, %v2762, 0
        %v2795 = vsel %vm2784, %v2763, 0
        %v2798 = vsel %vm2784, %v2764, 0
        %v2801 = vsel %vm2784, %v2765, 0
        %v2804 = vsel %vm2784, %v2766, 0
        %v2807 = vsel %vm2784, %v2767, 0
        %v2810 = vsel %vm2784, %v2768, 0
        %v2813 = vsel %vm2784, %v2769, 0
        %v2816 = vsel %vm2784, %v2770, 0
        %v2819 = vsel %vm2784, %v2771, 0
        %v2822 = vsel %vm2784, %v2772, 0
        %v2825 = vsel %vm2784, %v2773, 0
        %v2828 = vsel %vm2784, %v2774, 0
        %v2831 = vsel %vm2784, %v2775, 0
        %v2834 = vsel %vm2784, %v2776, 0
        %v2837 = vsel %vm2784, %v2777, 0
        %v2840 = vsel %vm2784, %v2778, 0
        %v2843 = vsel %vm2784, %v2779, 0
        %v2846 = vsel %vm2784, %v2780, 0
        %v2849 = vsel %vm2784, %v2781, 0
        %v2852 = vsel %vm2784, %v2782, 0
        %v2855 = vsel %vm2784, %v2783, 0
        %2857 = vmatprep.subr.mxu0 0.0
        %2858 = vmatpush1.msra.mxu0 %v2752
        %2859 = vmatprep.subr.mxu0 0.0
        %2860 = vmatpush1.msra.mxu0 %v2753
        %2861 = vmatprep.subr.mxu0 0.0
        %2862 = vmatpush1.msra.mxu0 %v2754
        %2863 = vmatprep.subr.mxu0 0.0
        %2864 = vmatpush1.msra.mxu0 %v2755
        %2865 = vmatprep.subr.mxu0 0.0
        %2866 = vmatpush1.msra.mxu0 %v2756
        %2867 = vmatprep.subr.mxu0 0.0
        %2868 = vmatpush1.msra.mxu0 %v2757
        %2869 = vmatprep.subr.mxu0 0.0
        %2870 = vmatpush1.msra.mxu0 %v2758
        %2871 = vmatprep.subr.mxu0 0.0
        %2872 = vmatpush1.msra.mxu0 %v2759
        %2873 = vmatprep.subr.mxu0 0.0
        %2874 = vmatpush1.msra.mxu0 0.0
        %2875 = vmatprep.subr.mxu0 0.0
        %2876 = vmatpush1.msra.mxu0 0.0
        %2877 = vmatprep.subr.mxu0 0.0
        %2878 = vmatpush1.msra.mxu0 0.0
        %2879 = vmatprep.subr.mxu0 0.0
        %2880 = vmatpush1.msra.mxu0 0.0
        %2881 = vmatprep.subr.mxu0 0.0
        %2882 = vmatpush1.msra.mxu0 0.0
        %2883 = vmatprep.subr.mxu0 0.0
        %2884 = vmatpush1.msra.mxu0 0.0
        %2885 = vmatprep.subr.mxu0 0.0
        %2886 = vmatpush1.msra.mxu0 0.0
        %2887 = vmatprep.subr.mxu0 0.0
        %2888 = vmatpush1.msra.mxu0 0.0
        %2889 = vmatprep.subr.mxu0 0.0
        %2890 = vmatpush1.msra.mxu0 0.0
        %2891 = vmatprep.subr.mxu0 0.0
        %2892 = vmatpush1.msra.mxu0 0.0
        %2893 = vmatprep.subr.mxu0 0.0
        %2894 = vmatpush1.msra.mxu0 0.0
        %2895 = vmatprep.subr.mxu0 0.0
        %2896 = vmatpush1.msra.mxu0 0.0
        %2897 = vmatprep.subr.mxu0 0.0
        %2898 = vmatpush1.msra.mxu0 0.0
        %2899 = vmatprep.subr.mxu0 0.0
        %2900 = vmatpush1.msra.mxu0 0.0
        %2901 = vmatprep.subr.mxu0 0.0
        %2902 = vmatpush1.msra.mxu0 0.0
        %2903 = vmatprep.subr.mxu0 0.0
        %2904 = vmatpush1.msra.mxu0 0.0
        %2905 = vmatprep.subr.mxu0 0.0
        %2906 = vmatpush1.msra.mxu0 0.0
        %2907 = vmatprep.subr.mxu0 0.0
        %2908 = vmatpush1.msra.mxu0 0.0
        %2909 = vmatprep.subr.mxu0 0.0
        %2910 = vmatpush1.msra.mxu0 0.0
        %2911 = vmatprep.subr.mxu0 0.0
        %2912 = vmatpush1.msra.mxu0 0.0
        %2913 = vmatprep.subr.mxu0 0.0
        %2914 = vmatpush1.msra.mxu0 0.0
        %2915 = vmatprep.subr.mxu0 0.0
        %2916 = vmatpush1.msra.mxu0 0.0
        %2917 = vmatprep.subr.mxu0 0.0
        %2918 = vmatpush1.msra.mxu0 0.0
        %2919 = vmatprep.subr.mxu0 0.0
        %2920 = vmatpush1.msra.mxu0 0.0
        %2921 = vmatprep.mubr.f32.mxu0 0.0
        %2922 = vmatmul.mubr.f32.gmra.mrb[0].mxu0 %v2786
        %v2923 = vpop.f32.mrb[0].mxu0
        %v2924 = vadd.f32 0.0, %v2923
        %v2925 = vpop.f32.mrb[0].mxu0
        %2926 = vmatprep.mubr.f32.mxu0 0.0
        %2927 = vmatmul.mubr.f32.gmra.mrb[0].mxu0 %v2789
        %v2928 = vpop.f32.mrb[0].mxu0
        %v2929 = vadd.f32 0.0, %v2928
        %v2930 = vpop.f32.mrb[0].mxu0
        %2931 = vmatprep.mubr.f32.mxu0 0.0
        %2932 = vmatmul.mubr.f32.gmra.mrb[0].mxu0 %v2792
        %v2933 = vpop.f32.mrb[0].mxu0
        %v2934 = vadd.f32 0.0, %v2933
        %v2935 = vpop.f32.mrb[0].mxu0
        %2936 = vmatprep.mubr.f32.mxu0 0.0
        %2937 = vmatmul.mubr.f32.gmra.mrb[0].mxu0 %v2795
        %v2938 = vpop.f32.mrb[0].mxu0
        %v2939 = vadd.f32 0.0, %v2938
        %v2940 = vpop.f32.mrb[0].mxu0
        %2941 = vmatprep.mubr.f32.mxu0 0.0
        %2942 = vmatmul.mubr.f32.gmra.mrb[0].mxu0 %v2798
        %v2943 = vpop.f32.mrb[0].mxu0
        %v2944 = vadd.f32 0.0, %v2943
        %v2945 = vpop.f32.mrb[0].mxu0
        %2946 = vmatprep.mubr.f32.mxu0 0.0
        %2947 = vmatmul.mubr.f32.gmra.mrb[0].mxu0 %v2801
        %v2948 = vpop.f32.mrb[0].mxu0
        %v2949 = vadd.f32 0.0, %v2948
        %v2950 = vpop.f32.mrb[0].mxu0
        %2951 = vmatprep.mubr.f32.mxu0 0.0
        %2952 = vmatmul.mubr.f32.gmra.mrb[0].mxu0 %v2804
        %v2953 = vpop.f32.mrb[0].mxu0
        %v2954 = vadd.f32 0.0, %v2953
        %v2955 = vpop.f32.mrb[0].mxu0
        %2956 = vmatprep.mubr.f32.mxu0 0.0
        %2957 = vmatmul.mubr.f32.gmra.mrb[0].mxu0 %v2807
        %v2958 = vpop.f32.mrb[0].mxu0
        %v2959 = vadd.f32 0.0, %v2958
        %v2960 = vpop.f32.mrb[0].mxu0
        %2961 = vmatprep.mubr.f32.mxu0 0.0
        %2962 = vmatmul.mubr.f32.gmra.mrb[0].mxu0 %v2810
        %v2963 = vpop.f32.mrb[0].mxu0
        %v2964 = vadd.f32 0.0, %v2963
        %v2965 = vpop.f32.mrb[0].mxu0
        %2966 = vmatprep.mubr.f32.mxu0 0.0
        %2967 = vmatmul.mubr.f32.gmra.mrb[0].mxu0 %v2813
        %v2968 = vpop.f32.mrb[0].mxu0
        %v2969 = vadd.f32 0.0, %v2968
        %v2970 = vpop.f32.mrb[0].mxu0
        %2971 = vmatprep.mubr.f32.mxu0 0.0
        %2972 = vmatmul.mubr.f32.gmra.mrb[0].mxu0 %v2816
        %v2973 = vpop.f32.mrb[0].mxu0
        %v2974 = vadd.f32 0.0, %v2973
        %v2975 = vpop.f32.mrb[0].mxu0
        %2976 = vmatprep.mubr.f32.mxu0 0.0
        %2977 = vmatmul.mubr.f32.gmra.mrb[0].mxu0 %v2819
        %v2978 = vpop.f32.mrb[0].mxu0
        %v2979 = vadd.f32 0.0, %v2978
        %v2980 = vpop.f32.mrb[0].mxu0
        %2981 = vmatprep.mubr.f32.mxu0 0.0
        %2982 = vmatmul.mubr.f32.gmra.mrb[0].mxu0 %v2822
        %v2983 = vpop.f32.mrb[0].mxu0
        %v2984 = vadd.f32 0.0, %v2983
        %v2985 = vpop.f32.mrb[0].mxu0
        %2986 = vmatprep.mubr.f32.mxu0 0.0
        %2987 = vmatmul.mubr.f32.gmra.mrb[0].mxu0 %v2825
        %v2988 = vpop.f32.mrb[0].mxu0
        %v2989 = vadd.f32 0.0, %v2988
        %v2990 = vpop.f32.mrb[0].mxu0
        %2991 = vmatprep.mubr.f32.mxu0 0.0
        %2992 = vmatmul.mubr.f32.gmra.mrb[0].mxu0 %v2828
        %v2993 = vpop.f32.mrb[0].mxu0
        %v2994 = vadd.f32 0.0, %v2993
        %v2995 = vpop.f32.mrb[0].mxu0
        %2996 = vmatprep.mubr.f32.mxu0 0.0
        %2997 = vmatmul.mubr.f32.gmra.mrb[0].mxu0 %v2831
        %v2998 = vpop.f32.mrb[0].mxu0
        %v2999 = vadd.f32 0.0, %v2998
        %v3000 = vpop.f32.mrb[0].mxu0
        %3001 = vmatprep.mubr.f32.mxu0 0.0
        %3002 = vmatmul.mubr.f32.gmra.mrb[0].mxu0 %v2834
        %v3003 = vpop.f32.mrb[0].mxu0
        %v3004 = vadd.f32 0.0, %v3003
        %v3005 = vpop.f32.mrb[0].mxu0
        %3006 = vmatprep.mubr.f32.mxu0 0.0
        %3007 = vmatmul.mubr.f32.gmra.mrb[0].mxu0 %v2837
        %v3008 = vpop.f32.mrb[0].mxu0
        %v3009 = vadd.f32 0.0, %v3008
        %v3010 = vpop.f32.mrb[0].mxu0
        %3011 = vmatprep.mubr.f32.mxu0 0.0
        %3012 = vmatmul.mubr.f32.gmra.mrb[0].mxu0 %v2840
        %v3013 = vpop.f32.mrb[0].mxu0
        %v3014 = vadd.f32 0.0, %v3013
        %v3015 = vpop.f32.mrb[0].mxu0
        %3016 = vmatprep.mubr.f32.mxu0 0.0
        %3017 = vmatmul.mubr.f32.gmra.mrb[0].mxu0 %v2843
        %v3018 = vpop.f32.mrb[0].mxu0
        %v3019 = vadd.f32 0.0, %v3018
        %v3020 = vpop.f32.mrb[0].mxu0
        %3021 = vmatprep.mubr.f32.mxu0 0.0
        %3022 = vmatmul.mubr.f32.gmra.mrb[0].mxu0 %v2846
        %v3023 = vpop.f32.mrb[0].mxu0
        %v3024 = vadd.f32 0.0, %v3023
        %v3025 = vpop.f32.mrb[0].mxu0
        %3026 = vmatprep.mubr.f32.mxu0 0.0
        %3027 = vmatmul.mubr.f32.gmra.mrb[0].mxu0 %v2849
        %v3028 = vpop.f32.mrb[0].mxu0
        %v3029 = vadd.f32 0.0, %v3028
        %v3030 = vpop.f32.mrb[0].mxu0
        %3031 = vmatprep.mubr.f32.mxu0 0.0
        %3032 = vmatmul.mubr.f32.gmra.mrb[0].mxu0 %v2852
        %v3033 = vpop.f32.mrb[0].mxu0
        %v3034 = vadd.f32 0.0, %v3033
        %v3035 = vpop.f32.mrb[0].mxu0
        %3036 = vmatprep.mubr.f32.mxu0 0.0
        %3037 = vmatmul.mubr.f32.gmra.mrb[0].mxu0 %v2855
        %v3038 = vpop.f32.mrb[0].mxu0
        %v3039 = vadd.f32 0.0, %v3038
        %v3040 = vpop.f32.mrb[0].mxu0
        %3041 = vdwg.mxu0
        %vm3042 = vcmp.ge.s32.totalorder %v2015, 1
        %3043 = vrot.lane.b32.xlu0 %v2924, 1
        %v3044 = vpop.permute.xlu0 %3043
        %3045 = vrot.lane.b32.xlu0 %v2929, 1
        %v3046 = vpop.permute.xlu0 %3045
        %3047 = vrot.lane.b32.xlu0 %v2934, 1
        %v3048 = vpop.permute.xlu0 %3047
        %3049 = vrot.lane.b32.xlu0 %v2939, 1
        %v3050 = vpop.permute.xlu0 %3049
        %3051 = vrot.lane.b32.xlu0 %v2944, 1
        %v3052 = vpop.permute.xlu0 %3051
        %3053 = vrot.lane.b32.xlu0 %v2949, 1
        %v3054 = vpop.permute.xlu0 %3053
        %3055 = vrot.lane.b32.xlu0 %v2954, 1
        %v3056 = vpop.permute.xlu0 %3055
        %3057 = vrot.lane.b32.xlu0 %v2959, 1
        %v3058 = vpop.permute.xlu0 %3057
        %v3059 = vsel %vm3042, %v3044, 0.0
        %v3060 = vsel %vm3042, %v3046, 0.0
        %v3061 = vsel %vm3042, %v3048, 0.0
        %v3062 = vsel %vm3042, %v3050, 0.0
        %v3063 = vsel %vm3042, %v3052, 0.0
        %v3064 = vsel %vm3042, %v3054, 0.0
        %v3065 = vsel %vm3042, %v3056, 0.0
        %v3066 = vsel %vm3042, %v3058, 0.0
        %vm3067 = vcmp.le.s32.totalorder %v2015, 126
        %3068 = vrot.lane.b32.xlu0 %v3004, 127
        %v3069 = vpop.permute.xlu0 %3068
        %3070 = vrot.lane.b32.xlu0 %v3009, 127
        %v3071 = vpop.permute.xlu0 %3070
        %3072 = vrot.lane.b32.xlu0 %v3014, 127
        %v3073 = vpop.permute.xlu0 %3072
        %3074 = vrot.lane.b32.xlu0 %v3019, 127
        %v3075 = vpop.permute.xlu0 %3074
        %3076 = vrot.lane.b32.xlu0 %v3024, 127
        %v3077 = vpop.permute.xlu0 %3076
        %3078 = vrot.lane.b32.xlu0 %v3029, 127
        %v3079 = vpop.permute.xlu0 %3078
        %3080 = vrot.lane.b32.xlu0 %v3034, 127
        %v3081 = vpop.permute.xlu0 %3080
        %3082 = vrot.lane.b32.xlu0 %v3039, 127
        %v3083 = vpop.permute.xlu0 %3082
        %v3084 = vsel %vm3067, %v3069, 0.0
        %v3085 = vsel %vm3067, %v3071, 0.0
        %v3086 = vsel %vm3067, %v3073, 0.0
        %v3087 = vsel %vm3067, %v3075, 0.0
        %v3088 = vsel %vm3067, %v3077, 0.0
        %v3089 = vsel %vm3067, %v3079, 0.0
        %v3090 = vsel %vm3067, %v3081, 0.0
        %v3091 = vsel %vm3067, %v3083, 0.0
        %v3092 = vadd.f32 %v3059, %v2964
        %v3093 = vadd.f32 %v3060, %v2969
        %v3094 = vadd.f32 %v3061, %v2974
        %v3095 = vadd.f32 %v3062, %v2979
        %v3096 = vadd.f32 %v3063, %v2984
        %v3097 = vadd.f32 %v3064, %v2989
        %v3098 = vadd.f32 %v3065, %v2994
        %v3099 = vadd.f32 %v3066, %v2999
        %v3100 = vadd.f32 %v3092, %v3084
        %v3101 = vadd.f32 %v3093, %v3085
        %v3102 = vadd.f32 %v3094, %v3086
        %v3103 = vadd.f32 %v3095, %v3087
        %v3104 = vadd.f32 %v3096, %v3088
        %v3105 = vadd.f32 %v3097, %v3089
        %v3106 = vadd.f32 %v3098, %v3090
        %v3107 = vadd.f32 %v3099, %v3091
        %v3108 = vadd.f32 %v3100, %v2310
        %v3109 = vadd.f32 %v3101, %v2315
        %v3110 = vadd.f32 %v3102, %v2320
        %v3111 = vadd.f32 %v3103, %v2325
        %v3112 = vadd.f32 %v3104, %v2330
        %v3113 = vadd.f32 %v3105, %v2335
        %v3114 = vadd.f32 %v3106, %v2340
        %v3115 = vadd.f32 %v3107, %v2345
        %v3116 = vld [vmem:[%s18] sm:$0xff]
        %v3117 = vld [vmem:[%s18 + $0x8] sm:$0xff]
        %v3118 = vld [vmem:[%s18 + $0x10] sm:$0xff]
        %v3119 = vld [vmem:[%s18 + $0x18] sm:$0xff]
        %v3120 = vld [vmem:[%s18 + $0x20] sm:$0xff]
        %v3121 = vld [vmem:[%s18 + $0x28] sm:$0xff]
        %v3122 = vld [vmem:[%s18 + $0x30] sm:$0xff]
        %v3123 = vld [vmem:[%s18 + $0x38] sm:$0xff]
        %3125 = vset.pattern.permute.xlu0 0
        %3126 = vperm.xlu0 %3125, %v3116
        %v3127 = vpop.permute.xlu0 %3126
        %3130 = vset.pattern.permute.xlu0 0
        %3131 = vperm.xlu0 %3130, %v3117
        %v3132 = vpop.permute.xlu0 %3131
        %3135 = vset.pattern.permute.xlu0 0
        %3136 = vperm.xlu0 %3135, %v3118
        %v3137 = vpop.permute.xlu0 %3136
        %3140 = vset.pattern.permute.xlu0 0
        %3141 = vperm.xlu0 %3140, %v3119
        %v3142 = vpop.permute.xlu0 %3141
        %3145 = vset.pattern.permute.xlu0 0
        %3146 = vperm.xlu0 %3145, %v3120
        %v3147 = vpop.permute.xlu0 %3146
        %3150 = vset.pattern.permute.xlu0 0
        %3151 = vperm.xlu0 %3150, %v3121
        %v3152 = vpop.permute.xlu0 %3151
        %3155 = vset.pattern.permute.xlu0 0
        %3156 = vperm.xlu0 %3155, %v3122
        %v3157 = vpop.permute.xlu0 %3156
        %3160 = vset.pattern.permute.xlu0 0
        %3161 = vperm.xlu0 %3160, %v3123
        %v3162 = vpop.permute.xlu0 %3161
        %v3164 = vadd.f32 %v3108, %v3127
        %v3165 = vadd.f32 %v3109, %v3132
        %v3166 = vadd.f32 %v3110, %v3137
        %v3167 = vadd.f32 %v3111, %v3142
        %v3168 = vadd.f32 %v3112, %v3147
        %v3169 = vadd.f32 %v3113, %v3152
        %v3170 = vadd.f32 %v3114, %v3157
        %v3171 = vadd.f32 %v3115, %v3162
        %v3172 = vmax.f32 %v3164, 0.0
        %v3173 = vmax.f32 %v3165, 0.0
        %v3174 = vmax.f32 %v3166, 0.0
        %v3175 = vmax.f32 %v3167, 0.0
        %v3176 = vmax.f32 %v3168, 0.0
        %v3177 = vmax.f32 %v3169, 0.0
        %v3178 = vmax.f32 %v3170, 0.0
        %v3179 = vmax.f32 %v3171, 0.0
        %v3180 = vadd.f32 %v3172, %v3173
        %v3181 = vadd.f32 %v3180, %v3174
        %v3182 = vadd.f32 %v3181, %v3175
        %v3183 = vadd.f32 %v3182, %v3176
        %v3184 = vadd.f32 %v3183, %v3177
        %v3185 = vadd.f32 %v3184, %v3178
        %v3186 = vadd.f32 %v3185, %v3179
        %3187 = vadd.xlane.f32.xlu0 %v3186
        %v3188 = vpop.xlane.xlu0 %3187
        %v3189 = vrot.slane %v3188, 4
        %v3190 = vadd.f32 %v3188, %v3189
        %v3191 = vrot.slane %v3190, 2
        %v3192 = vadd.f32 %v3190, %v3191
        %v3193 = vrot.slane %v3192, 1
        %v3194 = vadd.f32 %v3192, %v3193
        %s3195 = vtos %v3194
        %v3196 = vstv %s3195
        %v3197 = vrcp.pop 8192.0
        %v3198 = vmul.f32 %v3196, %v3197
        %v3199 = vsub.f32 %v3172, %v3198
        %v3200 = vsub.f32 %v3173, %v3198
        %v3201 = vsub.f32 %v3174, %v3198
        %v3202 = vsub.f32 %v3175, %v3198
        %v3203 = vsub.f32 %v3176, %v3198
        %v3204 = vsub.f32 %v3177, %v3198
        %v3205 = vsub.f32 %v3178, %v3198
        %v3206 = vsub.f32 %v3179, %v3198
        %v3207 = vmul.f32 %v3199, %v3199
        %v3208 = vmul.f32 %v3200, %v3200
        %v3209 = vmul.f32 %v3201, %v3201
        %v3210 = vmul.f32 %v3202, %v3202
        %v3211 = vmul.f32 %v3203, %v3203
        %v3212 = vmul.f32 %v3204, %v3204
        %v3213 = vmul.f32 %v3205, %v3205
        %v3214 = vmul.f32 %v3206, %v3206
        %v3215 = vadd.f32 %v3207, %v3208
        %v3216 = vadd.f32 %v3215, %v3209
        %v3217 = vadd.f32 %v3216, %v3210
        %v3218 = vadd.f32 %v3217, %v3211
        %v3219 = vadd.f32 %v3218, %v3212
        %v3220 = vadd.f32 %v3219, %v3213
        %v3221 = vadd.f32 %v3220, %v3214
        %3222 = vadd.xlane.f32.xlu0 %v3221
        %v3223 = vpop.xlane.xlu0 %3222
        %v3224 = vrot.slane %v3223, 4
        %v3225 = vadd.f32 %v3223, %v3224
        %v3226 = vrot.slane %v3225, 2
        %v3227 = vadd.f32 %v3225, %v3226
        %v3228 = vrot.slane %v3227, 1
        %v3229 = vadd.f32 %v3227, %v3228
        %s3230 = vtos %v3229
        %v3231 = vstv %s3230
        %v3232 = vmul.f32 %v3231, %v3197
        %v3233 = vadd.f32 %v3232, 1e-05
        %v3234 = vrsqrt.pop %v3233
        %v3235 = vmul.f32 %v3199, %v3234
        %v3236 = vmul.f32 %v3200, %v3234
        %v3237 = vmul.f32 %v3201, %v3234
        %v3238 = vmul.f32 %v3202, %v3234
        %v3239 = vmul.f32 %v3203, %v3234
        %v3240 = vmul.f32 %v3204, %v3234
        %v3241 = vmul.f32 %v3205, %v3234
        %v3242 = vmul.f32 %v3206, %v3234
        %v3243 = vld [vmem:[%s19] sm:$0xff]
        %v3244 = vld [vmem:[%s19 + $0x8] sm:$0xff]
        %v3245 = vld [vmem:[%s19 + $0x10] sm:$0xff]
        %v3246 = vld [vmem:[%s19 + $0x18] sm:$0xff]
        %v3247 = vld [vmem:[%s19 + $0x20] sm:$0xff]
        %v3248 = vld [vmem:[%s19 + $0x28] sm:$0xff]
        %v3249 = vld [vmem:[%s19 + $0x30] sm:$0xff]
        %v3250 = vld [vmem:[%s19 + $0x38] sm:$0xff]
        %v3251 = vmul.f32 %v3235, %v3243
        %v3252 = vmul.f32 %v3236, %v3244
        %v3253 = vmul.f32 %v3237, %v3245
        %v3254 = vmul.f32 %v3238, %v3246
        %v3255 = vmul.f32 %v3239, %v3247
        %v3256 = vmul.f32 %v3240, %v3248
        %v3257 = vmul.f32 %v3241, %v3249
        %v3258 = vmul.f32 %v3242, %v3250
        %v3259 = vld [vmem:[%s20] sm:$0xff]
        %v3260 = vld [vmem:[%s20 + $0x8] sm:$0xff]
        %v3261 = vld [vmem:[%s20 + $0x10] sm:$0xff]
        %v3262 = vld [vmem:[%s20 + $0x18] sm:$0xff]
        %v3263 = vld [vmem:[%s20 + $0x20] sm:$0xff]
        %v3264 = vld [vmem:[%s20 + $0x28] sm:$0xff]
        %v3265 = vld [vmem:[%s20 + $0x30] sm:$0xff]
        %v3266 = vld [vmem:[%s20 + $0x38] sm:$0xff]
        %v3267 = vadd.f32 %v3251, %v3259
        %v3268 = vadd.f32 %v3252, %v3260
        %v3269 = vadd.f32 %v3253, %v3261
        %v3270 = vadd.f32 %v3254, %v3262
        %v3271 = vadd.f32 %v3255, %v3263
        %v3272 = vadd.f32 %v3256, %v3264
        %v3273 = vadd.f32 %v3257, %v3265
        %v3274 = vadd.f32 %v3258, %v3266
        %3275 = vst [vmem:[%s722] sm:$0xff] %v3267
        %3276 = vst [vmem:[%s722 + $0x8] sm:$0xff] %v3268
        %3277 = vst [vmem:[%s722 + $0x10] sm:$0xff] %v3269
        %3278 = vst [vmem:[%s722 + $0x18] sm:$0xff] %v3270
        %3279 = vst [vmem:[%s722 + $0x20] sm:$0xff] %v3271
        %3280 = vst [vmem:[%s722 + $0x28] sm:$0xff] %v3272
        %3281 = vst [vmem:[%s722 + $0x30] sm:$0xff] %v3273
        %3282 = vst [vmem:[%s722 + $0x38] sm:$0xff] %v3274
        %s3283 = sand.u32 %s500, 1
        %s3284 = scalar_lea.sflag [#allocation3], %s3283
        %s3285 = sand.u32 %s500, 1
        %s3286 = smul.addr %s3285, 64
        %s3287 = scalar_lea.vmem [#allocation2], %s3286
        %s3288 = sand.u32 %s41, 1
        %s3289 = scalar_lea.sflag [#allocation5], %s3288
        %s3290 = sand.u32 %s526, 1
        %s3291 = smul.addr %s3290, 8
        %s3292 = scalar_lea.vmem [#allocation4], %s3291
        %s3293 = sand.u32 %s41, 1
        %s3294 = scalar_lea.sflag [#allocation5], %s3293
        %s3295 = sand.u32 %s552, 1
        %s3296 = smul.addr %s3295, 128
        %s3297 = scalar_lea.vmem [#allocation6], %s3296
        // Predicated region
        $region105: #{tpu_custom_call.1} parent=103 // pred_check
          %p3298 = pneg %p510
        $region106: #{tpu_custom_call.1} parent=103 // pred_check_branch
          %3300 = sbr.rel (%p3298) target = $region108
        $region107: #{tpu_custom_call.1} parent=103 // pred_region
          %s3302 = ssub.s32 1024, 1024
          %3303 = vsyncadd %s3284, %s3302
          %s3304 = smul.addr %s41, 8
          %s3305 = smul.addr %s3304, 128
          %s3306 = scalar_lea.hbm %s21, %s3305
          %s3307 = sshll.u32 %s3287, 4
          %s3308 = int_to_ptr.vmem [resolvable:$true] %s3307
          %3313 = dma.vmem_to_hbm [thread:$0]  %s3308, 1024, %s3306, %s3284, 128, 128, 8
        $region108: #{tpu_custom_call.1} parent=103 // pred_fallthru
          _
        // Predicated region
        $region109: #{tpu_custom_call.1} parent=103 // pred_check
          %p3314 = pneg %p536
        $region110: #{tpu_custom_call.1} parent=103 // pred_check_branch
          %3316 = sbr.rel (%p3314) target = $region112
        $region111: #{tpu_custom_call.1} parent=103 // pred_region
          %s3318 = ssub.s32 128, 128
          %3319 = vsyncadd %s3289, %s3318
          %s3320 = smul.addr %s41, 128
          %s3321 = scalar_lea.hbm %s22, %s3320
          %s3323 = sshll.u32 %s3292, 4
          %s3324 = int_to_ptr.vmem [resolvable:$true] %s3323
          %3326 = dma.vmem_to_hbm [thread:$0]  %s3324, 128, %s3321, %s3289
        $region112: #{tpu_custom_call.1} parent=103 // pred_fallthru
          _
        // Predicated region
        $region113: #{tpu_custom_call.1} parent=103 // pred_check
          %p3327 = pneg %p562
        $region114: #{tpu_custom_call.1} parent=103 // pred_check_branch
          %3329 = sbr.rel (%p3327) target = $region116
        $region115: #{tpu_custom_call.1} parent=103 // pred_region
          %s3331 = ssub.s32 2048, 2048
          %3332 = vsyncadd %s3294, %s3331
          %s3333 = smul.addr %s41, 16
          %s3334 = smul.addr %s3333, 128
          %s3335 = scalar_lea.hbm %s23, %s3334
          %s3336 = sshll.u32 %s3297, 4
          %s3337 = int_to_ptr.vmem [resolvable:$true] %s3336
          %3342 = dma.vmem_to_hbm [thread:$0]  %s3337, 2048, %s3335, %s3294, 128, 128, 8
        $region116: #{tpu_custom_call.1} parent=103 // pred_fallthru
          _
      $region104: #{tpu_custom_call.1} parent=5 // pred_fallthru
        _
      %p3343 = scmp.le.s32.totalorder 2, %s36
      // Predicated region
      $region117: #{tpu_custom_call.1} parent=5 // pred_check
        %p3344 = pneg %p3343
      $region118: #{tpu_custom_call.1} parent=5 // pred_check_branch
        %3346 = sbr.rel (%p3344) target = $region120
      $region119: #{tpu_custom_call.1} parent=5 // pred_region
        %s3347 = ssub.s32 %s36, 2
        // Predicated region
        $region121: #{tpu_custom_call.1} parent=119 // pred_check
          %p3348 = pneg %p516
        $region122: #{tpu_custom_call.1} parent=119 // pred_check_branch
          %3350 = sbr.rel (%p3348) target = $region124
        $region123: #{tpu_custom_call.1} parent=119 // pred_region
          %s3351 = sand.u32 %s501, 1
          %s3352 = scalar_lea.sflag [#allocation3], %s3351
          %s3353 = sand.u32 %s501, 1
          %s3354 = smul.addr %s3353, 64
          %s3355 = scalar_lea.vmem [#allocation2], %s3354
          %3356 = dma.done %s3352, 1024
        $region124: #{tpu_custom_call.1} parent=119 // pred_fallthru
          _
        // Predicated region
        $region125: #{tpu_custom_call.1} parent=119 // pred_check
          %p3357 = pneg %p542
        $region126: #{tpu_custom_call.1} parent=119 // pred_check_branch
          %3359 = sbr.rel (%p3357) target = $region128
        $region127: #{tpu_custom_call.1} parent=119 // pred_region
          %s3360 = sand.u32 %s42, 1
          %s3361 = scalar_lea.sflag [#allocation5], %s3360
          %s3362 = sand.u32 %s527, 1
          %s3363 = smul.addr %s3362, 8
          %s3364 = scalar_lea.vmem [#allocation4], %s3363
          %3365 = dma.done %s3361, 128
        $region128: #{tpu_custom_call.1} parent=119 // pred_fallthru
          _
        // Predicated region
        $region129: #{tpu_custom_call.1} parent=119 // pred_check
          %p3366 = pneg %p568
        $region130: #{tpu_custom_call.1} parent=119 // pred_check_branch
          %3368 = sbr.rel (%p3366) target = $region132
        $region131: #{tpu_custom_call.1} parent=119 // pred_region
          %s3369 = sand.u32 %s42, 1
          %s3370 = scalar_lea.sflag [#allocation5], %s3369
          %s3371 = sand.u32 %s553, 1
          %s3372 = smul.addr %s3371, 128
          %s3373 = scalar_lea.vmem [#allocation6], %s3372
          %3374 = dma.done %s3370, 2048
        $region132: #{tpu_custom_call.1} parent=119 // pred_fallthru
          _
      $region120: #{tpu_custom_call.1} parent=5 // pred_fallthru
        _
    $region6: #{tpu_custom_call.1} parent=1 // loop_footer
      %s40 = sadd.s32 1, %s36
    $region7: #{tpu_custom_call.1} parent=1 // loop_footer_branch
      %35 = sbr.rel target = $region3
    $region8: #{tpu_custom_call.1} parent=1 // loop_exit
      _
    %3375 = vsyncpa [#allocation3], 1
    %s3376 = scalar_lea.sflag [#allocation3], 1
    %3377 = vsyncpa %s3376, 1
    %3378 = vsyncpa [#allocation5], 1
    %s3379 = scalar_lea.sflag [#allocation5], 1
    %3380 = vsyncpa %s3379, 1

</llo_original>
